<compile_context>
chip_gen: v7x
topology: tpu7x:2x2x1
jax: 0.10.0
libtpu: 0.0.40
codegen_flags: <defaults>
</compile_context>

<pallas_src>
import functools
import math

import jax
import jax.numpy as jnp
from jax.experimental import pallas as pl
from jax.experimental.pallas import tpu as pltpu


# --------------------------------------------------------------------------
# Sizing helpers (per-generation VMEM-aware)
# --------------------------------------------------------------------------
def _vmem_capacity_bytes():
    try:
        return int(pltpu.get_tpu_info().vmem_capacity_bytes)
    except Exception:
        return 64 * 2 ** 20          # conservative floor (v7x per-TC VMEM)


def _vmem_need_bytes(tq, S, H):
    """Rough per-kernel VMEM footprint (blocks + scratch + live intermediates)."""
    q_blk = 2 * tq * H * 4           # f32 q block, double-buffered
    out_blk = 2 * tq * H * 4         # f32 out block, double-buffered
    kv_blk = 2 * 2 * S * H * 2       # bf16 K and V input blocks, double-buffered
    wgt = 2 * 6 * H * H * 2          # 6 bf16 HxH weights, double-buffered
    vec = 2 * 8 * H * 4              # biases / LN params
    scr = 2 * S * H * 2              # persistent bf16 projected K/V scratch
    interm = 4 * tq * S * 4 + 8 * tq * H * 4   # scores/probs + f32 activations
    return q_blk + out_blk + kv_blk + wgt + vec + scr + interm + (2 << 20)


def _choose_tq(S, H, cap_bytes):
    """Largest MXU-friendly query tile dividing S that fits the VMEM budget."""
    for cand in (512, 256, 128, 64, 32, 16, 8):
        if S % cand == 0 and _vmem_need_bytes(cand, S, H) <= int(0.75 * cap_bytes):
            return cand
    return S


# --------------------------------------------------------------------------
# Kernel
# --------------------------------------------------------------------------
def _mha_ffn_kernel(q_ref, k_ref, v_ref,
                    wq_ref, wk_ref, wv_ref, wo_ref,
                    bq_ref, bk_ref, bv_ref, bo_ref,
                    g1_ref, be1_ref,
                    w1_ref, w2_ref,
                    g2_ref, be2_ref,
                    out_ref,
                    k_scr, v_scr,
                    *, num_heads, alpha, eps, approx_recip):
    f32 = jnp.float32
    cdt = jnp.bfloat16                    # MXU operand dtype

    # ---- K/V in-projection: computed once per batch element (i == 0) ----
    @pl.when(pl.program_id(1) == 0)
    def _():
        k_in = k_ref[0]                   # (S, H) bf16
        v_in = v_ref[0]                   # (S, H) bf16
        kp = jnp.dot(k_in, wk_ref[...], preferred_element_type=f32) + bk_ref[...]
        vp = jnp.dot(v_in, wv_ref[...], preferred_element_type=f32) + bv_ref[...]
        k_scr[...] = kp.astype(cdt)
        v_scr[...] = vp.astype(cdt)

    x_in = q_ref[0]                       # (tq, H) f32 -- residual of the attn block
    tq, H = x_in.shape
    hd = H // num_heads
    scale = 1.0 / math.sqrt(hd)

    # ---- Q in-projection (per query tile) ----
    q = (jnp.dot(x_in.astype(cdt), wq_ref[...], preferred_element_type=f32)
         + bq_ref[...]).astype(cdt)       # (tq, H) bf16
    k = k_scr[...]                        # (S, H) bf16 (reused across q tiles)
    v = v_scr[...]                        # (S, H) bf16

    # ---- per-head attention with the out-projection fused in ----
    # Accumulate directly into a full-lane-width (tq, H) f32 register tile.
    attn = jnp.broadcast_to(bo_ref[...], (tq, H))          # f32, hoisted once
    dn_qkT = (((1,), (1,)), ((), ()))                       # contract head_dim of both
    for h in range(num_heads):            # static unroll (nh small)
        lo, hi = h * hd, (h + 1) * hd
        qh = q[:, lo:hi]                  # (tq, hd) bf16
        kh = k[:, lo:hi]                  # (S,  hd) bf16
        vh = v[:, lo:hi]                  # (S,  hd) bf16
        s = jax.lax.dot_general(qh, kh, dn_qkT,
                                preferred_element_type=f32) * scale   # (tq, S) f32
        m = jnp.max(s, axis=-1, keepdims=True)
        p = jnp.exp(s - m)                                            # f32
        l = jnp.sum(p, axis=-1, keepdims=True)
        ctx_h = jnp.dot(p.astype(cdt), vh, preferred_element_type=f32)  # (tq, hd)
        if approx_recip:
            ctx_h = ctx_h * pl.reciprocal(l, approx=True)   # EUP slot, ~free
        else:
            ctx_h = ctx_h / l
        # fused out-projection: this head's Wo row block, accumulated full-width
        attn = attn + jnp.dot(ctx_h.astype(cdt), wo_ref[lo:hi, :],
                              preferred_element_type=f32)

    # ---- residual + LayerNorm 1 (f32) ----
    y = attn + alpha * x_in
    mu = jnp.mean(y, axis=-1, keepdims=True)
    var = jnp.mean((y - mu) ** 2, axis=-1, keepdims=True)
    y = (y - mu) * jax.lax.rsqrt(var + eps) * g1_ref[...] + be1_ref[...]

    # ---- FFN (Linear -> ReLU -> Linear, no bias) + residual + LayerNorm 2 ----
    h1 = jnp.maximum(jnp.dot(y.astype(cdt), w1_ref[...], preferred_element_type=f32), 0.0)
    h2 = jnp.dot(h1.astype(cdt), w2_ref[...], preferred_element_type=f32)
    z = h2 + alpha * y
    mu2 = jnp.mean(z, axis=-1, keepdims=True)
    var2 = jnp.mean((z - mu2) ** 2, axis=-1, keepdims=True)
    out_ref[0] = (z - mu2) * jax.lax.rsqrt(var2 + eps) * g2_ref[...] + be2_ref[...]


# --------------------------------------------------------------------------
# Wrapper
# --------------------------------------------------------------------------
def my_multi_head_attention(q, k, v, params, *, num_heads=8, alpha=1.0, eps=1e-5,
                            tq=None, approx_recip=True):
    """q, k, v: (B, S, H) float32 (batch_first). params: dict, x @ W + b layout."""
    B, S, H = q.shape
    assert H % num_heads == 0

    cap = _vmem_capacity_bytes()
    if tq is None:
        tq = _choose_tq(S, H, cap)
    assert S % tq == 0
    nq = S // tq

    bf16 = jnp.bfloat16
    wq = params["wq"].astype(bf16)
    wk = params["wk"].astype(bf16)
    wv = params["wv"].astype(bf16)
    wo = params["wo"].astype(bf16)
    w1 = params["w1"].astype(bf16)
    w2 = params["w2"].astype(bf16)
    # K/V are only consumed as bf16 MXU operands -> ship them as bf16.
    k_bf = k.astype(bf16)
    v_bf = v.astype(bf16)

    q_spec = pl.BlockSpec((1, tq, H), lambda b, i: (b, i, 0))
    kv_spec = pl.BlockSpec((1, S, H), lambda b, i: (b, 0, 0))   # constant along i
    out_spec = pl.BlockSpec((1, tq, H), lambda b, i: (b, i, 0))
    mat_spec = pl.BlockSpec((H, H), lambda b, i: (0, 0))
    vec_spec = pl.BlockSpec((1, H), lambda b, i: (0, 0))

    need = _vmem_need_bytes(tq, S, H)
    vmem_limit = int(min(max(32 * 2 ** 20, need), int(0.9 * cap)))

    flops = int(B * (12 * S * H * H + 4 * S * S * H))
    transcendentals = int(B * num_heads * S * (S + 1) + 4 * B * S)
    bytes_accessed = int(B * S * H * (4 + 2 + 2 + 4) + 2 * 6 * H * H + 4 * 8 * H)

    kernel = functools.partial(_mha_ffn_kernel, num_heads=num_heads,
                               alpha=alpha, eps=eps, approx_recip=approx_recip)

    return pl.pallas_call(
        kernel,
        out_shape=jax.ShapeDtypeStruct((B, S, H), jnp.float32),
        grid_spec=pltpu.PrefetchScalarGridSpec(
            num_scalar_prefetch=0,
            grid=(B, nq),
            in_specs=[q_spec, kv_spec, kv_spec,                 # q (f32), k, v (bf16)
                      mat_spec, mat_spec, mat_spec, mat_spec,   # Wq, Wk, Wv, Wo (bf16)
                      vec_spec, vec_spec, vec_spec, vec_spec,   # bq, bk, bv, bo
                      vec_spec, vec_spec,                       # LN1 gamma, beta
                      mat_spec, mat_spec,                       # FFN W1, W2 (bf16)
                      vec_spec, vec_spec],                      # LN2 gamma, beta
            out_specs=out_spec,
            scratch_shapes=[pltpu.VMEM((S, H), bf16),           # projected K (persistent)
                            pltpu.VMEM((S, H), bf16)],          # projected V (persistent)
        ),
        compiler_params=pltpu.CompilerParams(
            dimension_semantics=("parallel", "arbitrary"),
            vmem_limit_bytes=vmem_limit,
        ),
        cost_estimate=pl.CostEstimate(
            flops=flops,
            transcendentals=transcendentals,
            bytes_accessed=bytes_accessed,
        ),
    )(q, k_bf, v_bf,
      wq, wk, wv, wo,
      params["bq"], params["bk"], params["bv"], params["bo"],
      params["g1"], params["be1"],
      w1, w2,
      params["g2"], params["be2"])


# --------------------------------------------------------------------------
# Pure-JAX f32 reference (PyTorch forward semantics)
# --------------------------------------------------------------------------
def _reference(q, k, v, params, *, num_heads=8, alpha=1.0, eps=1e-5):
    B, S, H = q.shape
    hd = H // num_heads
    qp = q @ params["wq"] + params["bq"]
    kp = k @ params["wk"] + params["bk"]
    vp = v @ params["wv"] + params["bv"]

    def split(x):
        return x.reshape(B, S, num_heads, hd).transpose(0, 2, 1, 3)

    qh, kh, vh = split(qp), split(kp), split(vp)
    s = jnp.einsum("bnqd,bnkd->bnqk", qh, kh) / math.sqrt(hd)
    p = jax.nn.softmax(s, axis=-1)
    ctx = jnp.einsum("bnqk,bnkd->bnqd", p, vh).transpose(0, 2, 1, 3).reshape(B, S, H)
    attn_out = ctx @ params["wo"] + params["bo"]

    def ln(x, g, b):
        mu = jnp.mean(x, axis=-1, keepdims=True)
        var = jnp.mean((x - mu) ** 2, axis=-1, keepdims=True)
        return (x - mu) * jax.lax.rsqrt(var + eps) * g + b

    y = ln(attn_out + alpha * q, params["g1"], params["be1"])
    h1 = jnp.maximum(y @ params["w1"], 0.0)
    z = h1 @ params["w2"] + alpha * y
    return ln(z, params["g2"], params["be2"])


if __name__ == "__main__":
    # Module defaults: hidden_dim=64, num_heads=8 (head_dim=8); small B/S.
    B, S, H, NH = 2, 8, 64, 8
    key = jax.random.PRNGKey(0)
    ks = jax.random.split(key, 16)

    params = {
        "wq": jax.random.normal(ks[0], (H, H), jnp.float32) * 0.1,
        "wk": jax.random.normal(ks[1], (H, H), jnp.float32) * 0.1,
        "wv": jax.random.normal(ks[2], (H, H), jnp.float32) * 0.1,
        "wo": jax.random.normal(ks[3], (H, H), jnp.float32) * 0.1,
        "bq": jax.random.normal(ks[4], (1, H), jnp.float32) * 0.1,
        "bk": jax.random.normal(ks[5], (1, H), jnp.float32) * 0.1,
        "bv": jax.random.normal(ks[6], (1, H), jnp.float32) * 0.1,
        "bo": jax.random.normal(ks[7], (1, H), jnp.float32) * 0.1,
        "g1": jnp.ones((1, H), jnp.float32),
        "be1": jnp.zeros((1, H), jnp.float32),
        "w1": jax.random.normal(ks[8], (H, H), jnp.float32) * 0.1,
        "w2": jax.random.normal(ks[9], (H, H), jnp.float32) * 0.1,
        "g2": jnp.ones((1, H), jnp.float32),
        "be2": jnp.zeros((1, H), jnp.float32),
    }

    q = jax.random.normal(ks[10], (B, S, H), jnp.float32)
    k = jax.random.normal(ks[11], (B, S, H), jnp.float32)
    v = jax.random.normal(ks[12], (B, S, H), jnp.float32)

    out = my_multi_head_attention(q, k, v, params, num_heads=NH, alpha=1.0)
    out = jax.block_until_ready(out)

    ref = _reference(q, k, v, params, num_heads=NH, alpha=1.0)
    assert out.shape == (B, S, H)
    # bf16 MXU operands / bf16 K-V activations vs f32 reference -> loosened tolerance.
    assert jnp.allclose(out, ref, atol=5e-2, rtol=5e-2), "mismatch vs reference"

    print("KERNEL_OK")
</pallas_src>

<mosaic_0001>
module attributes {stable_mosaic.version = 11 : i64} {
  func.func @_mha_ffn_kernel(%arg0: i32, %arg1: i32, %arg2: memref<1x8x64xf32, #tpu.memory_space<vmem>>, %arg3: memref<1x8x64xbf16, #tpu.memory_space<vmem>>, %arg4: memref<1x8x64xbf16, #tpu.memory_space<vmem>>, %arg5: memref<64x64xbf16, #tpu.memory_space<vmem>>, %arg6: memref<64x64xbf16, #tpu.memory_space<vmem>>, %arg7: memref<64x64xbf16, #tpu.memory_space<vmem>>, %arg8: memref<64x64xbf16, #tpu.memory_space<vmem>>, %arg9: memref<1x64xf32, #tpu.memory_space<vmem>>, %arg10: memref<1x64xf32, #tpu.memory_space<vmem>>, %arg11: memref<1x64xf32, #tpu.memory_space<vmem>>, %arg12: memref<1x64xf32, #tpu.memory_space<vmem>>, %arg13: memref<1x64xf32, #tpu.memory_space<vmem>>, %arg14: memref<1x64xf32, #tpu.memory_space<vmem>>, %arg15: memref<64x64xbf16, #tpu.memory_space<vmem>>, %arg16: memref<64x64xbf16, #tpu.memory_space<vmem>>, %arg17: memref<1x64xf32, #tpu.memory_space<vmem>>, %arg18: memref<1x64xf32, #tpu.memory_space<vmem>>, %arg19: memref<1x8x64xf32, #tpu.memory_space<vmem>>, %arg20: memref<8x64xbf16, #tpu.memory_space<vmem>>, %arg21: memref<8x64xbf16, #tpu.memory_space<vmem>>) attributes {dimension_semantics = [#tpu.dimension_semantics<parallel>, #tpu.dimension_semantics<arbitrary>], iteration_bounds = array<i64: 2, 1>, scalar_prefetch = 0 : i64, scratch_operands = 2 : i64, tpu.core_type = #tpu.core_type<tc>, window_params = [{transform_indices = @transform_0, window_bounds = array<i64: 1, 8, 64>}, {transform_indices = @transform_1, window_bounds = array<i64: 1, 8, 64>}, {transform_indices = @transform_2, window_bounds = array<i64: 1, 8, 64>}, {pipeline_mode = #tpu.pipeline_mode<synchronous>, transform_indices = @transform_3, window_bounds = array<i64: 64, 64>}, {pipeline_mode = #tpu.pipeline_mode<synchronous>, transform_indices = @transform_4, window_bounds = array<i64: 64, 64>}, {pipeline_mode = #tpu.pipeline_mode<synchronous>, transform_indices = @transform_5, window_bounds = array<i64: 64, 64>}, {pipeline_mode = #tpu.pipeline_mode<synchronous>, transform_indices = @transform_6, window_bounds = array<i64: 64, 64>}, {pipeline_mode = #tpu.pipeline_mode<synchronous>, transform_indices = @transform_7, window_bounds = array<i64: 1, 64>}, {pipeline_mode = #tpu.pipeline_mode<synchronous>, transform_indices = @transform_8, window_bounds = array<i64: 1, 64>}, {pipeline_mode = #tpu.pipeline_mode<synchronous>, transform_indices = @transform_9, window_bounds = array<i64: 1, 64>}, {pipeline_mode = #tpu.pipeline_mode<synchronous>, transform_indices = @transform_10, window_bounds = array<i64: 1, 64>}, {pipeline_mode = #tpu.pipeline_mode<synchronous>, transform_indices = @transform_11, window_bounds = array<i64: 1, 64>}, {pipeline_mode = #tpu.pipeline_mode<synchronous>, transform_indices = @transform_12, window_bounds = array<i64: 1, 64>}, {pipeline_mode = #tpu.pipeline_mode<synchronous>, transform_indices = @transform_13, window_bounds = array<i64: 64, 64>}, {pipeline_mode = #tpu.pipeline_mode<synchronous>, transform_indices = @transform_14, window_bounds = array<i64: 64, 64>}, {pipeline_mode = #tpu.pipeline_mode<synchronous>, transform_indices = @transform_15, window_bounds = array<i64: 1, 64>}, {pipeline_mode = #tpu.pipeline_mode<synchronous>, transform_indices = @transform_16, window_bounds = array<i64: 1, 64>}, {transform_indices = @transform_17, window_bounds = array<i64: 1, 8, 64>}]} {
    %c0_i32 = arith.constant 0 : i32
    %0 = arith.cmpi eq, %arg1, %c0_i32 : i32
    %1 = arith.extui %0 : i1 to i32
    %c0_i32_0 = arith.constant 0 : i32
    %2 = arith.cmpi ne, %1, %c0_i32_0 : i32
    scf.if %2 {
      %c0_100 = arith.constant 0 : index
      %c0_101 = arith.constant 0 : index
      %c0_102 = arith.constant 0 : index
      %258 = vector.load %arg3[%c0_100, %c0_101, %c0_102] : memref<1x8x64xbf16, #tpu.memory_space<vmem>>, vector<1x8x64xbf16>
      %259 = vector.shape_cast %258 : vector<1x8x64xbf16> to vector<8x64xbf16>
      %c0_103 = arith.constant 0 : index
      %c0_104 = arith.constant 0 : index
      %c0_105 = arith.constant 0 : index
      %260 = vector.load %arg4[%c0_103, %c0_104, %c0_105] : memref<1x8x64xbf16, #tpu.memory_space<vmem>>, vector<1x8x64xbf16>
      %261 = vector.shape_cast %260 : vector<1x8x64xbf16> to vector<8x64xbf16>
      %c0_106 = arith.constant 0 : index
      %c0_107 = arith.constant 0 : index
      %262 = vector.load %arg6[%c0_106, %c0_107] : memref<64x64xbf16, #tpu.memory_space<vmem>>, vector<64x64xbf16>
      %cst_108 = arith.constant dense<0.000000e+00> : vector<8x64xf32>
      %263 = tpu.matmul %259, %262, %cst_108 {dimension_numbers = #tpu.dot_dimension_numbers<[1], [0], [0], [1], [0, 0, 1, 1], [], []>} : vector<8x64xbf16>, vector<64x64xbf16>, vector<8x64xf32> -> vector<8x64xf32>
      %c0_109 = arith.constant 0 : index
      %c0_110 = arith.constant 0 : index
      %264 = vector.load %arg10[%c0_109, %c0_110] : memref<1x64xf32, #tpu.memory_space<vmem>>, vector<1x64xf32>
      %265 = vector.broadcast %264 : vector<1x64xf32> to vector<8x64xf32>
      %266 = arith.addf %263, %265 : vector<8x64xf32>
      %c0_111 = arith.constant 0 : index
      %c0_112 = arith.constant 0 : index
      %267 = vector.load %arg7[%c0_111, %c0_112] : memref<64x64xbf16, #tpu.memory_space<vmem>>, vector<64x64xbf16>
      %cst_113 = arith.constant dense<0.000000e+00> : vector<8x64xf32>
      %268 = tpu.matmul %261, %267, %cst_113 {dimension_numbers = #tpu.dot_dimension_numbers<[1], [0], [0], [1], [0, 0, 1, 1], [], []>} : vector<8x64xbf16>, vector<64x64xbf16>, vector<8x64xf32> -> vector<8x64xf32>
      %c0_114 = arith.constant 0 : index
      %c0_115 = arith.constant 0 : index
      %269 = vector.load %arg11[%c0_114, %c0_115] : memref<1x64xf32, #tpu.memory_space<vmem>>, vector<1x64xf32>
      %270 = vector.broadcast %269 : vector<1x64xf32> to vector<8x64xf32>
      %271 = arith.addf %268, %270 : vector<8x64xf32>
      %272 = arith.truncf %266 : vector<8x64xf32> to vector<8x64xbf16>
      %c0_116 = arith.constant 0 : index
      %c0_117 = arith.constant 0 : index
      %273 = vector.load %arg20[%c0_116, %c0_117] : memref<8x64xbf16, #tpu.memory_space<vmem>>, vector<8x64xbf16>
      tpu.vector_store %arg20[%c0_116, %c0_117], %272 {strides = array<i32>} : memref<8x64xbf16, #tpu.memory_space<vmem>>, vector<8x64xbf16>,
      %274 = arith.truncf %271 : vector<8x64xf32> to vector<8x64xbf16>
      %c0_118 = arith.constant 0 : index
      %c0_119 = arith.constant 0 : index
      %275 = vector.load %arg21[%c0_118, %c0_119] : memref<8x64xbf16, #tpu.memory_space<vmem>>, vector<8x64xbf16>
      tpu.vector_store %arg21[%c0_118, %c0_119], %274 {strides = array<i32>} : memref<8x64xbf16, #tpu.memory_space<vmem>>, vector<8x64xbf16>,
    } else {
    }
    %c0 = arith.constant 0 : index
    %c0_1 = arith.constant 0 : index
    %c0_2 = arith.constant 0 : index
    %3 = vector.load %arg2[%c0, %c0_1, %c0_2] : memref<1x8x64xf32, #tpu.memory_space<vmem>>, vector<1x8x64xf32>
    %4 = vector.shape_cast %3 : vector<1x8x64xf32> to vector<8x64xf32>
    %5 = arith.truncf %4 : vector<8x64xf32> to vector<8x64xbf16>
    %c0_3 = arith.constant 0 : index
    %c0_4 = arith.constant 0 : index
    %6 = vector.load %arg5[%c0_3, %c0_4] : memref<64x64xbf16, #tpu.memory_space<vmem>>, vector<64x64xbf16>
    %cst = arith.constant dense<0.000000e+00> : vector<8x64xf32>
    %7 = tpu.matmul %5, %6, %cst {dimension_numbers = #tpu.dot_dimension_numbers<[1], [0], [0], [1], [0, 0, 1, 1], [], []>} : vector<8x64xbf16>, vector<64x64xbf16>, vector<8x64xf32> -> vector<8x64xf32>
    %c0_5 = arith.constant 0 : index
    %c0_6 = arith.constant 0 : index
    %8 = vector.load %arg9[%c0_5, %c0_6] : memref<1x64xf32, #tpu.memory_space<vmem>>, vector<1x64xf32>
    %9 = vector.broadcast %8 : vector<1x64xf32> to vector<8x64xf32>
    %10 = arith.addf %7, %9 : vector<8x64xf32>
    %11 = arith.truncf %10 : vector<8x64xf32> to vector<8x64xbf16>
    %c0_7 = arith.constant 0 : index
    %c0_8 = arith.constant 0 : index
    %12 = vector.load %arg20[%c0_7, %c0_8] : memref<8x64xbf16, #tpu.memory_space<vmem>>, vector<8x64xbf16>
    %c0_9 = arith.constant 0 : index
    %c0_10 = arith.constant 0 : index
    %13 = vector.load %arg21[%c0_9, %c0_10] : memref<8x64xbf16, #tpu.memory_space<vmem>>, vector<8x64xbf16>
    %c0_11 = arith.constant 0 : index
    %c0_12 = arith.constant 0 : index
    %14 = vector.load %arg12[%c0_11, %c0_12] : memref<1x64xf32, #tpu.memory_space<vmem>>, vector<1x64xf32>
    %15 = vector.shape_cast %14 : vector<1x64xf32> to vector<1x64xf32>
    %16 = vector.broadcast %15 : vector<1x64xf32> to vector<8x64xf32>
    %17 = vector.extract_strided_slice %11 {offsets = [0, 0], sizes = [8, 8], strides = [1, 1]} : vector<8x64xbf16> to vector<8x8xbf16>
    %18 = vector.extract_strided_slice %12 {offsets = [0, 0], sizes = [8, 8], strides = [1, 1]} : vector<8x64xbf16> to vector<8x8xbf16>
    %19 = vector.extract_strided_slice %13 {offsets = [0, 0], sizes = [8, 8], strides = [1, 1]} : vector<8x64xbf16> to vector<8x8xbf16>
    %cst_13 = arith.constant dense<0.000000e+00> : vector<8x8xf32>
    %20 = tpu.matmul %17, %18, %cst_13 {dimension_numbers = #tpu.dot_dimension_numbers<[1], [1], [0], [0], [0, 0, 1, 0], [], []>} : vector<8x8xbf16>, vector<8x8xbf16>, vector<8x8xf32> -> vector<8x8xf32>
    %cst_14 = arith.constant 0.353553385 : f32
    %21 = vector.broadcast %cst_14 : f32 to vector<8x8xf32>
    %22 = arith.mulf %20, %21 : vector<8x8xf32>
    %cst_15 = arith.constant dense<0xFF800000> : vector<8xf32>
    %23 = vector.multi_reduction <maximumf>, %22, %cst_15 [1] : vector<8x8xf32> to vector<8xf32>
    %24 = vector.shape_cast %23 : vector<8xf32> to vector<8x1xf32>
    %25 = vector.broadcast %24 : vector<8x1xf32> to vector<8x8xf32>
    %26 = arith.subf %22, %25 : vector<8x8xf32>
    %27 = math.exp %26 : vector<8x8xf32>
    %cst_16 = arith.constant dense<0.000000e+00> : vector<8xf32>
    %28 = vector.multi_reduction <add>, %27, %cst_16 [1] : vector<8x8xf32> to vector<8xf32>
    %29 = vector.shape_cast %28 : vector<8xf32> to vector<8x1xf32>
    %30 = arith.truncf %27 : vector<8x8xf32> to vector<8x8xbf16>
    %cst_17 = arith.constant dense<0.000000e+00> : vector<8x8xf32>
    %31 = tpu.matmul %30, %19, %cst_17 {dimension_numbers = #tpu.dot_dimension_numbers<[1], [0], [0], [1], [0, 0, 1, 1], [], []>} : vector<8x8xbf16>, vector<8x8xbf16>, vector<8x8xf32> -> vector<8x8xf32>
    %32 = tpu.reciprocal %29 {approx = true} : vector<8x1xf32> -> vector<8x1xf32>
    %33 = vector.broadcast %32 : vector<8x1xf32> to vector<8x8xf32>
    %34 = arith.mulf %31, %33 : vector<8x8xf32>
    %35 = arith.truncf %34 : vector<8x8xf32> to vector<8x8xbf16>
    %c0_18 = arith.constant 0 : index
    %c0_19 = arith.constant 0 : index
    %36 = vector.load %arg8[%c0_18, %c0_19] : memref<64x64xbf16, #tpu.memory_space<vmem>>, vector<8x64xbf16>
    %cst_20 = arith.constant dense<0.000000e+00> : vector<8x64xf32>
    %37 = tpu.matmul %35, %36, %cst_20 {dimension_numbers = #tpu.dot_dimension_numbers<[1], [0], [0], [1], [0, 0, 1, 1], [], []>} : vector<8x8xbf16>, vector<8x64xbf16>, vector<8x64xf32> -> vector<8x64xf32>
    %38 = arith.addf %16, %37 : vector<8x64xf32>
    %39 = vector.extract_strided_slice %11 {offsets = [0, 8], sizes = [8, 8], strides = [1, 1]} : vector<8x64xbf16> to vector<8x8xbf16>
    %40 = vector.extract_strided_slice %12 {offsets = [0, 8], sizes = [8, 8], strides = [1, 1]} : vector<8x64xbf16> to vector<8x8xbf16>
    %41 = vector.extract_strided_slice %13 {offsets = [0, 8], sizes = [8, 8], strides = [1, 1]} : vector<8x64xbf16> to vector<8x8xbf16>
    %cst_21 = arith.constant dense<0.000000e+00> : vector<8x8xf32>
    %42 = tpu.matmul %39, %40, %cst_21 {dimension_numbers = #tpu.dot_dimension_numbers<[1], [1], [0], [0], [0, 0, 1, 0], [], []>} : vector<8x8xbf16>, vector<8x8xbf16>, vector<8x8xf32> -> vector<8x8xf32>
    %cst_22 = arith.constant 0.353553385 : f32
    %43 = vector.broadcast %cst_22 : f32 to vector<8x8xf32>
    %44 = arith.mulf %42, %43 : vector<8x8xf32>
    %cst_23 = arith.constant dense<0xFF800000> : vector<8xf32>
    %45 = vector.multi_reduction <maximumf>, %44, %cst_23 [1] : vector<8x8xf32> to vector<8xf32>
    %46 = vector.shape_cast %45 : vector<8xf32> to vector<8x1xf32>
    %47 = vector.broadcast %46 : vector<8x1xf32> to vector<8x8xf32>
    %48 = arith.subf %44, %47 : vector<8x8xf32>
    %49 = math.exp %48 : vector<8x8xf32>
    %cst_24 = arith.constant dense<0.000000e+00> : vector<8xf32>
    %50 = vector.multi_reduction <add>, %49, %cst_24 [1] : vector<8x8xf32> to vector<8xf32>
    %51 = vector.shape_cast %50 : vector<8xf32> to vector<8x1xf32>
    %52 = arith.truncf %49 : vector<8x8xf32> to vector<8x8xbf16>
    %cst_25 = arith.constant dense<0.000000e+00> : vector<8x8xf32>
    %53 = tpu.matmul %52, %41, %cst_25 {dimension_numbers = #tpu.dot_dimension_numbers<[1], [0], [0], [1], [0, 0, 1, 1], [], []>} : vector<8x8xbf16>, vector<8x8xbf16>, vector<8x8xf32> -> vector<8x8xf32>
    %54 = tpu.reciprocal %51 {approx = true} : vector<8x1xf32> -> vector<8x1xf32>
    %55 = vector.broadcast %54 : vector<8x1xf32> to vector<8x8xf32>
    %56 = arith.mulf %53, %55 : vector<8x8xf32>
    %57 = arith.truncf %56 : vector<8x8xf32> to vector<8x8xbf16>
    %c8 = arith.constant 8 : index
    %c0_26 = arith.constant 0 : index
    %58 = vector.load %arg8[%c8, %c0_26] : memref<64x64xbf16, #tpu.memory_space<vmem>>, vector<8x64xbf16>
    %cst_27 = arith.constant dense<0.000000e+00> : vector<8x64xf32>
    %59 = tpu.matmul %57, %58, %cst_27 {dimension_numbers = #tpu.dot_dimension_numbers<[1], [0], [0], [1], [0, 0, 1, 1], [], []>} : vector<8x8xbf16>, vector<8x64xbf16>, vector<8x64xf32> -> vector<8x64xf32>
    %60 = arith.addf %38, %59 : vector<8x64xf32>
    %61 = vector.extract_strided_slice %11 {offsets = [0, 16], sizes = [8, 8], strides = [1, 1]} : vector<8x64xbf16> to vector<8x8xbf16>
    %62 = vector.extract_strided_slice %12 {offsets = [0, 16], sizes = [8, 8], strides = [1, 1]} : vector<8x64xbf16> to vector<8x8xbf16>
    %63 = vector.extract_strided_slice %13 {offsets = [0, 16], sizes = [8, 8], strides = [1, 1]} : vector<8x64xbf16> to vector<8x8xbf16>
    %cst_28 = arith.constant dense<0.000000e+00> : vector<8x8xf32>
    %64 = tpu.matmul %61, %62, %cst_28 {dimension_numbers = #tpu.dot_dimension_numbers<[1], [1], [0], [0], [0, 0, 1, 0], [], []>} : vector<8x8xbf16>, vector<8x8xbf16>, vector<8x8xf32> -> vector<8x8xf32>
    %cst_29 = arith.constant 0.353553385 : f32
    %65 = vector.broadcast %cst_29 : f32 to vector<8x8xf32>
    %66 = arith.mulf %64, %65 : vector<8x8xf32>
    %cst_30 = arith.constant dense<0xFF800000> : vector<8xf32>
    %67 = vector.multi_reduction <maximumf>, %66, %cst_30 [1] : vector<8x8xf32> to vector<8xf32>
    %68 = vector.shape_cast %67 : vector<8xf32> to vector<8x1xf32>
    %69 = vector.broadcast %68 : vector<8x1xf32> to vector<8x8xf32>
    %70 = arith.subf %66, %69 : vector<8x8xf32>
    %71 = math.exp %70 : vector<8x8xf32>
    %cst_31 = arith.constant dense<0.000000e+00> : vector<8xf32>
    %72 = vector.multi_reduction <add>, %71, %cst_31 [1] : vector<8x8xf32> to vector<8xf32>
    %73 = vector.shape_cast %72 : vector<8xf32> to vector<8x1xf32>
    %74 = arith.truncf %71 : vector<8x8xf32> to vector<8x8xbf16>
    %cst_32 = arith.constant dense<0.000000e+00> : vector<8x8xf32>
    %75 = tpu.matmul %74, %63, %cst_32 {dimension_numbers = #tpu.dot_dimension_numbers<[1], [0], [0], [1], [0, 0, 1, 1], [], []>} : vector<8x8xbf16>, vector<8x8xbf16>, vector<8x8xf32> -> vector<8x8xf32>
    %76 = tpu.reciprocal %73 {approx = true} : vector<8x1xf32> -> vector<8x1xf32>
    %77 = vector.broadcast %76 : vector<8x1xf32> to vector<8x8xf32>
    %78 = arith.mulf %75, %77 : vector<8x8xf32>
    %79 = arith.truncf %78 : vector<8x8xf32> to vector<8x8xbf16>
    %c16 = arith.constant 16 : index
    %c0_33 = arith.constant 0 : index
    %80 = vector.load %arg8[%c16, %c0_33] : memref<64x64xbf16, #tpu.memory_space<vmem>>, vector<8x64xbf16>
    %cst_34 = arith.constant dense<0.000000e+00> : vector<8x64xf32>
    %81 = tpu.matmul %79, %80, %cst_34 {dimension_numbers = #tpu.dot_dimension_numbers<[1], [0], [0], [1], [0, 0, 1, 1], [], []>} : vector<8x8xbf16>, vector<8x64xbf16>, vector<8x64xf32> -> vector<8x64xf32>
    %82 = arith.addf %60, %81 : vector<8x64xf32>
    %83 = vector.extract_strided_slice %11 {offsets = [0, 24], sizes = [8, 8], strides = [1, 1]} : vector<8x64xbf16> to vector<8x8xbf16>
    %84 = vector.extract_strided_slice %12 {offsets = [0, 24], sizes = [8, 8], strides = [1, 1]} : vector<8x64xbf16> to vector<8x8xbf16>
    %85 = vector.extract_strided_slice %13 {offsets = [0, 24], sizes = [8, 8], strides = [1, 1]} : vector<8x64xbf16> to vector<8x8xbf16>
    %cst_35 = arith.constant dense<0.000000e+00> : vector<8x8xf32>
    %86 = tpu.matmul %83, %84, %cst_35 {dimension_numbers = #tpu.dot_dimension_numbers<[1], [1], [0], [0], [0, 0, 1, 0], [], []>} : vector<8x8xbf16>, vector<8x8xbf16>, vector<8x8xf32> -> vector<8x8xf32>
    %cst_36 = arith.constant 0.353553385 : f32
    %87 = vector.broadcast %cst_36 : f32 to vector<8x8xf32>
    %88 = arith.mulf %86, %87 : vector<8x8xf32>
    %cst_37 = arith.constant dense<0xFF800000> : vector<8xf32>
    %89 = vector.multi_reduction <maximumf>, %88, %cst_37 [1] : vector<8x8xf32> to vector<8xf32>
    %90 = vector.shape_cast %89 : vector<8xf32> to vector<8x1xf32>
    %91 = vector.broadcast %90 : vector<8x1xf32> to vector<8x8xf32>
    %92 = arith.subf %88, %91 : vector<8x8xf32>
    %93 = math.exp %92 : vector<8x8xf32>
    %cst_38 = arith.constant dense<0.000000e+00> : vector<8xf32>
    %94 = vector.multi_reduction <add>, %93, %cst_38 [1] : vector<8x8xf32> to vector<8xf32>
    %95 = vector.shape_cast %94 : vector<8xf32> to vector<8x1xf32>
    %96 = arith.truncf %93 : vector<8x8xf32> to vector<8x8xbf16>
    %cst_39 = arith.constant dense<0.000000e+00> : vector<8x8xf32>
    %97 = tpu.matmul %96, %85, %cst_39 {dimension_numbers = #tpu.dot_dimension_numbers<[1], [0], [0], [1], [0, 0, 1, 1], [], []>} : vector<8x8xbf16>, vector<8x8xbf16>, vector<8x8xf32> -> vector<8x8xf32>
    %98 = tpu.reciprocal %95 {approx = true} : vector<8x1xf32> -> vector<8x1xf32>
    %99 = vector.broadcast %98 : vector<8x1xf32> to vector<8x8xf32>
    %100 = arith.mulf %97, %99 : vector<8x8xf32>
    %101 = arith.truncf %100 : vector<8x8xf32> to vector<8x8xbf16>
    %c24 = arith.constant 24 : index
    %c0_40 = arith.constant 0 : index
    %102 = vector.load %arg8[%c24, %c0_40] : memref<64x64xbf16, #tpu.memory_space<vmem>>, vector<8x64xbf16>
    %cst_41 = arith.constant dense<0.000000e+00> : vector<8x64xf32>
    %103 = tpu.matmul %101, %102, %cst_41 {dimension_numbers = #tpu.dot_dimension_numbers<[1], [0], [0], [1], [0, 0, 1, 1], [], []>} : vector<8x8xbf16>, vector<8x64xbf16>, vector<8x64xf32> -> vector<8x64xf32>
    %104 = arith.addf %82, %103 : vector<8x64xf32>
    %105 = vector.extract_strided_slice %11 {offsets = [0, 32], sizes = [8, 8], strides = [1, 1]} : vector<8x64xbf16> to vector<8x8xbf16>
    %106 = vector.extract_strided_slice %12 {offsets = [0, 32], sizes = [8, 8], strides = [1, 1]} : vector<8x64xbf16> to vector<8x8xbf16>
    %107 = vector.extract_strided_slice %13 {offsets = [0, 32], sizes = [8, 8], strides = [1, 1]} : vector<8x64xbf16> to vector<8x8xbf16>
    %cst_42 = arith.constant dense<0.000000e+00> : vector<8x8xf32>
    %108 = tpu.matmul %105, %106, %cst_42 {dimension_numbers = #tpu.dot_dimension_numbers<[1], [1], [0], [0], [0, 0, 1, 0], [], []>} : vector<8x8xbf16>, vector<8x8xbf16>, vector<8x8xf32> -> vector<8x8xf32>
    %cst_43 = arith.constant 0.353553385 : f32
    %109 = vector.broadcast %cst_43 : f32 to vector<8x8xf32>
    %110 = arith.mulf %108, %109 : vector<8x8xf32>
    %cst_44 = arith.constant dense<0xFF800000> : vector<8xf32>
    %111 = vector.multi_reduction <maximumf>, %110, %cst_44 [1] : vector<8x8xf32> to vector<8xf32>
    %112 = vector.shape_cast %111 : vector<8xf32> to vector<8x1xf32>
    %113 = vector.broadcast %112 : vector<8x1xf32> to vector<8x8xf32>
    %114 = arith.subf %110, %113 : vector<8x8xf32>
    %115 = math.exp %114 : vector<8x8xf32>
    %cst_45 = arith.constant dense<0.000000e+00> : vector<8xf32>
    %116 = vector.multi_reduction <add>, %115, %cst_45 [1] : vector<8x8xf32> to vector<8xf32>
    %117 = vector.shape_cast %116 : vector<8xf32> to vector<8x1xf32>
    %118 = arith.truncf %115 : vector<8x8xf32> to vector<8x8xbf16>
    %cst_46 = arith.constant dense<0.000000e+00> : vector<8x8xf32>
    %119 = tpu.matmul %118, %107, %cst_46 {dimension_numbers = #tpu.dot_dimension_numbers<[1], [0], [0], [1], [0, 0, 1, 1], [], []>} : vector<8x8xbf16>, vector<8x8xbf16>, vector<8x8xf32> -> vector<8x8xf32>
    %120 = tpu.reciprocal %117 {approx = true} : vector<8x1xf32> -> vector<8x1xf32>
    %121 = vector.broadcast %120 : vector<8x1xf32> to vector<8x8xf32>
    %122 = arith.mulf %119, %121 : vector<8x8xf32>
    %123 = arith.truncf %122 : vector<8x8xf32> to vector<8x8xbf16>
    %c32 = arith.constant 32 : index
    %c0_47 = arith.constant 0 : index
    %124 = vector.load %arg8[%c32, %c0_47] : memref<64x64xbf16, #tpu.memory_space<vmem>>, vector<8x64xbf16>
    %cst_48 = arith.constant dense<0.000000e+00> : vector<8x64xf32>
    %125 = tpu.matmul %123, %124, %cst_48 {dimension_numbers = #tpu.dot_dimension_numbers<[1], [0], [0], [1], [0, 0, 1, 1], [], []>} : vector<8x8xbf16>, vector<8x64xbf16>, vector<8x64xf32> -> vector<8x64xf32>
    %126 = arith.addf %104, %125 : vector<8x64xf32>
    %127 = vector.extract_strided_slice %11 {offsets = [0, 40], sizes = [8, 8], strides = [1, 1]} : vector<8x64xbf16> to vector<8x8xbf16>
    %128 = vector.extract_strided_slice %12 {offsets = [0, 40], sizes = [8, 8], strides = [1, 1]} : vector<8x64xbf16> to vector<8x8xbf16>
    %129 = vector.extract_strided_slice %13 {offsets = [0, 40], sizes = [8, 8], strides = [1, 1]} : vector<8x64xbf16> to vector<8x8xbf16>
    %cst_49 = arith.constant dense<0.000000e+00> : vector<8x8xf32>
    %130 = tpu.matmul %127, %128, %cst_49 {dimension_numbers = #tpu.dot_dimension_numbers<[1], [1], [0], [0], [0, 0, 1, 0], [], []>} : vector<8x8xbf16>, vector<8x8xbf16>, vector<8x8xf32> -> vector<8x8xf32>
    %cst_50 = arith.constant 0.353553385 : f32
    %131 = vector.broadcast %cst_50 : f32 to vector<8x8xf32>
    %132 = arith.mulf %130, %131 : vector<8x8xf32>
    %cst_51 = arith.constant dense<0xFF800000> : vector<8xf32>
    %133 = vector.multi_reduction <maximumf>, %132, %cst_51 [1] : vector<8x8xf32> to vector<8xf32>
    %134 = vector.shape_cast %133 : vector<8xf32> to vector<8x1xf32>
    %135 = vector.broadcast %134 : vector<8x1xf32> to vector<8x8xf32>
    %136 = arith.subf %132, %135 : vector<8x8xf32>
    %137 = math.exp %136 : vector<8x8xf32>
    %cst_52 = arith.constant dense<0.000000e+00> : vector<8xf32>
    %138 = vector.multi_reduction <add>, %137, %cst_52 [1] : vector<8x8xf32> to vector<8xf32>
    %139 = vector.shape_cast %138 : vector<8xf32> to vector<8x1xf32>
    %140 = arith.truncf %137 : vector<8x8xf32> to vector<8x8xbf16>
    %cst_53 = arith.constant dense<0.000000e+00> : vector<8x8xf32>
    %141 = tpu.matmul %140, %129, %cst_53 {dimension_numbers = #tpu.dot_dimension_numbers<[1], [0], [0], [1], [0, 0, 1, 1], [], []>} : vector<8x8xbf16>, vector<8x8xbf16>, vector<8x8xf32> -> vector<8x8xf32>
    %142 = tpu.reciprocal %139 {approx = true} : vector<8x1xf32> -> vector<8x1xf32>
    %143 = vector.broadcast %142 : vector<8x1xf32> to vector<8x8xf32>
    %144 = arith.mulf %141, %143 : vector<8x8xf32>
    %145 = arith.truncf %144 : vector<8x8xf32> to vector<8x8xbf16>
    %c40 = arith.constant 40 : index
    %c0_54 = arith.constant 0 : index
    %146 = vector.load %arg8[%c40, %c0_54] : memref<64x64xbf16, #tpu.memory_space<vmem>>, vector<8x64xbf16>
    %cst_55 = arith.constant dense<0.000000e+00> : vector<8x64xf32>
    %147 = tpu.matmul %145, %146, %cst_55 {dimension_numbers = #tpu.dot_dimension_numbers<[1], [0], [0], [1], [0, 0, 1, 1], [], []>} : vector<8x8xbf16>, vector<8x64xbf16>, vector<8x64xf32> -> vector<8x64xf32>
    %148 = arith.addf %126, %147 : vector<8x64xf32>
    %149 = vector.extract_strided_slice %11 {offsets = [0, 48], sizes = [8, 8], strides = [1, 1]} : vector<8x64xbf16> to vector<8x8xbf16>
    %150 = vector.extract_strided_slice %12 {offsets = [0, 48], sizes = [8, 8], strides = [1, 1]} : vector<8x64xbf16> to vector<8x8xbf16>
    %151 = vector.extract_strided_slice %13 {offsets = [0, 48], sizes = [8, 8], strides = [1, 1]} : vector<8x64xbf16> to vector<8x8xbf16>
    %cst_56 = arith.constant dense<0.000000e+00> : vector<8x8xf32>
    %152 = tpu.matmul %149, %150, %cst_56 {dimension_numbers = #tpu.dot_dimension_numbers<[1], [1], [0], [0], [0, 0, 1, 0], [], []>} : vector<8x8xbf16>, vector<8x8xbf16>, vector<8x8xf32> -> vector<8x8xf32>
    %cst_57 = arith.constant 0.353553385 : f32
    %153 = vector.broadcast %cst_57 : f32 to vector<8x8xf32>
    %154 = arith.mulf %152, %153 : vector<8x8xf32>
    %cst_58 = arith.constant dense<0xFF800000> : vector<8xf32>
    %155 = vector.multi_reduction <maximumf>, %154, %cst_58 [1] : vector<8x8xf32> to vector<8xf32>
    %156 = vector.shape_cast %155 : vector<8xf32> to vector<8x1xf32>
    %157 = vector.broadcast %156 : vector<8x1xf32> to vector<8x8xf32>
    %158 = arith.subf %154, %157 : vector<8x8xf32>
    %159 = math.exp %158 : vector<8x8xf32>
    %cst_59 = arith.constant dense<0.000000e+00> : vector<8xf32>
    %160 = vector.multi_reduction <add>, %159, %cst_59 [1] : vector<8x8xf32> to vector<8xf32>
    %161 = vector.shape_cast %160 : vector<8xf32> to vector<8x1xf32>
    %162 = arith.truncf %159 : vector<8x8xf32> to vector<8x8xbf16>
    %cst_60 = arith.constant dense<0.000000e+00> : vector<8x8xf32>
    %163 = tpu.matmul %162, %151, %cst_60 {dimension_numbers = #tpu.dot_dimension_numbers<[1], [0], [0], [1], [0, 0, 1, 1], [], []>} : vector<8x8xbf16>, vector<8x8xbf16>, vector<8x8xf32> -> vector<8x8xf32>
    %164 = tpu.reciprocal %161 {approx = true} : vector<8x1xf32> -> vector<8x1xf32>
    %165 = vector.broadcast %164 : vector<8x1xf32> to vector<8x8xf32>
    %166 = arith.mulf %163, %165 : vector<8x8xf32>
    %167 = arith.truncf %166 : vector<8x8xf32> to vector<8x8xbf16>
    %c48 = arith.constant 48 : index
    %c0_61 = arith.constant 0 : index
    %168 = vector.load %arg8[%c48, %c0_61] : memref<64x64xbf16, #tpu.memory_space<vmem>>, vector<8x64xbf16>
    %cst_62 = arith.constant dense<0.000000e+00> : vector<8x64xf32>
    %169 = tpu.matmul %167, %168, %cst_62 {dimension_numbers = #tpu.dot_dimension_numbers<[1], [0], [0], [1], [0, 0, 1, 1], [], []>} : vector<8x8xbf16>, vector<8x64xbf16>, vector<8x64xf32> -> vector<8x64xf32>
    %170 = arith.addf %148, %169 : vector<8x64xf32>
    %171 = vector.extract_strided_slice %11 {offsets = [0, 56], sizes = [8, 8], strides = [1, 1]} : vector<8x64xbf16> to vector<8x8xbf16>
    %172 = vector.extract_strided_slice %12 {offsets = [0, 56], sizes = [8, 8], strides = [1, 1]} : vector<8x64xbf16> to vector<8x8xbf16>
    %173 = vector.extract_strided_slice %13 {offsets = [0, 56], sizes = [8, 8], strides = [1, 1]} : vector<8x64xbf16> to vector<8x8xbf16>
    %cst_63 = arith.constant dense<0.000000e+00> : vector<8x8xf32>
    %174 = tpu.matmul %171, %172, %cst_63 {dimension_numbers = #tpu.dot_dimension_numbers<[1], [1], [0], [0], [0, 0, 1, 0], [], []>} : vector<8x8xbf16>, vector<8x8xbf16>, vector<8x8xf32> -> vector<8x8xf32>
    %cst_64 = arith.constant 0.353553385 : f32
    %175 = vector.broadcast %cst_64 : f32 to vector<8x8xf32>
    %176 = arith.mulf %174, %175 : vector<8x8xf32>
    %cst_65 = arith.constant dense<0xFF800000> : vector<8xf32>
    %177 = vector.multi_reduction <maximumf>, %176, %cst_65 [1] : vector<8x8xf32> to vector<8xf32>
    %178 = vector.shape_cast %177 : vector<8xf32> to vector<8x1xf32>
    %179 = vector.broadcast %178 : vector<8x1xf32> to vector<8x8xf32>
    %180 = arith.subf %176, %179 : vector<8x8xf32>
    %181 = math.exp %180 : vector<8x8xf32>
    %cst_66 = arith.constant dense<0.000000e+00> : vector<8xf32>
    %182 = vector.multi_reduction <add>, %181, %cst_66 [1] : vector<8x8xf32> to vector<8xf32>
    %183 = vector.shape_cast %182 : vector<8xf32> to vector<8x1xf32>
    %184 = arith.truncf %181 : vector<8x8xf32> to vector<8x8xbf16>
    %cst_67 = arith.constant dense<0.000000e+00> : vector<8x8xf32>
    %185 = tpu.matmul %184, %173, %cst_67 {dimension_numbers = #tpu.dot_dimension_numbers<[1], [0], [0], [1], [0, 0, 1, 1], [], []>} : vector<8x8xbf16>, vector<8x8xbf16>, vector<8x8xf32> -> vector<8x8xf32>
    %186 = tpu.reciprocal %183 {approx = true} : vector<8x1xf32> -> vector<8x1xf32>
    %187 = vector.broadcast %186 : vector<8x1xf32> to vector<8x8xf32>
    %188 = arith.mulf %185, %187 : vector<8x8xf32>
    %189 = arith.truncf %188 : vector<8x8xf32> to vector<8x8xbf16>
    %c56 = arith.constant 56 : index
    %c0_68 = arith.constant 0 : index
    %190 = vector.load %arg8[%c56, %c0_68] : memref<64x64xbf16, #tpu.memory_space<vmem>>, vector<8x64xbf16>
    %cst_69 = arith.constant dense<0.000000e+00> : vector<8x64xf32>
    %191 = tpu.matmul %189, %190, %cst_69 {dimension_numbers = #tpu.dot_dimension_numbers<[1], [0], [0], [1], [0, 0, 1, 1], [], []>} : vector<8x8xbf16>, vector<8x64xbf16>, vector<8x64xf32> -> vector<8x64xf32>
    %192 = arith.addf %170, %191 : vector<8x64xf32>
    %cst_70 = arith.constant 1.000000e+00 : f32
    %193 = vector.broadcast %cst_70 : f32 to vector<8x64xf32>
    %194 = arith.mulf %193, %4 : vector<8x64xf32>
    %195 = arith.addf %192, %194 : vector<8x64xf32>
    %cst_71 = arith.constant dense<0.000000e+00> : vector<8xf32>
    %196 = vector.multi_reduction <add>, %195, %cst_71 [1] : vector<8x64xf32> to vector<8xf32>
    %197 = vector.shape_cast %196 : vector<8xf32> to vector<8x1xf32>
    %cst_72 = arith.constant 6.400000e+01 : f32
    %198 = vector.broadcast %cst_72 : f32 to vector<8x1xf32>
    %199 = arith.divf %197, %198 : vector<8x1xf32>
    %200 = vector.broadcast %199 : vector<8x1xf32> to vector<8x64xf32>
    %201 = arith.subf %195, %200 : vector<8x64xf32>
    %202 = arith.mulf %201, %201 : vector<8x64xf32>
    %cst_73 = arith.constant dense<0.000000e+00> : vector<8xf32>
    %203 = vector.multi_reduction <add>, %202, %cst_73 [1] : vector<8x64xf32> to vector<8xf32>
    %204 = vector.shape_cast %203 : vector<8xf32> to vector<8x1xf32>
    %cst_74 = arith.constant 6.400000e+01 : f32
    %205 = vector.broadcast %cst_74 : f32 to vector<8x1xf32>
    %206 = arith.divf %204, %205 : vector<8x1xf32>
    %207 = vector.broadcast %199 : vector<8x1xf32> to vector<8x64xf32>
    %208 = arith.subf %195, %207 : vector<8x64xf32>
    %cst_75 = arith.constant 9.99999974E-6 : f32
    %209 = vector.broadcast %cst_75 : f32 to vector<8x1xf32>
    %210 = arith.addf %206, %209 : vector<8x1xf32>
    %211 = math.rsqrt %210 : vector<8x1xf32>
    %212 = vector.broadcast %211 : vector<8x1xf32> to vector<8x64xf32>
    %213 = arith.mulf %208, %212 : vector<8x64xf32>
    %c0_76 = arith.constant 0 : index
    %c0_77 = arith.constant 0 : index
    %214 = vector.load %arg13[%c0_76, %c0_77] : memref<1x64xf32, #tpu.memory_space<vmem>>, vector<1x64xf32>
    %215 = vector.broadcast %214 : vector<1x64xf32> to vector<8x64xf32>
    %216 = arith.mulf %213, %215 : vector<8x64xf32>
    %c0_78 = arith.constant 0 : index
    %c0_79 = arith.constant 0 : index
    %217 = vector.load %arg14[%c0_78, %c0_79] : memref<1x64xf32, #tpu.memory_space<vmem>>, vector<1x64xf32>
    %218 = vector.broadcast %217 : vector<1x64xf32> to vector<8x64xf32>
    %219 = arith.addf %216, %218 : vector<8x64xf32>
    %220 = arith.truncf %219 : vector<8x64xf32> to vector<8x64xbf16>
    %c0_80 = arith.constant 0 : index
    %c0_81 = arith.constant 0 : index
    %221 = vector.load %arg15[%c0_80, %c0_81] : memref<64x64xbf16, #tpu.memory_space<vmem>>, vector<64x64xbf16>
    %cst_82 = arith.constant dense<0.000000e+00> : vector<8x64xf32>
    %222 = tpu.matmul %220, %221, %cst_82 {dimension_numbers = #tpu.dot_dimension_numbers<[1], [0], [0], [1], [0, 0, 1, 1], [], []>} : vector<8x64xbf16>, vector<64x64xbf16>, vector<8x64xf32> -> vector<8x64xf32>
    %cst_83 = arith.constant 0.000000e+00 : f32
    %223 = vector.broadcast %cst_83 : f32 to vector<8x64xf32>
    %224 = arith.maximumf %222, %223 : vector<8x64xf32>
    %225 = arith.truncf %224 : vector<8x64xf32> to vector<8x64xbf16>
    %c0_84 = arith.constant 0 : index
    %c0_85 = arith.constant 0 : index
    %226 = vector.load %arg16[%c0_84, %c0_85] : memref<64x64xbf16, #tpu.memory_space<vmem>>, vector<64x64xbf16>
    %cst_86 = arith.constant dense<0.000000e+00> : vector<8x64xf32>
    %227 = tpu.matmul %225, %226, %cst_86 {dimension_numbers = #tpu.dot_dimension_numbers<[1], [0], [0], [1], [0, 0, 1, 1], [], []>} : vector<8x64xbf16>, vector<64x64xbf16>, vector<8x64xf32> -> vector<8x64xf32>
    %cst_87 = arith.constant 1.000000e+00 : f32
    %228 = vector.broadcast %cst_87 : f32 to vector<8x64xf32>
    %229 = arith.mulf %228, %219 : vector<8x64xf32>
    %230 = arith.addf %227, %229 : vector<8x64xf32>
    %cst_88 = arith.constant dense<0.000000e+00> : vector<8xf32>
    %231 = vector.multi_reduction <add>, %230, %cst_88 [1] : vector<8x64xf32> to vector<8xf32>
    %232 = vector.shape_cast %231 : vector<8xf32> to vector<8x1xf32>
    %cst_89 = arith.constant 6.400000e+01 : f32
    %233 = vector.broadcast %cst_89 : f32 to vector<8x1xf32>
    %234 = arith.divf %232, %233 : vector<8x1xf32>
    %235 = vector.broadcast %234 : vector<8x1xf32> to vector<8x64xf32>
    %236 = arith.subf %230, %235 : vector<8x64xf32>
    %237 = arith.mulf %236, %236 : vector<8x64xf32>
    %cst_90 = arith.constant dense<0.000000e+00> : vector<8xf32>
    %238 = vector.multi_reduction <add>, %237, %cst_90 [1] : vector<8x64xf32> to vector<8xf32>
    %239 = vector.shape_cast %238 : vector<8xf32> to vector<8x1xf32>
    %cst_91 = arith.constant 6.400000e+01 : f32
    %240 = vector.broadcast %cst_91 : f32 to vector<8x1xf32>
    %241 = arith.divf %239, %240 : vector<8x1xf32>
    %242 = vector.broadcast %234 : vector<8x1xf32> to vector<8x64xf32>
    %243 = arith.subf %230, %242 : vector<8x64xf32>
    %cst_92 = arith.constant 9.99999974E-6 : f32
    %244 = vector.broadcast %cst_92 : f32 to vector<8x1xf32>
    %245 = arith.addf %241, %244 : vector<8x1xf32>
    %246 = math.rsqrt %245 : vector<8x1xf32>
    %247 = vector.broadcast %246 : vector<8x1xf32> to vector<8x64xf32>
    %248 = arith.mulf %243, %247 : vector<8x64xf32>
    %c0_93 = arith.constant 0 : index
    %c0_94 = arith.constant 0 : index
    %249 = vector.load %arg17[%c0_93, %c0_94] : memref<1x64xf32, #tpu.memory_space<vmem>>, vector<1x64xf32>
    %250 = vector.broadcast %249 : vector<1x64xf32> to vector<8x64xf32>
    %251 = arith.mulf %248, %250 : vector<8x64xf32>
    %c0_95 = arith.constant 0 : index
    %c0_96 = arith.constant 0 : index
    %252 = vector.load %arg18[%c0_95, %c0_96] : memref<1x64xf32, #tpu.memory_space<vmem>>, vector<1x64xf32>
    %253 = vector.broadcast %252 : vector<1x64xf32> to vector<8x64xf32>
    %254 = arith.addf %251, %253 : vector<8x64xf32>
    %c0_97 = arith.constant 0 : index
    %c0_98 = arith.constant 0 : index
    %c0_99 = arith.constant 0 : index
    %255 = vector.load %arg19[%c0_97, %c0_98, %c0_99] : memref<1x8x64xf32, #tpu.memory_space<vmem>>, vector<1x8x64xf32>
    %256 = vector.shape_cast %255 : vector<1x8x64xf32> to vector<8x64xf32>
    %257 = vector.shape_cast %254 : vector<8x64xf32> to vector<1x8x64xf32>
    tpu.vector_store %arg19[%c0_97, %c0_98, %c0_99], %257 {strides = array<i32>} : memref<1x8x64xf32, #tpu.memory_space<vmem>>, vector<1x8x64xf32>,
    return
  }
  func.func @transform_0(%arg0: i32, %arg1: i32) -> (i32, i32, i32) {
    %c0_i32 = arith.constant 0 : i32
    %c0_i32_0 = arith.constant 0 : i32
    return %arg0, %arg1, %c0_i32 : i32, i32, i32
  }
  func.func @transform_1(%arg0: i32, %arg1: i32) -> (i32, i32, i32) {
    %c0_i32 = arith.constant 0 : i32
    %c0_i32_0 = arith.constant 0 : i32
    %c0_i32_1 = arith.constant 0 : i32
    return %arg0, %c0_i32, %c0_i32_0 : i32, i32, i32
  }
  func.func @transform_2(%arg0: i32, %arg1: i32) -> (i32, i32, i32) {
    %c0_i32 = arith.constant 0 : i32
    %c0_i32_0 = arith.constant 0 : i32
    %c0_i32_1 = arith.constant 0 : i32
    return %arg0, %c0_i32, %c0_i32_0 : i32, i32, i32
  }
  func.func @transform_3(%arg0: i32, %arg1: i32) -> (i32, i32) {
    %c0_i32 = arith.constant 0 : i32
    %c0_i32_0 = arith.constant 0 : i32
    %c0_i32_1 = arith.constant 0 : i32
    return %c0_i32, %c0_i32_0 : i32, i32
  }
  func.func @transform_4(%arg0: i32, %arg1: i32) -> (i32, i32) {
    %c0_i32 = arith.constant 0 : i32
    %c0_i32_0 = arith.constant 0 : i32
    %c0_i32_1 = arith.constant 0 : i32
    return %c0_i32, %c0_i32_0 : i32, i32
  }
  func.func @transform_5(%arg0: i32, %arg1: i32) -> (i32, i32) {
    %c0_i32 = arith.constant 0 : i32
    %c0_i32_0 = arith.constant 0 : i32
    %c0_i32_1 = arith.constant 0 : i32
    return %c0_i32, %c0_i32_0 : i32, i32
  }
  func.func @transform_6(%arg0: i32, %arg1: i32) -> (i32, i32) {
    %c0_i32 = arith.constant 0 : i32
    %c0_i32_0 = arith.constant 0 : i32
    %c0_i32_1 = arith.constant 0 : i32
    return %c0_i32, %c0_i32_0 : i32, i32
  }
  func.func @transform_7(%arg0: i32, %arg1: i32) -> (i32, i32) {
    %c0_i32 = arith.constant 0 : i32
    %c0_i32_0 = arith.constant 0 : i32
    %c0_i32_1 = arith.constant 0 : i32
    return %c0_i32, %c0_i32_0 : i32, i32
  }
  func.func @transform_8(%arg0: i32, %arg1: i32) -> (i32, i32) {
    %c0_i32 = arith.constant 0 : i32
    %c0_i32_0 = arith.constant 0 : i32
    %c0_i32_1 = arith.constant 0 : i32
    return %c0_i32, %c0_i32_0 : i32, i32
  }
  func.func @transform_9(%arg0: i32, %arg1: i32) -> (i32, i32) {
    %c0_i32 = arith.constant 0 : i32
    %c0_i32_0 = arith.constant 0 : i32
    %c0_i32_1 = arith.constant 0 : i32
    return %c0_i32, %c0_i32_0 : i32, i32
  }
  func.func @transform_10(%arg0: i32, %arg1: i32) -> (i32, i32) {
    %c0_i32 = arith.constant 0 : i32
    %c0_i32_0 = arith.constant 0 : i32
    %c0_i32_1 = arith.constant 0 : i32
    return %c0_i32, %c0_i32_0 : i32, i32
  }
  func.func @transform_11(%arg0: i32, %arg1: i32) -> (i32, i32) {
    %c0_i32 = arith.constant 0 : i32
    %c0_i32_0 = arith.constant 0 : i32
    %c0_i32_1 = arith.constant 0 : i32
    return %c0_i32, %c0_i32_0 : i32, i32
  }
  func.func @transform_12(%arg0: i32, %arg1: i32) -> (i32, i32) {
    %c0_i32 = arith.constant 0 : i32
    %c0_i32_0 = arith.constant 0 : i32
    %c0_i32_1 = arith.constant 0 : i32
    return %c0_i32, %c0_i32_0 : i32, i32
  }
  func.func @transform_13(%arg0: i32, %arg1: i32) -> (i32, i32) {
    %c0_i32 = arith.constant 0 : i32
    %c0_i32_0 = arith.constant 0 : i32
    %c0_i32_1 = arith.constant 0 : i32
    return %c0_i32, %c0_i32_0 : i32, i32
  }
  func.func @transform_14(%arg0: i32, %arg1: i32) -> (i32, i32) {
    %c0_i32 = arith.constant 0 : i32
    %c0_i32_0 = arith.constant 0 : i32
    %c0_i32_1 = arith.constant 0 : i32
    return %c0_i32, %c0_i32_0 : i32, i32
  }
  func.func @transform_15(%arg0: i32, %arg1: i32) -> (i32, i32) {
    %c0_i32 = arith.constant 0 : i32
    %c0_i32_0 = arith.constant 0 : i32
    %c0_i32_1 = arith.constant 0 : i32
    return %c0_i32, %c0_i32_0 : i32, i32
  }
  func.func @transform_16(%arg0: i32, %arg1: i32) -> (i32, i32) {
    %c0_i32 = arith.constant 0 : i32
    %c0_i32_0 = arith.constant 0 : i32
    %c0_i32_1 = arith.constant 0 : i32
    return %c0_i32, %c0_i32_0 : i32, i32
  }
  func.func @transform_17(%arg0: i32, %arg1: i32) -> (i32, i32, i32) {
    %c0_i32 = arith.constant 0 : i32
    %c0_i32_0 = arith.constant 0 : i32
    return %arg0, %arg1, %c0_i32 : i32, i32, i32
  }
}

</mosaic_0001>

<llo_original>
// kernel: tpu_custom_call.1
$region0: #{tpu_custom_call.1}
  #allocation0 [shape = 'u32[]', space=smem, size = 0x4, offset = 0x4, fixed_abs, tag = 'smem constant byte address 0x4 - core index']
  #allocation1 [shape = 'u32[144,128]{1,0:T(1,128)}', space=vmem, size = 0x12000, scoped, tag = 'internal scratch']
  #allocation2 [shape = 'bf16[8,64]{1,0:T(8,128)(2,1)}', space=vmem, size = 0x800, scoped, tag = 'scratch operand']
  #allocation3 [shape = 'bf16[8,64]{1,0:T(8,128)(2,1)}', space=vmem, size = 0x800, scoped, tag = 'scratch operand']
  %s0 = inlined_call_operand.hbm [shape: f32[2,8,64], index: 0, kind: input, shape index: {}]
  %s1 = inlined_call_operand.hbm [shape: bf16[2,8,64], index: 1, kind: input, shape index: {}]
  %s2 = inlined_call_operand.hbm [shape: bf16[2,8,64], index: 2, kind: input, shape index: {}]
  %s3 = inlined_call_operand.hbm [shape: bf16[64,64], index: 3, kind: input, shape index: {}]
  %s4 = inlined_call_operand.hbm [shape: bf16[64,64], index: 4, kind: input, shape index: {}]
  %s5 = inlined_call_operand.hbm [shape: bf16[64,64], index: 5, kind: input, shape index: {}]
  %s6 = inlined_call_operand.hbm [shape: bf16[64,64], index: 6, kind: input, shape index: {}]
  %s7 = inlined_call_operand.vmem [shape: f32[1,64], index: 7, kind: input, shape index: {}]
  %s8 = inlined_call_operand.vmem [shape: f32[1,64], index: 8, kind: input, shape index: {}]
  %s9 = inlined_call_operand.vmem [shape: f32[1,64], index: 9, kind: input, shape index: {}]
  %s10 = inlined_call_operand.vmem [shape: f32[1,64], index: 10, kind: input, shape index: {}]
  %s11 = inlined_call_operand.vmem [shape: f32[1,64], index: 11, kind: input, shape index: {}]
  %s12 = inlined_call_operand.vmem [shape: f32[1,64], index: 12, kind: input, shape index: {}]
  %s13 = inlined_call_operand.vmem [shape: bf16[64,64], index: 13, kind: input, shape index: {}]
  %s14 = inlined_call_operand.hbm [shape: bf16[64,64], index: 14, kind: input, shape index: {}]
  %s15 = inlined_call_operand.vmem [shape: f32[1,64], index: 15, kind: input, shape index: {}]
  %s16 = inlined_call_operand.vmem [shape: f32[1,64], index: 16, kind: input, shape index: {}]
  %s17 = inlined_call_operand.hbm [shape: f32[2,8,64], index: 17, kind: output, shape index: {}]
  %s18 = sld [smem:[#allocation0]]
  $region137: #{tpu_custom_call.1} parent=0
    _
  %s20 = ssub.s32 1, %s18
  %s21 = scalar_select 0, %s20, %s18
  $region1: #{tpu_custom_call.1} parent=0
    #allocation4 [shape = 'u8[8192]{0}', space=vmem, size = 0x2000, scoped, tag = 'input window, operand 0']
    #allocation5 [shape = 's32[2]{0}', space=sflag, size = 0x8, scoped, tag = 'scoped memory for tpu_custom_call.1']
    #allocation6 [shape = 's32[2]{0}', space=sflag, size = 0x8, scoped, tag = 'scoped memory for tpu_custom_call.1']
    #allocation7 [shape = 'u8[4096]{0}', space=vmem, size = 0x1000, scoped, tag = 'input window, operand 1']
    #allocation8 [shape = 's32[2]{0}', space=sflag, size = 0x8, scoped, tag = 'scoped memory for tpu_custom_call.1']
    #allocation9 [shape = 'u8[4096]{0}', space=vmem, size = 0x1000, scoped, tag = 'input window, operand 2']
    #allocation10 [shape = 'u8[16384]{0}', space=vmem, size = 0x4000, scoped, tag = 'input window, operand 3, single buffered']
    #allocation11 [shape = 's32[1]{0}', space=sflag, size = 0x4, scoped, tag = 'scoped memory for tpu_custom_call.1']
    #allocation12 [shape = 'u8[16384]{0}', space=vmem, size = 0x4000, scoped, tag = 'input window, operand 4, single buffered']
    #allocation13 [shape = 'u8[16384]{0}', space=vmem, size = 0x4000, scoped, tag = 'input window, operand 5, single buffered']
    #allocation14 [shape = 's32[1]{0}', space=sflag, size = 0x4, scoped, tag = 'scoped memory for tpu_custom_call.1']
    #allocation15 [shape = 'u8[16384]{0}', space=vmem, size = 0x4000, scoped, tag = 'input window, operand 6, single buffered']
    #allocation16 [shape = 'u8[16384]{0}', space=vmem, size = 0x4000, scoped, tag = 'input window, operand 14, single buffered']
    #allocation17 [shape = 's32[1]{0}', space=sflag, size = 0x4, scoped, tag = 'scoped memory for tpu_custom_call.1']
    #allocation18 [shape = 'u8[8192]{0}', space=vmem, size = 0x2000, scoped, tag = 'output window, operand 0']
    %22 = vsyncpa [#allocation5], 0
    %s23 = scalar_lea.sflag [#allocation5], 1
    %24 = vsyncpa %s23, 0
    %25 = vsyncpa [#allocation8], 0
    %s26 = scalar_lea.sflag [#allocation8], 1
    %27 = vsyncpa %s26, 0
    %28 = vsyncpa [#allocation11], 0
    %29 = vsyncpa [#allocation14], 0
    %30 = vsyncpa [#allocation17], 0
    %31 = vsyncpa [#allocation6], 0
    %s32 = scalar_lea.sflag [#allocation6], 1
    %33 = vsyncpa %s32, 0
    loop: start=0, step=1, limit=4
    $region2: #{tpu_custom_call.1} parent=1 // loop_pre_header
      _
    $region3: #{tpu_custom_call.1} parent=1 // loop_header
      %s35 = sphi 0, %s39
      %p36 = scmp.ge.s32.totalorder %s35, 4
      %s42 = sphi 0, %s54
      %s43 = sphi 0, %s50
      %s44 = sphi 0, %s42
      %s45 = sphi 0, %s43
      %s46 = sphi 0, %s44
      %s47 = sphi 0, %s45
      %s59 = sphi 0, %s61
      %s62 = sphi 0, %s59
      %s63 = sphi 0, %s62
      %s79 = sphi 0, %s63
      %s85 = sphi 0, %s87
      %s88 = sphi 0, %s85
      %s89 = sphi 0, %s88
      %s105 = sphi 0, %s89
      %s111 = sphi 0, %s113
      %s114 = sphi 0, %s111
      %s115 = sphi 0, %s114
      %s131 = sphi 0, %s115
      %s135 = sphi 0, %s135
      %s137 = sphi 0, %s135
      %s138 = sphi 0, %s137
      %s152 = sphi 0, %s138
      %s156 = sphi 0, %s156
      %s158 = sphi 0, %s156
      %s159 = sphi 0, %s158
      %s173 = sphi 0, %s159
      %s177 = sphi 0, %s177
      %s179 = sphi 0, %s177
      %s180 = sphi 0, %s179
      %s194 = sphi 0, %s180
      %s198 = sphi 0, %s198
      %s200 = sphi 0, %s198
      %s201 = sphi 0, %s200
      %s215 = sphi 0, %s201
      %s219 = sphi 0, %s219
      %s221 = sphi 0, %s219
      %s222 = sphi 0, %s221
      %s236 = sphi 0, %s222
      %s240 = sphi 0, %s240
      %s242 = sphi 0, %s240
      %s243 = sphi 0, %s242
      %s257 = sphi 0, %s243
      %s261 = sphi 0, %s261
      %s263 = sphi 0, %s261
      %s264 = sphi 0, %s263
      %s278 = sphi 0, %s264
      %s282 = sphi 0, %s282
      %s284 = sphi 0, %s282
      %s285 = sphi 0, %s284
      %s299 = sphi 0, %s285
      %s303 = sphi 0, %s303
      %s305 = sphi 0, %s303
      %s306 = sphi 0, %s305
      %s320 = sphi 0, %s306
      %s324 = sphi 0, %s324
      %s326 = sphi 0, %s324
      %s327 = sphi 0, %s326
      %s341 = sphi 0, %s327
      %s345 = sphi 0, %s345
      %s347 = sphi 0, %s345
      %s348 = sphi 0, %s347
      %s362 = sphi 0, %s348
      %s366 = sphi 0, %s366
      %s368 = sphi 0, %s366
      %s369 = sphi 0, %s368
      %s383 = sphi 0, %s369
      %s387 = sphi 0, %s387
      %s389 = sphi 0, %s387
      %s390 = sphi 0, %s389
      %s404 = sphi 0, %s390
      %s408 = sphi 0, %s408
      %s410 = sphi 0, %s408
      %s411 = sphi 0, %s410
      %s425 = sphi 0, %s411
      %s433 = sphi 0, %s435
      %s436 = sphi 0, %s433
      %s437 = sphi 0, %s436
      %s453 = sphi 0, %s437
    $region4: #{tpu_custom_call.1} parent=1 // loop_header_branch
      %38 = sbr.rel (%p36) target = $region8
    $region5: #{tpu_custom_call.1} parent=1 // loop_body
      %s40 = ssub.s32 %s35, 1
      %s41 = ssub.s32 %s35, 2
      %s48 = sadd.s32 1, %s43
      %p49 = scmp.ge.s32.totalorder %s48, 1
      %s50 = scalar_select %p49, 0, %s48
      %s51 = sadd.s32 1, %s42
      %s52 = scalar_select %p49, %s51, %s42
      %p53 = scmp.ge.s32.totalorder %s52, 2
      %s54 = scalar_select %p53, 0, %s52
      %s55 = ssub.s32 %s42, %s54
      %s56 = ssub.s32 %s43, %s50
      %s57 = sor.u32 %s55, %s56
      %p58 = scmp.eq.s32.totalorder %s57, 0
      %s60 = sadd.s32 %s59, 1
      %s61 = scalar_select %p58, %s59, %s60
      %p64 = pneg %p58
      %p65 = scmp.eq.s32.totalorder %s35, 1
      %p66 = por %p64, %p65
      %p67 = scmp.ne.s32.totalorder %s59, %s62
      %p68 = scmp.eq.s32.totalorder %s35, 0
      %p69 = por %p67, %p68
      %p70 = scmp.ne.s32.totalorder %s59, %s62
      %p71 = scmp.eq.s32.totalorder %s40, 1
      %p72 = por %p70, %p71
      %p73 = scmp.ne.s32.totalorder %s62, %s63
      %p74 = scmp.eq.s32.totalorder %s40, 0
      %p75 = por %p73, %p74
      %p76 = scmp.ne.s32.totalorder %s62, %s63
      %p77 = scmp.eq.s32.totalorder %s41, 1
      %p78 = por %p76, %p77
      %p80 = scmp.ne.s32.totalorder %s63, %s79
      %p81 = scmp.eq.s32.totalorder %s41, 0
      %p82 = por %p80, %p81
      %s83 = ssub.s32 %s42, %s54
      %p84 = scmp.eq.s32.totalorder %s83, 0
      %s86 = sadd.s32 %s85, 1
      %s87 = scalar_select %p84, %s85, %s86
      %p90 = pneg %p84
      %p91 = scmp.eq.s32.totalorder %s35, 1
      %p92 = por %p90, %p91
      %p93 = scmp.ne.s32.totalorder %s85, %s88
      %p94 = scmp.eq.s32.totalorder %s35, 0
      %p95 = por %p93, %p94
      %p96 = scmp.ne.s32.totalorder %s85, %s88
      %p97 = scmp.eq.s32.totalorder %s40, 1
      %p98 = por %p96, %p97
      %p99 = scmp.ne.s32.totalorder %s88, %s89
      %p100 = scmp.eq.s32.totalorder %s40, 0
      %p101 = por %p99, %p100
      %p102 = scmp.ne.s32.totalorder %s88, %s89
      %p103 = scmp.eq.s32.totalorder %s41, 1
      %p104 = por %p102, %p103
      %p106 = scmp.ne.s32.totalorder %s89, %s105
      %p107 = scmp.eq.s32.totalorder %s41, 0
      %p108 = por %p106, %p107
      %s109 = ssub.s32 %s42, %s54
      %p110 = scmp.eq.s32.totalorder %s109, 0
      %s112 = sadd.s32 %s111, 1
      %s113 = scalar_select %p110, %s111, %s112
      %p116 = pneg %p110
      %p117 = scmp.eq.s32.totalorder %s35, 1
      %p118 = por %p116, %p117
      %p119 = scmp.ne.s32.totalorder %s111, %s114
      %p120 = scmp.eq.s32.totalorder %s35, 0
      %p121 = por %p119, %p120
      %p122 = scmp.ne.s32.totalorder %s111, %s114
      %p123 = scmp.eq.s32.totalorder %s40, 1
      %p124 = por %p122, %p123
      %p125 = scmp.ne.s32.totalorder %s114, %s115
      %p126 = scmp.eq.s32.totalorder %s40, 0
      %p127 = por %p125, %p126
      %p128 = scmp.ne.s32.totalorder %s114, %s115
      %p129 = scmp.eq.s32.totalorder %s41, 1
      %p130 = por %p128, %p129
      %p132 = scmp.ne.s32.totalorder %s115, %s131
      %p133 = scmp.eq.s32.totalorder %s41, 0
      %p134 = por %p132, %p133
      %s136 = sadd.s32 %s135, 1
      %p139 = scmp.eq.s32.totalorder %s35, 1
      %p140 = scmp.ne.s32.totalorder %s135, %s137
      %p141 = scmp.eq.s32.totalorder %s35, 0
      %p142 = por %p140, %p141
      %p143 = scmp.ne.s32.totalorder %s135, %s137
      %p144 = scmp.eq.s32.totalorder %s40, 1
      %p145 = por %p143, %p144
      %p146 = scmp.ne.s32.totalorder %s137, %s138
      %p147 = scmp.eq.s32.totalorder %s40, 0
      %p148 = por %p146, %p147
      %p149 = scmp.ne.s32.totalorder %s137, %s138
      %p150 = scmp.eq.s32.totalorder %s41, 1
      %p151 = por %p149, %p150
      %p153 = scmp.ne.s32.totalorder %s138, %s152
      %p154 = scmp.eq.s32.totalorder %s41, 0
      %p155 = por %p153, %p154
      %s157 = sadd.s32 %s156, 1
      %p160 = scmp.eq.s32.totalorder %s35, 1
      %p161 = scmp.ne.s32.totalorder %s156, %s158
      %p162 = scmp.eq.s32.totalorder %s35, 0
      %p163 = por %p161, %p162
      %p164 = scmp.ne.s32.totalorder %s156, %s158
      %p165 = scmp.eq.s32.totalorder %s40, 1
      %p166 = por %p164, %p165
      %p167 = scmp.ne.s32.totalorder %s158, %s159
      %p168 = scmp.eq.s32.totalorder %s40, 0
      %p169 = por %p167, %p168
      %p170 = scmp.ne.s32.totalorder %s158, %s159
      %p171 = scmp.eq.s32.totalorder %s41, 1
      %p172 = por %p170, %p171
      %p174 = scmp.ne.s32.totalorder %s159, %s173
      %p175 = scmp.eq.s32.totalorder %s41, 0
      %p176 = por %p174, %p175
      %s178 = sadd.s32 %s177, 1
      %p181 = scmp.eq.s32.totalorder %s35, 1
      %p182 = scmp.ne.s32.totalorder %s177, %s179
      %p183 = scmp.eq.s32.totalorder %s35, 0
      %p184 = por %p182, %p183
      %p185 = scmp.ne.s32.totalorder %s177, %s179
      %p186 = scmp.eq.s32.totalorder %s40, 1
      %p187 = por %p185, %p186
      %p188 = scmp.ne.s32.totalorder %s179, %s180
      %p189 = scmp.eq.s32.totalorder %s40, 0
      %p190 = por %p188, %p189
      %p191 = scmp.ne.s32.totalorder %s179, %s180
      %p192 = scmp.eq.s32.totalorder %s41, 1
      %p193 = por %p191, %p192
      %p195 = scmp.ne.s32.totalorder %s180, %s194
      %p196 = scmp.eq.s32.totalorder %s41, 0
      %p197 = por %p195, %p196
      %s199 = sadd.s32 %s198, 1
      %p202 = scmp.eq.s32.totalorder %s35, 1
      %p203 = scmp.ne.s32.totalorder %s198, %s200
      %p204 = scmp.eq.s32.totalorder %s35, 0
      %p205 = por %p203, %p204
      %p206 = scmp.ne.s32.totalorder %s198, %s200
      %p207 = scmp.eq.s32.totalorder %s40, 1
      %p208 = por %p206, %p207
      %p209 = scmp.ne.s32.totalorder %s200, %s201
      %p210 = scmp.eq.s32.totalorder %s40, 0
      %p211 = por %p209, %p210
      %p212 = scmp.ne.s32.totalorder %s200, %s201
      %p213 = scmp.eq.s32.totalorder %s41, 1
      %p214 = por %p212, %p213
      %p216 = scmp.ne.s32.totalorder %s201, %s215
      %p217 = scmp.eq.s32.totalorder %s41, 0
      %p218 = por %p216, %p217
      %s220 = sadd.s32 %s219, 1
      %p223 = scmp.eq.s32.totalorder %s35, 1
      %p224 = scmp.ne.s32.totalorder %s219, %s221
      %p225 = scmp.eq.s32.totalorder %s35, 0
      %p226 = por %p224, %p225
      %p227 = scmp.ne.s32.totalorder %s219, %s221
      %p228 = scmp.eq.s32.totalorder %s40, 1
      %p229 = por %p227, %p228
      %p230 = scmp.ne.s32.totalorder %s221, %s222
      %p231 = scmp.eq.s32.totalorder %s40, 0
      %p232 = por %p230, %p231
      %p233 = scmp.ne.s32.totalorder %s221, %s222
      %p234 = scmp.eq.s32.totalorder %s41, 1
      %p235 = por %p233, %p234
      %p237 = scmp.ne.s32.totalorder %s222, %s236
      %p238 = scmp.eq.s32.totalorder %s41, 0
      %p239 = por %p237, %p238
      %s241 = sadd.s32 %s240, 1
      %p244 = scmp.eq.s32.totalorder %s35, 1
      %p245 = scmp.ne.s32.totalorder %s240, %s242
      %p246 = scmp.eq.s32.totalorder %s35, 0
      %p247 = por %p245, %p246
      %p248 = scmp.ne.s32.totalorder %s240, %s242
      %p249 = scmp.eq.s32.totalorder %s40, 1
      %p250 = por %p248, %p249
      %p251 = scmp.ne.s32.totalorder %s242, %s243
      %p252 = scmp.eq.s32.totalorder %s40, 0
      %p253 = por %p251, %p252
      %p254 = scmp.ne.s32.totalorder %s242, %s243
      %p255 = scmp.eq.s32.totalorder %s41, 1
      %p256 = por %p254, %p255
      %p258 = scmp.ne.s32.totalorder %s243, %s257
      %p259 = scmp.eq.s32.totalorder %s41, 0
      %p260 = por %p258, %p259
      %s262 = sadd.s32 %s261, 1
      %p265 = scmp.eq.s32.totalorder %s35, 1
      %p266 = scmp.ne.s32.totalorder %s261, %s263
      %p267 = scmp.eq.s32.totalorder %s35, 0
      %p268 = por %p266, %p267
      %p269 = scmp.ne.s32.totalorder %s261, %s263
      %p270 = scmp.eq.s32.totalorder %s40, 1
      %p271 = por %p269, %p270
      %p272 = scmp.ne.s32.totalorder %s263, %s264
      %p273 = scmp.eq.s32.totalorder %s40, 0
      %p274 = por %p272, %p273
      %p275 = scmp.ne.s32.totalorder %s263, %s264
      %p276 = scmp.eq.s32.totalorder %s41, 1
      %p277 = por %p275, %p276
      %p279 = scmp.ne.s32.totalorder %s264, %s278
      %p280 = scmp.eq.s32.totalorder %s41, 0
      %p281 = por %p279, %p280
      %s283 = sadd.s32 %s282, 1
      %p286 = scmp.eq.s32.totalorder %s35, 1
      %p287 = scmp.ne.s32.totalorder %s282, %s284
      %p288 = scmp.eq.s32.totalorder %s35, 0
      %p289 = por %p287, %p288
      %p290 = scmp.ne.s32.totalorder %s282, %s284
      %p291 = scmp.eq.s32.totalorder %s40, 1
      %p292 = por %p290, %p291
      %p293 = scmp.ne.s32.totalorder %s284, %s285
      %p294 = scmp.eq.s32.totalorder %s40, 0
      %p295 = por %p293, %p294
      %p296 = scmp.ne.s32.totalorder %s284, %s285
      %p297 = scmp.eq.s32.totalorder %s41, 1
      %p298 = por %p296, %p297
      %p300 = scmp.ne.s32.totalorder %s285, %s299
      %p301 = scmp.eq.s32.totalorder %s41, 0
      %p302 = por %p300, %p301
      %s304 = sadd.s32 %s303, 1
      %p307 = scmp.eq.s32.totalorder %s35, 1
      %p308 = scmp.ne.s32.totalorder %s303, %s305
      %p309 = scmp.eq.s32.totalorder %s35, 0
      %p310 = por %p308, %p309
      %p311 = scmp.ne.s32.totalorder %s303, %s305
      %p312 = scmp.eq.s32.totalorder %s40, 1
      %p313 = por %p311, %p312
      %p314 = scmp.ne.s32.totalorder %s305, %s306
      %p315 = scmp.eq.s32.totalorder %s40, 0
      %p316 = por %p314, %p315
      %p317 = scmp.ne.s32.totalorder %s305, %s306
      %p318 = scmp.eq.s32.totalorder %s41, 1
      %p319 = por %p317, %p318
      %p321 = scmp.ne.s32.totalorder %s306, %s320
      %p322 = scmp.eq.s32.totalorder %s41, 0
      %p323 = por %p321, %p322
      %s325 = sadd.s32 %s324, 1
      %p328 = scmp.eq.s32.totalorder %s35, 1
      %p329 = scmp.ne.s32.totalorder %s324, %s326
      %p330 = scmp.eq.s32.totalorder %s35, 0
      %p331 = por %p329, %p330
      %p332 = scmp.ne.s32.totalorder %s324, %s326
      %p333 = scmp.eq.s32.totalorder %s40, 1
      %p334 = por %p332, %p333
      %p335 = scmp.ne.s32.totalorder %s326, %s327
      %p336 = scmp.eq.s32.totalorder %s40, 0
      %p337 = por %p335, %p336
      %p338 = scmp.ne.s32.totalorder %s326, %s327
      %p339 = scmp.eq.s32.totalorder %s41, 1
      %p340 = por %p338, %p339
      %p342 = scmp.ne.s32.totalorder %s327, %s341
      %p343 = scmp.eq.s32.totalorder %s41, 0
      %p344 = por %p342, %p343
      %s346 = sadd.s32 %s345, 1
      %p349 = scmp.eq.s32.totalorder %s35, 1
      %p350 = scmp.ne.s32.totalorder %s345, %s347
      %p351 = scmp.eq.s32.totalorder %s35, 0
      %p352 = por %p350, %p351
      %p353 = scmp.ne.s32.totalorder %s345, %s347
      %p354 = scmp.eq.s32.totalorder %s40, 1
      %p355 = por %p353, %p354
      %p356 = scmp.ne.s32.totalorder %s347, %s348
      %p357 = scmp.eq.s32.totalorder %s40, 0
      %p358 = por %p356, %p357
      %p359 = scmp.ne.s32.totalorder %s347, %s348
      %p360 = scmp.eq.s32.totalorder %s41, 1
      %p361 = por %p359, %p360
      %p363 = scmp.ne.s32.totalorder %s348, %s362
      %p364 = scmp.eq.s32.totalorder %s41, 0
      %p365 = por %p363, %p364
      %s367 = sadd.s32 %s366, 1
      %p370 = scmp.eq.s32.totalorder %s35, 1
      %p371 = scmp.ne.s32.totalorder %s366, %s368
      %p372 = scmp.eq.s32.totalorder %s35, 0
      %p373 = por %p371, %p372
      %p374 = scmp.ne.s32.totalorder %s366, %s368
      %p375 = scmp.eq.s32.totalorder %s40, 1
      %p376 = por %p374, %p375
      %p377 = scmp.ne.s32.totalorder %s368, %s369
      %p378 = scmp.eq.s32.totalorder %s40, 0
      %p379 = por %p377, %p378
      %p380 = scmp.ne.s32.totalorder %s368, %s369
      %p381 = scmp.eq.s32.totalorder %s41, 1
      %p382 = por %p380, %p381
      %p384 = scmp.ne.s32.totalorder %s369, %s383
      %p385 = scmp.eq.s32.totalorder %s41, 0
      %p386 = por %p384, %p385
      %s388 = sadd.s32 %s387, 1
      %p391 = scmp.eq.s32.totalorder %s35, 1
      %p392 = scmp.ne.s32.totalorder %s387, %s389
      %p393 = scmp.eq.s32.totalorder %s35, 0
      %p394 = por %p392, %p393
      %p395 = scmp.ne.s32.totalorder %s387, %s389
      %p396 = scmp.eq.s32.totalorder %s40, 1
      %p397 = por %p395, %p396
      %p398 = scmp.ne.s32.totalorder %s389, %s390
      %p399 = scmp.eq.s32.totalorder %s40, 0
      %p400 = por %p398, %p399
      %p401 = scmp.ne.s32.totalorder %s389, %s390
      %p402 = scmp.eq.s32.totalorder %s41, 1
      %p403 = por %p401, %p402
      %p405 = scmp.ne.s32.totalorder %s390, %s404
      %p406 = scmp.eq.s32.totalorder %s41, 0
      %p407 = por %p405, %p406
      %s409 = sadd.s32 %s408, 1
      %p412 = scmp.eq.s32.totalorder %s35, 1
      %p413 = scmp.ne.s32.totalorder %s408, %s410
      %p414 = scmp.eq.s32.totalorder %s35, 0
      %p415 = por %p413, %p414
      %p416 = scmp.ne.s32.totalorder %s408, %s410
      %p417 = scmp.eq.s32.totalorder %s40, 1
      %p418 = por %p416, %p417
      %p419 = scmp.ne.s32.totalorder %s410, %s411
      %p420 = scmp.eq.s32.totalorder %s40, 0
      %p421 = por %p419, %p420
      %p422 = scmp.ne.s32.totalorder %s410, %s411
      %p423 = scmp.eq.s32.totalorder %s41, 1
      %p424 = por %p422, %p423
      %p426 = scmp.ne.s32.totalorder %s411, %s425
      %p427 = scmp.eq.s32.totalorder %s41, 0
      %p428 = por %p426, %p427
      %s429 = ssub.s32 %s42, %s54
      %s430 = ssub.s32 %s43, %s50
      %s431 = sor.u32 %s429, %s430
      %p432 = scmp.eq.s32.totalorder %s431, 0
      %s434 = sadd.s32 %s433, 1
      %s435 = scalar_select %p432, %s433, %s434
      %p438 = pneg %p432
      %p439 = scmp.eq.s32.totalorder %s35, 1
      %p440 = por %p438, %p439
      %p441 = scmp.ne.s32.totalorder %s433, %s436
      %p442 = scmp.eq.s32.totalorder %s35, 0
      %p443 = por %p441, %p442
      %p444 = scmp.ne.s32.totalorder %s433, %s436
      %p445 = scmp.eq.s32.totalorder %s40, 1
      %p446 = por %p444, %p445
      %p447 = scmp.ne.s32.totalorder %s436, %s437
      %p448 = scmp.eq.s32.totalorder %s40, 0
      %p449 = por %p447, %p448
      %p450 = scmp.ne.s32.totalorder %s436, %s437
      %p451 = scmp.eq.s32.totalorder %s41, 1
      %p452 = por %p450, %p451
      %p454 = scmp.ne.s32.totalorder %s437, %s453
      %p455 = scmp.eq.s32.totalorder %s41, 0
      %p456 = por %p454, %p455
      %p457 = scmp.le.s32.totalorder 1, %s35
      %p458 = scmp.lt.s32.totalorder %s35, 3
      %p459 = pnand %p457, %p458
      %p460 = pneg %p459
      // Predicated region
      $region9: #{tpu_custom_call.1} parent=5 // pred_check
        _
      $region10: #{tpu_custom_call.1} parent=5 // pred_check_branch
        %462 = sbr.rel (%p459) target = $region12
      $region11: #{tpu_custom_call.1} parent=5 // pred_region
        %s463 = ssub.s32 %s35, 1
        // Predicated region
        $region13: #{tpu_custom_call.1} parent=11 // pred_check
          %p464 = pneg %p148
        $region14: #{tpu_custom_call.1} parent=11 // pred_check_branch
          %466 = sbr.rel (%p464) target = $region16
        $region15: #{tpu_custom_call.1} parent=11 // pred_region
          %s468 = ssub.s32 512, 512
          %469 = vsyncadd [#allocation11], %s468
          %s470 = sshll.u32 [#allocation10], 4
          %s471 = int_to_ptr.vmem [resolvable:$true] %s470
          %476 = dma.hbm_to_vmem [thread:$0]  %s3, 512, %s471, [#allocation11], 64, 64, 4
        $region16: #{tpu_custom_call.1} parent=11 // pred_fallthru
          _
        // Predicated region
        $region17: #{tpu_custom_call.1} parent=11 // pred_check
          %p477 = pneg %p169
        $region18: #{tpu_custom_call.1} parent=11 // pred_check_branch
          %479 = sbr.rel (%p477) target = $region20
        $region19: #{tpu_custom_call.1} parent=11 // pred_region
          %s481 = ssub.s32 512, 512
          %482 = vsyncadd [#allocation11], %s481
          %s483 = sshll.u32 [#allocation12], 4
          %s484 = int_to_ptr.vmem [resolvable:$true] %s483
          %489 = dma.hbm_to_vmem [thread:$0]  %s4, 512, %s484, [#allocation11], 64, 64, 4
        $region20: #{tpu_custom_call.1} parent=11 // pred_fallthru
          _
        // Predicated region
        $region21: #{tpu_custom_call.1} parent=11 // pred_check
          %p490 = pneg %p190
        $region22: #{tpu_custom_call.1} parent=11 // pred_check_branch
          %492 = sbr.rel (%p490) target = $region24
        $region23: #{tpu_custom_call.1} parent=11 // pred_region
          %s494 = ssub.s32 512, 512
          %495 = vsyncadd [#allocation14], %s494
          %s496 = sshll.u32 [#allocation13], 4
          %s497 = int_to_ptr.vmem [resolvable:$true] %s496
          %502 = dma.hbm_to_vmem [thread:$0]  %s5, 512, %s497, [#allocation14], 64, 64, 4
        $region24: #{tpu_custom_call.1} parent=11 // pred_fallthru
          _
        // Predicated region
        $region25: #{tpu_custom_call.1} parent=11 // pred_check
          %p503 = pneg %p211
        $region26: #{tpu_custom_call.1} parent=11 // pred_check_branch
          %505 = sbr.rel (%p503) target = $region28
        $region27: #{tpu_custom_call.1} parent=11 // pred_region
          %s507 = ssub.s32 512, 512
          %508 = vsyncadd [#allocation14], %s507
          %s509 = sshll.u32 [#allocation15], 4
          %s510 = int_to_ptr.vmem [resolvable:$true] %s509
          %515 = dma.hbm_to_vmem [thread:$0]  %s6, 512, %s510, [#allocation14], 64, 64, 4
        $region28: #{tpu_custom_call.1} parent=11 // pred_fallthru
          _
        // Predicated region
        $region29: #{tpu_custom_call.1} parent=11 // pred_check
          %p516 = pneg %p232
        $region30: #{tpu_custom_call.1} parent=11 // pred_check_branch
          %518 = sbr.rel (%p516) target = $region32
        $region31: #{tpu_custom_call.1} parent=11 // pred_region
          _
        $region32: #{tpu_custom_call.1} parent=11 // pred_fallthru
          _
        // Predicated region
        $region33: #{tpu_custom_call.1} parent=11 // pred_check
          %p519 = pneg %p253
        $region34: #{tpu_custom_call.1} parent=11 // pred_check_branch
          %521 = sbr.rel (%p519) target = $region36
        $region35: #{tpu_custom_call.1} parent=11 // pred_region
          _
        $region36: #{tpu_custom_call.1} parent=11 // pred_fallthru
          _
        // Predicated region
        $region37: #{tpu_custom_call.1} parent=11 // pred_check
          %p522 = pneg %p274
        $region38: #{tpu_custom_call.1} parent=11 // pred_check_branch
          %524 = sbr.rel (%p522) target = $region40
        $region39: #{tpu_custom_call.1} parent=11 // pred_region
          _
        $region40: #{tpu_custom_call.1} parent=11 // pred_fallthru
          _
        // Predicated region
        $region41: #{tpu_custom_call.1} parent=11 // pred_check
          %p525 = pneg %p295
        $region42: #{tpu_custom_call.1} parent=11 // pred_check_branch
          %527 = sbr.rel (%p525) target = $region44
        $region43: #{tpu_custom_call.1} parent=11 // pred_region
          _
        $region44: #{tpu_custom_call.1} parent=11 // pred_fallthru
          _
        // Predicated region
        $region45: #{tpu_custom_call.1} parent=11 // pred_check
          %p528 = pneg %p316
        $region46: #{tpu_custom_call.1} parent=11 // pred_check_branch
          %530 = sbr.rel (%p528) target = $region48
        $region47: #{tpu_custom_call.1} parent=11 // pred_region
          _
        $region48: #{tpu_custom_call.1} parent=11 // pred_fallthru
          _
        // Predicated region
        $region49: #{tpu_custom_call.1} parent=11 // pred_check
          %p531 = pneg %p337
        $region50: #{tpu_custom_call.1} parent=11 // pred_check_branch
          %533 = sbr.rel (%p531) target = $region52
        $region51: #{tpu_custom_call.1} parent=11 // pred_region
          _
        $region52: #{tpu_custom_call.1} parent=11 // pred_fallthru
          _
        // Predicated region
        $region53: #{tpu_custom_call.1} parent=11 // pred_check
          %p534 = pneg %p358
        $region54: #{tpu_custom_call.1} parent=11 // pred_check_branch
          %536 = sbr.rel (%p534) target = $region56
        $region55: #{tpu_custom_call.1} parent=11 // pred_region
          _
        $region56: #{tpu_custom_call.1} parent=11 // pred_fallthru
          _
        // Predicated region
        $region57: #{tpu_custom_call.1} parent=11 // pred_check
          %p537 = pneg %p379
        $region58: #{tpu_custom_call.1} parent=11 // pred_check_branch
          %539 = sbr.rel (%p537) target = $region60
        $region59: #{tpu_custom_call.1} parent=11 // pred_region
          %s541 = ssub.s32 512, 512
          %542 = vsyncadd [#allocation17], %s541
          %s543 = sshll.u32 [#allocation16], 4
          %s544 = int_to_ptr.vmem [resolvable:$true] %s543
          %549 = dma.hbm_to_vmem [thread:$0]  %s14, 512, %s544, [#allocation17], 64, 64, 4
        $region60: #{tpu_custom_call.1} parent=11 // pred_fallthru
          _
        // Predicated region
        $region61: #{tpu_custom_call.1} parent=11 // pred_check
          %p550 = pneg %p400
        $region62: #{tpu_custom_call.1} parent=11 // pred_check_branch
          %552 = sbr.rel (%p550) target = $region64
        $region63: #{tpu_custom_call.1} parent=11 // pred_region
          _
        $region64: #{tpu_custom_call.1} parent=11 // pred_fallthru
          _
        // Predicated region
        $region65: #{tpu_custom_call.1} parent=11 // pred_check
          %p553 = pneg %p421
        $region66: #{tpu_custom_call.1} parent=11 // pred_check_branch
          %555 = sbr.rel (%p553) target = $region68
        $region67: #{tpu_custom_call.1} parent=11 // pred_region
          _
        $region68: #{tpu_custom_call.1} parent=11 // pred_fallthru
          _
      $region12: #{tpu_custom_call.1} parent=5 // pred_fallthru
        _
      %p556 = scmp.lt.s32.totalorder %s35, 2
      // Predicated region
      $region69: #{tpu_custom_call.1} parent=5 // pred_check
        %p557 = pneg %p556
      $region70: #{tpu_custom_call.1} parent=5 // pred_check_branch
        %559 = sbr.rel (%p557) target = $region72
      $region71: #{tpu_custom_call.1} parent=5 // pred_region
        // Predicated region
        $region73: #{tpu_custom_call.1} parent=71 // pred_check
          %p560 = pneg %p69
        $region74: #{tpu_custom_call.1} parent=71 // pred_check_branch
          %562 = sbr.rel (%p560) target = $region76
        $region75: #{tpu_custom_call.1} parent=71 // pred_region
          %s563 = sand.u32 %s59, 1
          %s564 = scalar_lea.sflag [#allocation5], %s563
          %s565 = sand.u32 %s59, 1
          %s566 = smul.addr %s565, 8
          %s567 = scalar_lea.vmem [#allocation4], %s566
          %s569 = ssub.s32 128, 128
          %570 = vsyncadd %s564, %s569
          %s571 = sadd.s32 %s43, %s42
          %s572 = smul.addr %s571, 128
          %s573 = scalar_lea.hbm %s0, %s572
          %s575 = sshll.u32 %s567, 4
          %s576 = int_to_ptr.vmem [resolvable:$true] %s575
          %578 = dma.hbm_to_vmem [thread:$0]  %s573, 128, %s576, %s564
        $region76: #{tpu_custom_call.1} parent=71 // pred_fallthru
          _
        // Predicated region
        $region77: #{tpu_custom_call.1} parent=71 // pred_check
          %p579 = pneg %p95
        $region78: #{tpu_custom_call.1} parent=71 // pred_check_branch
          %581 = sbr.rel (%p579) target = $region80
        $region79: #{tpu_custom_call.1} parent=71 // pred_region
          %s582 = sand.u32 %s35, 1
          %s583 = scalar_lea.sflag [#allocation8], %s582
          %s584 = sand.u32 %s85, 1
          %s585 = smul.addr %s584, 4
          %s586 = scalar_lea.vmem [#allocation7], %s585
          %s588 = ssub.s32 64, 64
          %589 = vsyncadd %s583, %s588
          %s590 = smul.addr %s42, 64
          %s591 = scalar_lea.hbm %s1, %s590
          %s593 = sshll.u32 %s586, 4
          %s594 = int_to_ptr.vmem [resolvable:$true] %s593
          %596 = dma.hbm_to_vmem [thread:$0]  %s591, 64, %s594, %s583
        $region80: #{tpu_custom_call.1} parent=71 // pred_fallthru
          _
        // Predicated region
        $region81: #{tpu_custom_call.1} parent=71 // pred_check
          %p597 = pneg %p121
        $region82: #{tpu_custom_call.1} parent=71 // pred_check_branch
          %599 = sbr.rel (%p597) target = $region84
        $region83: #{tpu_custom_call.1} parent=71 // pred_region
          %s600 = sand.u32 %s35, 1
          %s601 = scalar_lea.sflag [#allocation8], %s600
          %s602 = sand.u32 %s111, 1
          %s603 = smul.addr %s602, 4
          %s604 = scalar_lea.vmem [#allocation9], %s603
          %s606 = ssub.s32 64, 64
          %607 = vsyncadd %s601, %s606
          %s608 = smul.addr %s42, 64
          %s609 = scalar_lea.hbm %s2, %s608
          %s611 = sshll.u32 %s604, 4
          %s612 = int_to_ptr.vmem [resolvable:$true] %s611
          %614 = dma.hbm_to_vmem [thread:$0]  %s609, 64, %s612, %s601
        $region84: #{tpu_custom_call.1} parent=71 // pred_fallthru
          _
      $region72: #{tpu_custom_call.1} parent=5 // pred_fallthru
        _
      %p615 = scmp.le.s32.totalorder 1, %s35
      %p616 = scmp.lt.s32.totalorder %s35, 3
      %p617 = pnand %p615, %p616
      %p618 = pneg %p617
      // Predicated region
      $region85: #{tpu_custom_call.1} parent=5 // pred_check
        _
      $region86: #{tpu_custom_call.1} parent=5 // pred_check_branch
        %620 = sbr.rel (%p617) target = $region88
      $region87: #{tpu_custom_call.1} parent=5 // pred_region
        %s621 = ssub.s32 %s35, 1
        %s622 = sand.u32 %s62, 1
        %s623 = scalar_lea.sflag [#allocation5], %s622
        %s624 = sand.u32 %s62, 1
        %s625 = smul.addr %s624, 8
        %s626 = scalar_lea.vmem [#allocation4], %s625
        // Predicated region
        $region89: #{tpu_custom_call.1} parent=87 // pred_check
          %p627 = pneg %p75
        $region90: #{tpu_custom_call.1} parent=87 // pred_check_branch
          %629 = sbr.rel (%p627) target = $region92
        $region91: #{tpu_custom_call.1} parent=87 // pred_region
          %630 = dma.done %s623, 128
        $region92: #{tpu_custom_call.1} parent=87 // pred_fallthru
          _
        %s631 = sand.u32 %s40, 1
        %s632 = scalar_lea.sflag [#allocation8], %s631
        %s633 = sand.u32 %s88, 1
        %s634 = smul.addr %s633, 4
        %s635 = scalar_lea.vmem [#allocation7], %s634
        // Predicated region
        $region93: #{tpu_custom_call.1} parent=87 // pred_check
          %p636 = pneg %p101
        $region94: #{tpu_custom_call.1} parent=87 // pred_check_branch
          %638 = sbr.rel (%p636) target = $region96
        $region95: #{tpu_custom_call.1} parent=87 // pred_region
          %639 = dma.done %s632, 64
        $region96: #{tpu_custom_call.1} parent=87 // pred_fallthru
          _
        %s640 = sand.u32 %s40, 1
        %s641 = scalar_lea.sflag [#allocation8], %s640
        %s642 = sand.u32 %s114, 1
        %s643 = smul.addr %s642, 4
        %s644 = scalar_lea.vmem [#allocation9], %s643
        // Predicated region
        $region97: #{tpu_custom_call.1} parent=87 // pred_check
          %p645 = pneg %p127
        $region98: #{tpu_custom_call.1} parent=87 // pred_check_branch
          %647 = sbr.rel (%p645) target = $region100
        $region99: #{tpu_custom_call.1} parent=87 // pred_region
          %648 = dma.done %s641, 64
        $region100: #{tpu_custom_call.1} parent=87 // pred_fallthru
          _
        // Predicated region
        $region101: #{tpu_custom_call.1} parent=87 // pred_check
          %p649 = pneg %p148
        $region102: #{tpu_custom_call.1} parent=87 // pred_check_branch
          %651 = sbr.rel (%p649) target = $region104
        $region103: #{tpu_custom_call.1} parent=87 // pred_region
          %652 = dma.done [#allocation11], 512
        $region104: #{tpu_custom_call.1} parent=87 // pred_fallthru
          _
        // Predicated region
        $region105: #{tpu_custom_call.1} parent=87 // pred_check
          %p653 = pneg %p169
        $region106: #{tpu_custom_call.1} parent=87 // pred_check_branch
          %655 = sbr.rel (%p653) target = $region108
        $region107: #{tpu_custom_call.1} parent=87 // pred_region
          %656 = dma.done [#allocation11], 512
        $region108: #{tpu_custom_call.1} parent=87 // pred_fallthru
          _
        // Predicated region
        $region109: #{tpu_custom_call.1} parent=87 // pred_check
          %p657 = pneg %p190
        $region110: #{tpu_custom_call.1} parent=87 // pred_check_branch
          %659 = sbr.rel (%p657) target = $region112
        $region111: #{tpu_custom_call.1} parent=87 // pred_region
          %660 = dma.done [#allocation14], 512
        $region112: #{tpu_custom_call.1} parent=87 // pred_fallthru
          _
        // Predicated region
        $region113: #{tpu_custom_call.1} parent=87 // pred_check
          %p661 = pneg %p211
        $region114: #{tpu_custom_call.1} parent=87 // pred_check_branch
          %663 = sbr.rel (%p661) target = $region116
        $region115: #{tpu_custom_call.1} parent=87 // pred_region
          %664 = dma.done [#allocation14], 512
        $region116: #{tpu_custom_call.1} parent=87 // pred_fallthru
          _
        // Predicated region
        $region117: #{tpu_custom_call.1} parent=87 // pred_check
          %p665 = pneg %p379
        $region118: #{tpu_custom_call.1} parent=87 // pred_check_branch
          %667 = sbr.rel (%p665) target = $region120
        $region119: #{tpu_custom_call.1} parent=87 // pred_region
          %668 = dma.done [#allocation17], 512
        $region120: #{tpu_custom_call.1} parent=87 // pred_fallthru
          _
        %s669 = sand.u32 %s62, 1
        %s670 = scalar_lea.sflag [#allocation5], %s669
        %s671 = sand.u32 %s62, 1
        %s672 = smul.addr %s671, 8
        %s673 = scalar_lea.vmem [#allocation4], %s672
        %p674 = pneg %p75
        %p675 = pneg %p72
        %s676 = sand.u32 %s40, 1
        %s677 = scalar_lea.sflag [#allocation8], %s676
        %s678 = sand.u32 %s88, 1
        %s679 = smul.addr %s678, 4
        %s680 = scalar_lea.vmem [#allocation7], %s679
        %p681 = pneg %p101
        %p682 = pneg %p98
        %s683 = sand.u32 %s40, 1
        %s684 = scalar_lea.sflag [#allocation8], %s683
        %s685 = sand.u32 %s114, 1
        %s686 = smul.addr %s685, 4
        %s687 = scalar_lea.vmem [#allocation9], %s686
        %p688 = pneg %p127
        %p689 = pneg %p124
        %p690 = pneg %p148
        %p691 = pneg %p145
        %p692 = pneg %p169
        %p693 = pneg %p166
        %p694 = pneg %p190
        %p695 = pneg %p187
        %p696 = pneg %p211
        %p697 = pneg %p208
        %p698 = pneg %p232
        %p699 = pneg %p229
        %p700 = pneg %p253
        %p701 = pneg %p250
        %p702 = pneg %p274
        %p703 = pneg %p271
        %p704 = pneg %p295
        %p705 = pneg %p292
        %p706 = pneg %p316
        %p707 = pneg %p313
        %p708 = pneg %p337
        %p709 = pneg %p334
        %p710 = pneg %p358
        %p711 = pneg %p355
        %p712 = pneg %p379
        %p713 = pneg %p376
        %p714 = pneg %p400
        %p715 = pneg %p397
        %p716 = pneg %p421
        %p717 = pneg %p418
        %p718 = pneg %p449
        %p719 = pneg %p446
        %s720 = sand.u32 %s436, 1
        %s721 = scalar_lea.sflag [#allocation6], %s720
        %s722 = sand.u32 %s436, 1
        %s723 = smul.addr %s722, 8
        %s724 = scalar_lea.vmem [#allocation18], %s723
        %p726 = scmp.eq.s32.totalorder %s45, 0
        // Predicated region
        $region121: #{tpu_custom_call.1} parent=87 // pred_check
          %p727 = pneg %p726
        $region122: #{tpu_custom_call.1} parent=87 // pred_check_branch
          %729 = sbr.rel (%p727) target = $region124
        $region123: #{tpu_custom_call.1} parent=87 // pred_region
          %v730 = vld [vmem:[%s635] sm:$0xf]
          %v731 = vld [vmem:[%s644] sm:$0xf]
          %v732 = vld [vmem:[#allocation12] sm:$0xf]
          %v733 = vld [vmem:[#allocation12 + $0x4] sm:$0xf]
          %v734 = vld [vmem:[#allocation12 + $0x8] sm:$0xf]
          %v735 = vld [vmem:[#allocation12 + $0xc] sm:$0xf]
          %v736 = vld [vmem:[#allocation12 + $0x10] sm:$0xf]
          %v737 = vld [vmem:[#allocation12 + $0x14] sm:$0xf]
          %v738 = vld [vmem:[#allocation12 + $0x18] sm:$0xf]
          %v739 = vld [vmem:[#allocation12 + $0x1c] sm:$0xf]
          %v740 = vld [vmem:[%s8] sm:$0x1]
          %v742 = vlaneseq
          %v743 = vshrl.u32 %v742, 7
          %v744 = vsub.s32 0, %v743
          %v745 = vrot.slane %v740, %v744
          %v755 = vunpack.c.l.b16 %v732
          %v756 = vunpack.c.l.b16 %v733
          %v757 = vunpack.c.l.b16 %v734
          %v758 = vunpack.c.l.b16 %v735
          %v759 = vunpack.c.l.b16 %v736
          %v760 = vunpack.c.l.b16 %v737
          %v761 = vunpack.c.l.b16 %v738
          %v762 = vunpack.c.l.b16 %v739
          %v763 = vpack.c.b16 %v756, %v755
          %v764 = vpack.c.b16 %v758, %v757
          %v765 = vpack.c.b16 %v760, %v759
          %v766 = vpack.c.b16 %v762, %v761
          %vm771 = vcmask 523264
          %v773 = vsel %vm771, %v730, 0
          %775 = vmatprep.subr.bf16.mxu0 0
          %776 = vmatpush1.bf16.msra.mxu0 %v763
          %777 = vmatprep.subr.bf16.mxu0 0
          %778 = vmatpush1.bf16.msra.mxu0 %v764
          %779 = vmatprep.subr.bf16.mxu0 0
          %780 = vmatpush1.bf16.msra.mxu0 %v765
          %781 = vmatprep.subr.bf16.mxu0 0
          %782 = vmatpush1.bf16.msra.mxu0 %v766
          %783 = vmatprep.subr.bf16.mxu0 0
          %784 = vmatpush1.bf16.msra.mxu0 0
          %785 = vmatprep.subr.bf16.mxu0 0
          %786 = vmatpush1.bf16.msra.mxu0 0
          %787 = vmatprep.subr.bf16.mxu0 0
          %788 = vmatpush1.bf16.msra.mxu0 0
          %789 = vmatprep.subr.bf16.mxu0 0
          %790 = vmatpush1.bf16.msra.mxu0 0
          %791 = vmatprep.subr.bf16.mxu0 0
          %792 = vmatpush1.bf16.msra.mxu0 0
          %793 = vmatprep.subr.bf16.mxu0 0
          %794 = vmatpush1.bf16.msra.mxu0 0
          %795 = vmatprep.subr.bf16.mxu0 0
          %796 = vmatpush1.bf16.msra.mxu0 0
          %797 = vmatprep.subr.bf16.mxu0 0
          %798 = vmatpush1.bf16.msra.mxu0 0
          %799 = vmatprep.subr.bf16.mxu0 0
          %800 = vmatpush1.bf16.msra.mxu0 0
          %801 = vmatprep.subr.bf16.mxu0 0
          %802 = vmatpush1.bf16.msra.mxu0 0
          %803 = vmatprep.subr.bf16.mxu0 0
          %804 = vmatpush1.bf16.msra.mxu0 0
          %805 = vmatprep.subr.bf16.mxu0 0
          %806 = vmatpush1.bf16.msra.mxu0 0
          %807 = vmatprep.mubr.bf16.mxu0 0
          %808 = vmatmul.mubr.bf16.gmra.mrb[0].mxu0 %v773
          %v809 = vpop.f32.mrb[0].mxu0
          %v810 = vadd.f32 %v745, %v809
          %v811 = vpop.f32.mrb[0].mxu0
          %v812 = vpop.f32.mrb[0].mxu0
          %v813 = vpop.f32.mrb[0].mxu0
          %814 = vdwg.mxu0
          %v815 = vld [vmem:[#allocation13] sm:$0xf]
          %v816 = vld [vmem:[#allocation13 + $0x4] sm:$0xf]
          %v817 = vld [vmem:[#allocation13 + $0x8] sm:$0xf]
          %v818 = vld [vmem:[#allocation13 + $0xc] sm:$0xf]
          %v819 = vld [vmem:[#allocation13 + $0x10] sm:$0xf]
          %v820 = vld [vmem:[#allocation13 + $0x14] sm:$0xf]
          %v821 = vld [vmem:[#allocation13 + $0x18] sm:$0xf]
          %v822 = vld [vmem:[#allocation13 + $0x1c] sm:$0xf]
          %v823 = vld [vmem:[%s9] sm:$0x1]
          %v825 = vlaneseq
          %v826 = vshrl.u32 %v825, 7
          %v827 = vsub.s32 0, %v826
          %v828 = vrot.slane %v823, %v827
          %v838 = vunpack.c.l.b16 %v815
          %v839 = vunpack.c.l.b16 %v816
          %v840 = vunpack.c.l.b16 %v817
          %v841 = vunpack.c.l.b16 %v818
          %v842 = vunpack.c.l.b16 %v819
          %v843 = vunpack.c.l.b16 %v820
          %v844 = vunpack.c.l.b16 %v821
          %v845 = vunpack.c.l.b16 %v822
          %v846 = vpack.c.b16 %v839, %v838
          %v847 = vpack.c.b16 %v841, %v840
          %v848 = vpack.c.b16 %v843, %v842
          %v849 = vpack.c.b16 %v845, %v844
          %v855 = vsel %vm771, %v731, 0
          %857 = vmatprep.subr.bf16.mxu0 0
          %858 = vmatpush1.bf16.msra.mxu0 %v846
          %859 = vmatprep.subr.bf16.mxu0 0
          %860 = vmatpush1.bf16.msra.mxu0 %v847
          %861 = vmatprep.subr.bf16.mxu0 0
          %862 = vmatpush1.bf16.msra.mxu0 %v848
          %863 = vmatprep.subr.bf16.mxu0 0
          %864 = vmatpush1.bf16.msra.mxu0 %v849
          %865 = vmatprep.subr.bf16.mxu0 0
          %866 = vmatpush1.bf16.msra.mxu0 0
          %867 = vmatprep.subr.bf16.mxu0 0
          %868 = vmatpush1.bf16.msra.mxu0 0
          %869 = vmatprep.subr.bf16.mxu0 0
          %870 = vmatpush1.bf16.msra.mxu0 0
          %871 = vmatprep.subr.bf16.mxu0 0
          %872 = vmatpush1.bf16.msra.mxu0 0
          %873 = vmatprep.subr.bf16.mxu0 0
          %874 = vmatpush1.bf16.msra.mxu0 0
          %875 = vmatprep.subr.bf16.mxu0 0
          %876 = vmatpush1.bf16.msra.mxu0 0
          %877 = vmatprep.subr.bf16.mxu0 0
          %878 = vmatpush1.bf16.msra.mxu0 0
          %879 = vmatprep.subr.bf16.mxu0 0
          %880 = vmatpush1.bf16.msra.mxu0 0
          %881 = vmatprep.subr.bf16.mxu0 0
          %882 = vmatpush1.bf16.msra.mxu0 0
          %883 = vmatprep.subr.bf16.mxu0 0
          %884 = vmatpush1.bf16.msra.mxu0 0
          %885 = vmatprep.subr.bf16.mxu0 0
          %886 = vmatpush1.bf16.msra.mxu0 0
          %887 = vmatprep.subr.bf16.mxu0 0
          %888 = vmatpush1.bf16.msra.mxu0 0
          %889 = vmatprep.mubr.bf16.mxu0 0
          %890 = vmatmul.mubr.bf16.gmra.mrb[0].mxu0 %v855
          %v891 = vpop.f32.mrb[0].mxu0
          %v892 = vadd.f32 %v828, %v891
          %v893 = vpop.f32.mrb[0].mxu0
          %v894 = vpop.f32.mrb[0].mxu0
          %v895 = vpop.f32.mrb[0].mxu0
          %896 = vdwg.mxu0
          %v897 = vpack.c.bf16 %v810, %v810
          %vm898 = vcmask 519168
          %899 = vst.msk [vmem:[#allocation2] sm:$0xf] %vm898, %v897
          %v900 = vpack.c.bf16 %v892, %v892
          %901 = vst.msk [vmem:[#allocation3] sm:$0xf] %vm898, %v900
        $region124: #{tpu_custom_call.1} parent=87 // pred_fallthru
          _
        %v902 = vld [vmem:[%s626] sm:$0xff]
        %v903 = vpack.c.bf16 %v902, %v902
        %v904 = vld [vmem:[#allocation10] sm:$0xf]
        %v905 = vld [vmem:[#allocation10 + $0x4] sm:$0xf]
        %v906 = vld [vmem:[#allocation10 + $0x8] sm:$0xf]
        %v907 = vld [vmem:[#allocation10 + $0xc] sm:$0xf]
        %v908 = vld [vmem:[#allocation10 + $0x10] sm:$0xf]
        %v909 = vld [vmem:[#allocation10 + $0x14] sm:$0xf]
        %v910 = vld [vmem:[#allocation10 + $0x18] sm:$0xf]
        %v911 = vld [vmem:[#allocation10 + $0x1c] sm:$0xf]
        %v912 = vld [vmem:[%s7] sm:$0x1]
        %v914 = vlaneseq
        %v915 = vshrl.u32 %v914, 7
        %v916 = vsub.s32 0, %v915
        %v917 = vrot.slane %v912, %v916
        %v927 = vunpack.c.l.b16 %v904
        %v928 = vunpack.c.l.b16 %v905
        %v929 = vunpack.c.l.b16 %v906
        %v930 = vunpack.c.l.b16 %v907
        %v931 = vunpack.c.l.b16 %v908
        %v932 = vunpack.c.l.b16 %v909
        %v933 = vunpack.c.l.b16 %v910
        %v934 = vunpack.c.l.b16 %v911
        %v935 = vpack.c.b16 %v928, %v927
        %v936 = vpack.c.b16 %v930, %v929
        %v937 = vpack.c.b16 %v932, %v931
        %v938 = vpack.c.b16 %v934, %v933
        %vm943 = vcmask 523264
        %v945 = vsel %vm943, %v903, 0
        %947 = vmatprep.subr.bf16.mxu0 0
        %948 = vmatpush1.bf16.msra.mxu0 %v935
        %949 = vmatprep.subr.bf16.mxu0 0
        %950 = vmatpush1.bf16.msra.mxu0 %v936
        %951 = vmatprep.subr.bf16.mxu0 0
        %952 = vmatpush1.bf16.msra.mxu0 %v937
        %953 = vmatprep.subr.bf16.mxu0 0
        %954 = vmatpush1.bf16.msra.mxu0 %v938
        %955 = vmatprep.subr.bf16.mxu0 0
        %956 = vmatpush1.bf16.msra.mxu0 0
        %957 = vmatprep.subr.bf16.mxu0 0
        %958 = vmatpush1.bf16.msra.mxu0 0
        %959 = vmatprep.subr.bf16.mxu0 0
        %960 = vmatpush1.bf16.msra.mxu0 0
        %961 = vmatprep.subr.bf16.mxu0 0
        %962 = vmatpush1.bf16.msra.mxu0 0
        %963 = vmatprep.subr.bf16.mxu0 0
        %964 = vmatpush1.bf16.msra.mxu0 0
        %965 = vmatprep.subr.bf16.mxu0 0
        %966 = vmatpush1.bf16.msra.mxu0 0
        %967 = vmatprep.subr.bf16.mxu0 0
        %968 = vmatpush1.bf16.msra.mxu0 0
        %969 = vmatprep.subr.bf16.mxu0 0
        %970 = vmatpush1.bf16.msra.mxu0 0
        %971 = vmatprep.subr.bf16.mxu0 0
        %972 = vmatpush1.bf16.msra.mxu0 0
        %973 = vmatprep.subr.bf16.mxu0 0
        %974 = vmatpush1.bf16.msra.mxu0 0
        %975 = vmatprep.subr.bf16.mxu0 0
        %976 = vmatpush1.bf16.msra.mxu0 0
        %977 = vmatprep.subr.bf16.mxu0 0
        %978 = vmatpush1.bf16.msra.mxu0 0
        %979 = vmatprep.mubr.bf16.mxu0 0
        %980 = vmatmul.mubr.bf16.gmra.mrb[0].mxu0 %v945
        %v981 = vpop.f32.mrb[0].mxu0
        %v982 = vadd.f32 %v917, %v981
        %v983 = vpop.f32.mrb[0].mxu0
        %v984 = vpop.f32.mrb[0].mxu0
        %v985 = vpop.f32.mrb[0].mxu0
        %986 = vdwg.mxu0
        %v987 = vpack.c.bf16 %v982, %v982
        %v988 = vld [vmem:[#allocation2] sm:$0xf]
        %v989 = vld [vmem:[#allocation3] sm:$0xf]
        %v990 = vld [vmem:[%s10] sm:$0x1]
        %v992 = vlaneseq
        %v993 = vshrl.u32 %v992, 7
        %v994 = vsub.s32 0, %v993
        %v995 = vrot.slane %v990, %v994
        %vm997 = vcmask 64512
        %v999 = vsel %vm997, %v987, 0
        %v1002 = vsel %vm997, %v988, 0
        %1004 = vmatprep.subr.bf16.mxu0 0
        %1005 = vmatpush1.bf16.xpose.msra.mxu0 %v1002
        %1006 = vmatprep.subr.bf16.mxu0 0
        %1007 = vmatpush1.bf16.xpose.msra.mxu0 0
        %1008 = vmatprep.subr.bf16.mxu0 0
        %1009 = vmatpush1.bf16.xpose.msra.mxu0 0
        %1010 = vmatprep.subr.bf16.mxu0 0
        %1011 = vmatpush1.bf16.xpose.msra.mxu0 0
        %1012 = vmatprep.subr.bf16.mxu0 0
        %1013 = vmatpush1.bf16.xpose.msra.mxu0 0
        %1014 = vmatprep.subr.bf16.mxu0 0
        %1015 = vmatpush1.bf16.xpose.msra.mxu0 0
        %1016 = vmatprep.subr.bf16.mxu0 0
        %1017 = vmatpush1.bf16.xpose.msra.mxu0 0
        %1018 = vmatprep.subr.bf16.mxu0 0
        %1019 = vmatpush1.bf16.xpose.msra.mxu0 0
        %1020 = vmatprep.subr.bf16.mxu0 0
        %1021 = vmatpush1.bf16.xpose.msra.mxu0 0
        %1022 = vmatprep.subr.bf16.mxu0 0
        %1023 = vmatpush1.bf16.xpose.msra.mxu0 0
        %1024 = vmatprep.subr.bf16.mxu0 0
        %1025 = vmatpush1.bf16.xpose.msra.mxu0 0
        %1026 = vmatprep.subr.bf16.mxu0 0
        %1027 = vmatpush1.bf16.xpose.msra.mxu0 0
        %1028 = vmatprep.subr.bf16.mxu0 0
        %1029 = vmatpush1.bf16.xpose.msra.mxu0 0
        %1030 = vmatprep.subr.bf16.mxu0 0
        %1031 = vmatpush1.bf16.xpose.msra.mxu0 0
        %1032 = vmatprep.subr.bf16.mxu0 0
        %1033 = vmatpush1.bf16.xpose.msra.mxu0 0
        %1034 = vmatprep.subr.bf16.mxu0 0
        %1035 = vmatpush1.bf16.xpose.msra.mxu0 0
        %1036 = vmatprep.mubr.bf16.mxu0 0
        %1037 = vmatmul.mubr.bf16.gmra.mrb[0].mxu0 %v999
        %v1038 = vpop.f32.mrb[0].mxu0
        %v1039 = vadd.f32 0.0, %v1038
        %v1040 = vpop.f32.mrb[0].mxu0
        %v1041 = vpop.f32.mrb[0].mxu0
        %v1042 = vpop.f32.mrb[0].mxu0
        %1043 = vdwg.mxu0
        %v1044 = vmul.f32 %v1039, 0.35355338
        %v1045 = vsel %vm997, %v1044, -inf
        %1046 = vmax.xlane.f32.xlu0 %v1045
        %v1047 = vpop.xlane.xlu0 %1046
        %v1048 = vsub.f32 %v1044, %v1047
        %v1049 = vmul.f32 %v1048, 1.442695
        %v1050 = vpow.pop %v1049
        %v1051 = vsel %vm997, %v1050, 0.0
        %1052 = vadd.xlane.f32.xlu0 %v1051
        %v1053 = vpop.xlane.xlu0 %1052
        %v1054 = vpack.c.bf16 %v1050, %v1050
        %v1056 = vsel %vm997, %v1054, 0
        %vm1058 = vcmask 1043456
        %v1060 = vsel %vm1058, %v989, 0
        %1062 = vmatprep.subr.bf16.mxu0 0
        %1063 = vmatpush1.bf16.msra.mxu0 %v1060
        %1064 = vmatprep.subr.bf16.mxu0 0
        %1065 = vmatpush1.bf16.msra.mxu0 0
        %1066 = vmatprep.subr.bf16.mxu0 0
        %1067 = vmatpush1.bf16.msra.mxu0 0
        %1068 = vmatprep.subr.bf16.mxu0 0
        %1069 = vmatpush1.bf16.msra.mxu0 0
        %1070 = vmatprep.subr.bf16.mxu0 0
        %1071 = vmatpush1.bf16.msra.mxu0 0
        %1072 = vmatprep.subr.bf16.mxu0 0
        %1073 = vmatpush1.bf16.msra.mxu0 0
        %1074 = vmatprep.subr.bf16.mxu0 0
        %1075 = vmatpush1.bf16.msra.mxu0 0
        %1076 = vmatprep.subr.bf16.mxu0 0
        %1077 = vmatpush1.bf16.msra.mxu0 0
        %1078 = vmatprep.subr.bf16.mxu0 0
        %1079 = vmatpush1.bf16.msra.mxu0 0
        %1080 = vmatprep.subr.bf16.mxu0 0
        %1081 = vmatpush1.bf16.msra.mxu0 0
        %1082 = vmatprep.subr.bf16.mxu0 0
        %1083 = vmatpush1.bf16.msra.mxu0 0
        %1084 = vmatprep.subr.bf16.mxu0 0
        %1085 = vmatpush1.bf16.msra.mxu0 0
        %1086 = vmatprep.subr.bf16.mxu0 0
        %1087 = vmatpush1.bf16.msra.mxu0 0
        %1088 = vmatprep.subr.bf16.mxu0 0
        %1089 = vmatpush1.bf16.msra.mxu0 0
        %1090 = vmatprep.subr.bf16.mxu0 0
        %1091 = vmatpush1.bf16.msra.mxu0 0
        %1092 = vmatprep.subr.bf16.mxu0 0
        %1093 = vmatpush1.bf16.msra.mxu0 0
        %1094 = vmatprep.mubr.bf16.mxu0 0
        %1095 = vmatmul.mubr.bf16.gmra.mrb[0].mxu0 %v1056
        %v1096 = vpop.f32.mrb[0].mxu0
        %v1097 = vadd.f32 0.0, %v1096
        %v1098 = vpop.f32.mrb[0].mxu0
        %v1099 = vpop.f32.mrb[0].mxu0
        %v1100 = vpop.f32.mrb[0].mxu0
        %1101 = vdwg.mxu0
        %v1102 = vrcp.pop %v1053
        %v1103 = vmul.f32 %v1097, %v1102
        %v1104 = vpack.c.bf16 %v1103, %v1103
        %v1105 = vld [vmem:[#allocation15] sm:$0xf]
        %v1107 = vsel %vm997, %v1104, 0
        %v1110 = vsel %vm1058, %v1105, 0
        %1112 = vmatprep.subr.bf16.mxu0 0
        %1113 = vmatpush1.bf16.msra.mxu0 %v1110
        %1114 = vmatprep.subr.bf16.mxu0 0
        %1115 = vmatpush1.bf16.msra.mxu0 0
        %1116 = vmatprep.subr.bf16.mxu0 0
        %1117 = vmatpush1.bf16.msra.mxu0 0
        %1118 = vmatprep.subr.bf16.mxu0 0
        %1119 = vmatpush1.bf16.msra.mxu0 0
        %1120 = vmatprep.subr.bf16.mxu0 0
        %1121 = vmatpush1.bf16.msra.mxu0 0
        %1122 = vmatprep.subr.bf16.mxu0 0
        %1123 = vmatpush1.bf16.msra.mxu0 0
        %1124 = vmatprep.subr.bf16.mxu0 0
        %1125 = vmatpush1.bf16.msra.mxu0 0
        %1126 = vmatprep.subr.bf16.mxu0 0
        %1127 = vmatpush1.bf16.msra.mxu0 0
        %1128 = vmatprep.subr.bf16.mxu0 0
        %1129 = vmatpush1.bf16.msra.mxu0 0
        %1130 = vmatprep.subr.bf16.mxu0 0
        %1131 = vmatpush1.bf16.msra.mxu0 0
        %1132 = vmatprep.subr.bf16.mxu0 0
        %1133 = vmatpush1.bf16.msra.mxu0 0
        %1134 = vmatprep.subr.bf16.mxu0 0
        %1135 = vmatpush1.bf16.msra.mxu0 0
        %1136 = vmatprep.subr.bf16.mxu0 0
        %1137 = vmatpush1.bf16.msra.mxu0 0
        %1138 = vmatprep.subr.bf16.mxu0 0
        %1139 = vmatpush1.bf16.msra.mxu0 0
        %1140 = vmatprep.subr.bf16.mxu0 0
        %1141 = vmatpush1.bf16.msra.mxu0 0
        %1142 = vmatprep.subr.bf16.mxu0 0
        %1143 = vmatpush1.bf16.msra.mxu0 0
        %1144 = vmatprep.mubr.bf16.mxu0 0
        %1145 = vmatmul.mubr.bf16.gmra.mrb[0].mxu0 %v1107
        %v1146 = vpop.f32.mrb[0].mxu0
        %v1147 = vadd.f32 0.0, %v1146
        %v1148 = vpop.f32.mrb[0].mxu0
        %v1149 = vpop.f32.mrb[0].mxu0
        %v1150 = vpop.f32.mrb[0].mxu0
        %1151 = vdwg.mxu0
        %v1152 = vadd.f32 %v995, %v1147
        %1154 = vrot.lane.b32.xlu0 %v987, 120
        %v1155 = vpop.permute.xlu0 %1154
        %v1157 = vunpack.c.l.b16 %v988
        %v1158 = vpack.c.b16 %v1157, %v1157
        %1159 = vrot.lane.b32.xlu0 %v1158, 120
        %v1160 = vpop.permute.xlu0 %1159
        %v1162 = vsel %vm997, %v1155, 0
        %v1165 = vsel %vm997, %v1160, 0
        %1167 = vmatprep.subr.bf16.mxu0 0
        %1168 = vmatpush1.bf16.xpose.msra.mxu0 %v1165
        %1169 = vmatprep.subr.bf16.mxu0 0
        %1170 = vmatpush1.bf16.xpose.msra.mxu0 0
        %1171 = vmatprep.subr.bf16.mxu0 0
        %1172 = vmatpush1.bf16.xpose.msra.mxu0 0
        %1173 = vmatprep.subr.bf16.mxu0 0
        %1174 = vmatpush1.bf16.xpose.msra.mxu0 0
        %1175 = vmatprep.subr.bf16.mxu0 0
        %1176 = vmatpush1.bf16.xpose.msra.mxu0 0
        %1177 = vmatprep.subr.bf16.mxu0 0
        %1178 = vmatpush1.bf16.xpose.msra.mxu0 0
        %1179 = vmatprep.subr.bf16.mxu0 0
        %1180 = vmatpush1.bf16.xpose.msra.mxu0 0
        %1181 = vmatprep.subr.bf16.mxu0 0
        %1182 = vmatpush1.bf16.xpose.msra.mxu0 0
        %1183 = vmatprep.subr.bf16.mxu0 0
        %1184 = vmatpush1.bf16.xpose.msra.mxu0 0
        %1185 = vmatprep.subr.bf16.mxu0 0
        %1186 = vmatpush1.bf16.xpose.msra.mxu0 0
        %1187 = vmatprep.subr.bf16.mxu0 0
        %1188 = vmatpush1.bf16.xpose.msra.mxu0 0
        %1189 = vmatprep.subr.bf16.mxu0 0
        %1190 = vmatpush1.bf16.xpose.msra.mxu0 0
        %1191 = vmatprep.subr.bf16.mxu0 0
        %1192 = vmatpush1.bf16.xpose.msra.mxu0 0
        %1193 = vmatprep.subr.bf16.mxu0 0
        %1194 = vmatpush1.bf16.xpose.msra.mxu0 0
        %1195 = vmatprep.subr.bf16.mxu0 0
        %1196 = vmatpush1.bf16.xpose.msra.mxu0 0
        %1197 = vmatprep.subr.bf16.mxu0 0
        %1198 = vmatpush1.bf16.xpose.msra.mxu0 0
        %1199 = vmatprep.mubr.bf16.mxu0 0
        %1200 = vmatmul.mubr.bf16.gmra.mrb[0].mxu0 %v1162
        %v1201 = vpop.f32.mrb[0].mxu0
        %v1202 = vadd.f32 0.0, %v1201
        %v1203 = vpop.f32.mrb[0].mxu0
        %v1204 = vpop.f32.mrb[0].mxu0
        %v1205 = vpop.f32.mrb[0].mxu0
        %1206 = vdwg.mxu0
        %v1207 = vmul.f32 %v1202, 0.35355338
        %v1208 = vsel %vm997, %v1207, -inf
        %1209 = vmax.xlane.f32.xlu0 %v1208
        %v1210 = vpop.xlane.xlu0 %1209
        %v1211 = vsub.f32 %v1207, %v1210
        %v1212 = vmul.f32 %v1211, 1.442695
        %v1213 = vpow.pop %v1212
        %v1214 = vsel %vm997, %v1213, 0.0
        %1215 = vadd.xlane.f32.xlu0 %v1214
        %v1216 = vpop.xlane.xlu0 %1215
        %v1217 = vpack.c.bf16 %v1213, %v1213
        %v1219 = vunpack.c.l.b16 %v989
        %v1220 = vpack.c.b16 %v1219, %v1219
        %1221 = vrot.lane.b32.xlu0 %v1220, 120
        %v1222 = vpop.permute.xlu0 %1221
        %v1224 = vsel %vm997, %v1217, 0
        %v1227 = vsel %vm1058, %v1222, 0
        %1229 = vmatprep.subr.bf16.mxu0 0
        %1230 = vmatpush1.bf16.msra.mxu0 %v1227
        %1231 = vmatprep.subr.bf16.mxu0 0
        %1232 = vmatpush1.bf16.msra.mxu0 0
        %1233 = vmatprep.subr.bf16.mxu0 0
        %1234 = vmatpush1.bf16.msra.mxu0 0
        %1235 = vmatprep.subr.bf16.mxu0 0
        %1236 = vmatpush1.bf16.msra.mxu0 0
        %1237 = vmatprep.subr.bf16.mxu0 0
        %1238 = vmatpush1.bf16.msra.mxu0 0
        %1239 = vmatprep.subr.bf16.mxu0 0
        %1240 = vmatpush1.bf16.msra.mxu0 0
        %1241 = vmatprep.subr.bf16.mxu0 0
        %1242 = vmatpush1.bf16.msra.mxu0 0
        %1243 = vmatprep.subr.bf16.mxu0 0
        %1244 = vmatpush1.bf16.msra.mxu0 0
        %1245 = vmatprep.subr.bf16.mxu0 0
        %1246 = vmatpush1.bf16.msra.mxu0 0
        %1247 = vmatprep.subr.bf16.mxu0 0
        %1248 = vmatpush1.bf16.msra.mxu0 0
        %1249 = vmatprep.subr.bf16.mxu0 0
        %1250 = vmatpush1.bf16.msra.mxu0 0
        %1251 = vmatprep.subr.bf16.mxu0 0
        %1252 = vmatpush1.bf16.msra.mxu0 0
        %1253 = vmatprep.subr.bf16.mxu0 0
        %1254 = vmatpush1.bf16.msra.mxu0 0
        %1255 = vmatprep.subr.bf16.mxu0 0
        %1256 = vmatpush1.bf16.msra.mxu0 0
        %1257 = vmatprep.subr.bf16.mxu0 0
        %1258 = vmatpush1.bf16.msra.mxu0 0
        %1259 = vmatprep.subr.bf16.mxu0 0
        %1260 = vmatpush1.bf16.msra.mxu0 0
        %1261 = vmatprep.mubr.bf16.mxu0 0
        %1262 = vmatmul.mubr.bf16.gmra.mrb[0].mxu0 %v1224
        %v1263 = vpop.f32.mrb[0].mxu0
        %v1264 = vadd.f32 0.0, %v1263
        %v1265 = vpop.f32.mrb[0].mxu0
        %v1266 = vpop.f32.mrb[0].mxu0
        %v1267 = vpop.f32.mrb[0].mxu0
        %1268 = vdwg.mxu0
        %v1269 = vrcp.pop %v1216
        %v1270 = vmul.f32 %v1264, %v1269
        %v1271 = vpack.c.bf16 %v1270, %v1270
        %v1272 = vld [vmem:[#allocation15 + $0x4] sm:$0xf]
        %v1274 = vsel %vm997, %v1271, 0
        %v1277 = vsel %vm1058, %v1272, 0
        %1279 = vmatprep.subr.bf16.mxu0 0
        %1280 = vmatpush1.bf16.msra.mxu0 %v1277
        %1281 = vmatprep.subr.bf16.mxu0 0
        %1282 = vmatpush1.bf16.msra.mxu0 0
        %1283 = vmatprep.subr.bf16.mxu0 0
        %1284 = vmatpush1.bf16.msra.mxu0 0
        %1285 = vmatprep.subr.bf16.mxu0 0
        %1286 = vmatpush1.bf16.msra.mxu0 0
        %1287 = vmatprep.subr.bf16.mxu0 0
        %1288 = vmatpush1.bf16.msra.mxu0 0
        %1289 = vmatprep.subr.bf16.mxu0 0
        %1290 = vmatpush1.bf16.msra.mxu0 0
        %1291 = vmatprep.subr.bf16.mxu0 0
        %1292 = vmatpush1.bf16.msra.mxu0 0
        %1293 = vmatprep.subr.bf16.mxu0 0
        %1294 = vmatpush1.bf16.msra.mxu0 0
        %1295 = vmatprep.subr.bf16.mxu0 0
        %1296 = vmatpush1.bf16.msra.mxu0 0
        %1297 = vmatprep.subr.bf16.mxu0 0
        %1298 = vmatpush1.bf16.msra.mxu0 0
        %1299 = vmatprep.subr.bf16.mxu0 0
        %1300 = vmatpush1.bf16.msra.mxu0 0
        %1301 = vmatprep.subr.bf16.mxu0 0
        %1302 = vmatpush1.bf16.msra.mxu0 0
        %1303 = vmatprep.subr.bf16.mxu0 0
        %1304 = vmatpush1.bf16.msra.mxu0 0
        %1305 = vmatprep.subr.bf16.mxu0 0
        %1306 = vmatpush1.bf16.msra.mxu0 0
        %1307 = vmatprep.subr.bf16.mxu0 0
        %1308 = vmatpush1.bf16.msra.mxu0 0
        %1309 = vmatprep.subr.bf16.mxu0 0
        %1310 = vmatpush1.bf16.msra.mxu0 0
        %1311 = vmatprep.mubr.bf16.mxu0 0
        %1312 = vmatmul.mubr.bf16.gmra.mrb[0].mxu0 %v1274
        %v1313 = vpop.f32.mrb[0].mxu0
        %v1314 = vadd.f32 0.0, %v1313
        %v1315 = vpop.f32.mrb[0].mxu0
        %v1316 = vpop.f32.mrb[0].mxu0
        %v1317 = vpop.f32.mrb[0].mxu0
        %1318 = vdwg.mxu0
        %v1319 = vadd.f32 %v1152, %v1314
        %1320 = vrot.lane.b32.xlu0 %v987, 112
        %v1321 = vpop.permute.xlu0 %1320
        %1322 = vrot.lane.b32.xlu0 %v1158, 112
        %v1323 = vpop.permute.xlu0 %1322
        %v1325 = vsel %vm997, %v1321, 0
        %v1328 = vsel %vm997, %v1323, 0
        %1330 = vmatprep.subr.bf16.mxu0 0
        %1331 = vmatpush1.bf16.xpose.msra.mxu0 %v1328
        %1332 = vmatprep.subr.bf16.mxu0 0
        %1333 = vmatpush1.bf16.xpose.msra.mxu0 0
        %1334 = vmatprep.subr.bf16.mxu0 0
        %1335 = vmatpush1.bf16.xpose.msra.mxu0 0
        %1336 = vmatprep.subr.bf16.mxu0 0
        %1337 = vmatpush1.bf16.xpose.msra.mxu0 0
        %1338 = vmatprep.subr.bf16.mxu0 0
        %1339 = vmatpush1.bf16.xpose.msra.mxu0 0
        %1340 = vmatprep.subr.bf16.mxu0 0
        %1341 = vmatpush1.bf16.xpose.msra.mxu0 0
        %1342 = vmatprep.subr.bf16.mxu0 0
        %1343 = vmatpush1.bf16.xpose.msra.mxu0 0
        %1344 = vmatprep.subr.bf16.mxu0 0
        %1345 = vmatpush1.bf16.xpose.msra.mxu0 0
        %1346 = vmatprep.subr.bf16.mxu0 0
        %1347 = vmatpush1.bf16.xpose.msra.mxu0 0
        %1348 = vmatprep.subr.bf16.mxu0 0
        %1349 = vmatpush1.bf16.xpose.msra.mxu0 0
        %1350 = vmatprep.subr.bf16.mxu0 0
        %1351 = vmatpush1.bf16.xpose.msra.mxu0 0
        %1352 = vmatprep.subr.bf16.mxu0 0
        %1353 = vmatpush1.bf16.xpose.msra.mxu0 0
        %1354 = vmatprep.subr.bf16.mxu0 0
        %1355 = vmatpush1.bf16.xpose.msra.mxu0 0
        %1356 = vmatprep.subr.bf16.mxu0 0
        %1357 = vmatpush1.bf16.xpose.msra.mxu0 0
        %1358 = vmatprep.subr.bf16.mxu0 0
        %1359 = vmatpush1.bf16.xpose.msra.mxu0 0
        %1360 = vmatprep.subr.bf16.mxu0 0
        %1361 = vmatpush1.bf16.xpose.msra.mxu0 0
        %1362 = vmatprep.mubr.bf16.mxu0 0
        %1363 = vmatmul.mubr.bf16.gmra.mrb[0].mxu0 %v1325
        %v1364 = vpop.f32.mrb[0].mxu0
        %v1365 = vadd.f32 0.0, %v1364
        %v1366 = vpop.f32.mrb[0].mxu0
        %v1367 = vpop.f32.mrb[0].mxu0
        %v1368 = vpop.f32.mrb[0].mxu0
        %1369 = vdwg.mxu0
        %v1370 = vmul.f32 %v1365, 0.35355338
        %v1371 = vsel %vm997, %v1370, -inf
        %1372 = vmax.xlane.f32.xlu0 %v1371
        %v1373 = vpop.xlane.xlu0 %1372
        %v1374 = vsub.f32 %v1370, %v1373
        %v1375 = vmul.f32 %v1374, 1.442695
        %v1376 = vpow.pop %v1375
        %v1377 = vsel %vm997, %v1376, 0.0
        %1378 = vadd.xlane.f32.xlu0 %v1377
        %v1379 = vpop.xlane.xlu0 %1378
        %v1380 = vpack.c.bf16 %v1376, %v1376
        %1381 = vrot.lane.b32.xlu0 %v1220, 112
        %v1382 = vpop.permute.xlu0 %1381
        %v1384 = vsel %vm997, %v1380, 0
        %v1387 = vsel %vm1058, %v1382, 0
        %1389 = vmatprep.subr.bf16.mxu0 0
        %1390 = vmatpush1.bf16.msra.mxu0 %v1387
        %1391 = vmatprep.subr.bf16.mxu0 0
        %1392 = vmatpush1.bf16.msra.mxu0 0
        %1393 = vmatprep.subr.bf16.mxu0 0
        %1394 = vmatpush1.bf16.msra.mxu0 0
        %1395 = vmatprep.subr.bf16.mxu0 0
        %1396 = vmatpush1.bf16.msra.mxu0 0
        %1397 = vmatprep.subr.bf16.mxu0 0
        %1398 = vmatpush1.bf16.msra.mxu0 0
        %1399 = vmatprep.subr.bf16.mxu0 0
        %1400 = vmatpush1.bf16.msra.mxu0 0
        %1401 = vmatprep.subr.bf16.mxu0 0
        %1402 = vmatpush1.bf16.msra.mxu0 0
        %1403 = vmatprep.subr.bf16.mxu0 0
        %1404 = vmatpush1.bf16.msra.mxu0 0
        %1405 = vmatprep.subr.bf16.mxu0 0
        %1406 = vmatpush1.bf16.msra.mxu0 0
        %1407 = vmatprep.subr.bf16.mxu0 0
        %1408 = vmatpush1.bf16.msra.mxu0 0
        %1409 = vmatprep.subr.bf16.mxu0 0
        %1410 = vmatpush1.bf16.msra.mxu0 0
        %1411 = vmatprep.subr.bf16.mxu0 0
        %1412 = vmatpush1.bf16.msra.mxu0 0
        %1413 = vmatprep.subr.bf16.mxu0 0
        %1414 = vmatpush1.bf16.msra.mxu0 0
        %1415 = vmatprep.subr.bf16.mxu0 0
        %1416 = vmatpush1.bf16.msra.mxu0 0
        %1417 = vmatprep.subr.bf16.mxu0 0
        %1418 = vmatpush1.bf16.msra.mxu0 0
        %1419 = vmatprep.subr.bf16.mxu0 0
        %1420 = vmatpush1.bf16.msra.mxu0 0
        %1421 = vmatprep.mubr.bf16.mxu0 0
        %1422 = vmatmul.mubr.bf16.gmra.mrb[0].mxu0 %v1384
        %v1423 = vpop.f32.mrb[0].mxu0
        %v1424 = vadd.f32 0.0, %v1423
        %v1425 = vpop.f32.mrb[0].mxu0
        %v1426 = vpop.f32.mrb[0].mxu0
        %v1427 = vpop.f32.mrb[0].mxu0
        %1428 = vdwg.mxu0
        %v1429 = vrcp.pop %v1379
        %v1430 = vmul.f32 %v1424, %v1429
        %v1431 = vpack.c.bf16 %v1430, %v1430
        %v1432 = vld [vmem:[#allocation15 + $0x8] sm:$0xf]
        %v1434 = vsel %vm997, %v1431, 0
        %v1437 = vsel %vm1058, %v1432, 0
        %1439 = vmatprep.subr.bf16.mxu0 0
        %1440 = vmatpush1.bf16.msra.mxu0 %v1437
        %1441 = vmatprep.subr.bf16.mxu0 0
        %1442 = vmatpush1.bf16.msra.mxu0 0
        %1443 = vmatprep.subr.bf16.mxu0 0
        %1444 = vmatpush1.bf16.msra.mxu0 0
        %1445 = vmatprep.subr.bf16.mxu0 0
        %1446 = vmatpush1.bf16.msra.mxu0 0
        %1447 = vmatprep.subr.bf16.mxu0 0
        %1448 = vmatpush1.bf16.msra.mxu0 0
        %1449 = vmatprep.subr.bf16.mxu0 0
        %1450 = vmatpush1.bf16.msra.mxu0 0
        %1451 = vmatprep.subr.bf16.mxu0 0
        %1452 = vmatpush1.bf16.msra.mxu0 0
        %1453 = vmatprep.subr.bf16.mxu0 0
        %1454 = vmatpush1.bf16.msra.mxu0 0
        %1455 = vmatprep.subr.bf16.mxu0 0
        %1456 = vmatpush1.bf16.msra.mxu0 0
        %1457 = vmatprep.subr.bf16.mxu0 0
        %1458 = vmatpush1.bf16.msra.mxu0 0
        %1459 = vmatprep.subr.bf16.mxu0 0
        %1460 = vmatpush1.bf16.msra.mxu0 0
        %1461 = vmatprep.subr.bf16.mxu0 0
        %1462 = vmatpush1.bf16.msra.mxu0 0
        %1463 = vmatprep.subr.bf16.mxu0 0
        %1464 = vmatpush1.bf16.msra.mxu0 0
        %1465 = vmatprep.subr.bf16.mxu0 0
        %1466 = vmatpush1.bf16.msra.mxu0 0
        %1467 = vmatprep.subr.bf16.mxu0 0
        %1468 = vmatpush1.bf16.msra.mxu0 0
        %1469 = vmatprep.subr.bf16.mxu0 0
        %1470 = vmatpush1.bf16.msra.mxu0 0
        %1471 = vmatprep.mubr.bf16.mxu0 0
        %1472 = vmatmul.mubr.bf16.gmra.mrb[0].mxu0 %v1434
        %v1473 = vpop.f32.mrb[0].mxu0
        %v1474 = vadd.f32 0.0, %v1473
        %v1475 = vpop.f32.mrb[0].mxu0
        %v1476 = vpop.f32.mrb[0].mxu0
        %v1477 = vpop.f32.mrb[0].mxu0
        %1478 = vdwg.mxu0
        %v1479 = vadd.f32 %v1319, %v1474
        %1480 = vrot.lane.b32.xlu0 %v987, 104
        %v1481 = vpop.permute.xlu0 %1480
        %1482 = vrot.lane.b32.xlu0 %v1158, 104
        %v1483 = vpop.permute.xlu0 %1482
        %v1485 = vsel %vm997, %v1481, 0
        %v1488 = vsel %vm997, %v1483, 0
        %1490 = vmatprep.subr.bf16.mxu0 0
        %1491 = vmatpush1.bf16.xpose.msra.mxu0 %v1488
        %1492 = vmatprep.subr.bf16.mxu0 0
        %1493 = vmatpush1.bf16.xpose.msra.mxu0 0
        %1494 = vmatprep.subr.bf16.mxu0 0
        %1495 = vmatpush1.bf16.xpose.msra.mxu0 0
        %1496 = vmatprep.subr.bf16.mxu0 0
        %1497 = vmatpush1.bf16.xpose.msra.mxu0 0
        %1498 = vmatprep.subr.bf16.mxu0 0
        %1499 = vmatpush1.bf16.xpose.msra.mxu0 0
        %1500 = vmatprep.subr.bf16.mxu0 0
        %1501 = vmatpush1.bf16.xpose.msra.mxu0 0
        %1502 = vmatprep.subr.bf16.mxu0 0
        %1503 = vmatpush1.bf16.xpose.msra.mxu0 0
        %1504 = vmatprep.subr.bf16.mxu0 0
        %1505 = vmatpush1.bf16.xpose.msra.mxu0 0
        %1506 = vmatprep.subr.bf16.mxu0 0
        %1507 = vmatpush1.bf16.xpose.msra.mxu0 0
        %1508 = vmatprep.subr.bf16.mxu0 0
        %1509 = vmatpush1.bf16.xpose.msra.mxu0 0
        %1510 = vmatprep.subr.bf16.mxu0 0
        %1511 = vmatpush1.bf16.xpose.msra.mxu0 0
        %1512 = vmatprep.subr.bf16.mxu0 0
        %1513 = vmatpush1.bf16.xpose.msra.mxu0 0
        %1514 = vmatprep.subr.bf16.mxu0 0
        %1515 = vmatpush1.bf16.xpose.msra.mxu0 0
        %1516 = vmatprep.subr.bf16.mxu0 0
        %1517 = vmatpush1.bf16.xpose.msra.mxu0 0
        %1518 = vmatprep.subr.bf16.mxu0 0
        %1519 = vmatpush1.bf16.xpose.msra.mxu0 0
        %1520 = vmatprep.subr.bf16.mxu0 0
        %1521 = vmatpush1.bf16.xpose.msra.mxu0 0
        %1522 = vmatprep.mubr.bf16.mxu0 0
        %1523 = vmatmul.mubr.bf16.gmra.mrb[0].mxu0 %v1485
        %v1524 = vpop.f32.mrb[0].mxu0
        %v1525 = vadd.f32 0.0, %v1524
        %v1526 = vpop.f32.mrb[0].mxu0
        %v1527 = vpop.f32.mrb[0].mxu0
        %v1528 = vpop.f32.mrb[0].mxu0
        %1529 = vdwg.mxu0
        %v1530 = vmul.f32 %v1525, 0.35355338
        %v1531 = vsel %vm997, %v1530, -inf
        %1532 = vmax.xlane.f32.xlu0 %v1531
        %v1533 = vpop.xlane.xlu0 %1532
        %v1534 = vsub.f32 %v1530, %v1533
        %v1535 = vmul.f32 %v1534, 1.442695
        %v1536 = vpow.pop %v1535
        %v1537 = vsel %vm997, %v1536, 0.0
        %1538 = vadd.xlane.f32.xlu0 %v1537
        %v1539 = vpop.xlane.xlu0 %1538
        %v1540 = vpack.c.bf16 %v1536, %v1536
        %1541 = vrot.lane.b32.xlu0 %v1220, 104
        %v1542 = vpop.permute.xlu0 %1541
        %v1544 = vsel %vm997, %v1540, 0
        %v1547 = vsel %vm1058, %v1542, 0
        %1549 = vmatprep.subr.bf16.mxu0 0
        %1550 = vmatpush1.bf16.msra.mxu0 %v1547
        %1551 = vmatprep.subr.bf16.mxu0 0
        %1552 = vmatpush1.bf16.msra.mxu0 0
        %1553 = vmatprep.subr.bf16.mxu0 0
        %1554 = vmatpush1.bf16.msra.mxu0 0
        %1555 = vmatprep.subr.bf16.mxu0 0
        %1556 = vmatpush1.bf16.msra.mxu0 0
        %1557 = vmatprep.subr.bf16.mxu0 0
        %1558 = vmatpush1.bf16.msra.mxu0 0
        %1559 = vmatprep.subr.bf16.mxu0 0
        %1560 = vmatpush1.bf16.msra.mxu0 0
        %1561 = vmatprep.subr.bf16.mxu0 0
        %1562 = vmatpush1.bf16.msra.mxu0 0
        %1563 = vmatprep.subr.bf16.mxu0 0
        %1564 = vmatpush1.bf16.msra.mxu0 0
        %1565 = vmatprep.subr.bf16.mxu0 0
        %1566 = vmatpush1.bf16.msra.mxu0 0
        %1567 = vmatprep.subr.bf16.mxu0 0
        %1568 = vmatpush1.bf16.msra.mxu0 0
        %1569 = vmatprep.subr.bf16.mxu0 0
        %1570 = vmatpush1.bf16.msra.mxu0 0
        %1571 = vmatprep.subr.bf16.mxu0 0
        %1572 = vmatpush1.bf16.msra.mxu0 0
        %1573 = vmatprep.subr.bf16.mxu0 0
        %1574 = vmatpush1.bf16.msra.mxu0 0
        %1575 = vmatprep.subr.bf16.mxu0 0
        %1576 = vmatpush1.bf16.msra.mxu0 0
        %1577 = vmatprep.subr.bf16.mxu0 0
        %1578 = vmatpush1.bf16.msra.mxu0 0
        %1579 = vmatprep.subr.bf16.mxu0 0
        %1580 = vmatpush1.bf16.msra.mxu0 0
        %1581 = vmatprep.mubr.bf16.mxu0 0
        %1582 = vmatmul.mubr.bf16.gmra.mrb[0].mxu0 %v1544
        %v1583 = vpop.f32.mrb[0].mxu0
        %v1584 = vadd.f32 0.0, %v1583
        %v1585 = vpop.f32.mrb[0].mxu0
        %v1586 = vpop.f32.mrb[0].mxu0
        %v1587 = vpop.f32.mrb[0].mxu0
        %1588 = vdwg.mxu0
        %v1589 = vrcp.pop %v1539
        %v1590 = vmul.f32 %v1584, %v1589
        %v1591 = vpack.c.bf16 %v1590, %v1590
        %v1592 = vld [vmem:[#allocation15 + $0xc] sm:$0xf]
        %v1594 = vsel %vm997, %v1591, 0
        %v1597 = vsel %vm1058, %v1592, 0
        %1599 = vmatprep.subr.bf16.mxu0 0
        %1600 = vmatpush1.bf16.msra.mxu0 %v1597
        %1601 = vmatprep.subr.bf16.mxu0 0
        %1602 = vmatpush1.bf16.msra.mxu0 0
        %1603 = vmatprep.subr.bf16.mxu0 0
        %1604 = vmatpush1.bf16.msra.mxu0 0
        %1605 = vmatprep.subr.bf16.mxu0 0
        %1606 = vmatpush1.bf16.msra.mxu0 0
        %1607 = vmatprep.subr.bf16.mxu0 0
        %1608 = vmatpush1.bf16.msra.mxu0 0
        %1609 = vmatprep.subr.bf16.mxu0 0
        %1610 = vmatpush1.bf16.msra.mxu0 0
        %1611 = vmatprep.subr.bf16.mxu0 0
        %1612 = vmatpush1.bf16.msra.mxu0 0
        %1613 = vmatprep.subr.bf16.mxu0 0
        %1614 = vmatpush1.bf16.msra.mxu0 0
        %1615 = vmatprep.subr.bf16.mxu0 0
        %1616 = vmatpush1.bf16.msra.mxu0 0
        %1617 = vmatprep.subr.bf16.mxu0 0
        %1618 = vmatpush1.bf16.msra.mxu0 0
        %1619 = vmatprep.subr.bf16.mxu0 0
        %1620 = vmatpush1.bf16.msra.mxu0 0
        %1621 = vmatprep.subr.bf16.mxu0 0
        %1622 = vmatpush1.bf16.msra.mxu0 0
        %1623 = vmatprep.subr.bf16.mxu0 0
        %1624 = vmatpush1.bf16.msra.mxu0 0
        %1625 = vmatprep.subr.bf16.mxu0 0
        %1626 = vmatpush1.bf16.msra.mxu0 0
        %1627 = vmatprep.subr.bf16.mxu0 0
        %1628 = vmatpush1.bf16.msra.mxu0 0
        %1629 = vmatprep.subr.bf16.mxu0 0
        %1630 = vmatpush1.bf16.msra.mxu0 0
        %1631 = vmatprep.mubr.bf16.mxu0 0
        %1632 = vmatmul.mubr.bf16.gmra.mrb[0].mxu0 %v1594
        %v1633 = vpop.f32.mrb[0].mxu0
        %v1634 = vadd.f32 0.0, %v1633
        %v1635 = vpop.f32.mrb[0].mxu0
        %v1636 = vpop.f32.mrb[0].mxu0
        %v1637 = vpop.f32.mrb[0].mxu0
        %1638 = vdwg.mxu0
        %v1639 = vadd.f32 %v1479, %v1634
        %1640 = vrot.lane.b32.xlu0 %v987, 96
        %v1641 = vpop.permute.xlu0 %1640
        %1642 = vrot.lane.b32.xlu0 %v1158, 96
        %v1643 = vpop.permute.xlu0 %1642
        %v1645 = vsel %vm997, %v1641, 0
        %v1648 = vsel %vm997, %v1643, 0
        %1650 = vmatprep.subr.bf16.mxu0 0
        %1651 = vmatpush1.bf16.xpose.msra.mxu0 %v1648
        %1652 = vmatprep.subr.bf16.mxu0 0
        %1653 = vmatpush1.bf16.xpose.msra.mxu0 0
        %1654 = vmatprep.subr.bf16.mxu0 0
        %1655 = vmatpush1.bf16.xpose.msra.mxu0 0
        %1656 = vmatprep.subr.bf16.mxu0 0
        %1657 = vmatpush1.bf16.xpose.msra.mxu0 0
        %1658 = vmatprep.subr.bf16.mxu0 0
        %1659 = vmatpush1.bf16.xpose.msra.mxu0 0
        %1660 = vmatprep.subr.bf16.mxu0 0
        %1661 = vmatpush1.bf16.xpose.msra.mxu0 0
        %1662 = vmatprep.subr.bf16.mxu0 0
        %1663 = vmatpush1.bf16.xpose.msra.mxu0 0
        %1664 = vmatprep.subr.bf16.mxu0 0
        %1665 = vmatpush1.bf16.xpose.msra.mxu0 0
        %1666 = vmatprep.subr.bf16.mxu0 0
        %1667 = vmatpush1.bf16.xpose.msra.mxu0 0
        %1668 = vmatprep.subr.bf16.mxu0 0
        %1669 = vmatpush1.bf16.xpose.msra.mxu0 0
        %1670 = vmatprep.subr.bf16.mxu0 0
        %1671 = vmatpush1.bf16.xpose.msra.mxu0 0
        %1672 = vmatprep.subr.bf16.mxu0 0
        %1673 = vmatpush1.bf16.xpose.msra.mxu0 0
        %1674 = vmatprep.subr.bf16.mxu0 0
        %1675 = vmatpush1.bf16.xpose.msra.mxu0 0
        %1676 = vmatprep.subr.bf16.mxu0 0
        %1677 = vmatpush1.bf16.xpose.msra.mxu0 0
        %1678 = vmatprep.subr.bf16.mxu0 0
        %1679 = vmatpush1.bf16.xpose.msra.mxu0 0
        %1680 = vmatprep.subr.bf16.mxu0 0
        %1681 = vmatpush1.bf16.xpose.msra.mxu0 0
        %1682 = vmatprep.mubr.bf16.mxu0 0
        %1683 = vmatmul.mubr.bf16.gmra.mrb[0].mxu0 %v1645
        %v1684 = vpop.f32.mrb[0].mxu0
        %v1685 = vadd.f32 0.0, %v1684
        %v1686 = vpop.f32.mrb[0].mxu0
        %v1687 = vpop.f32.mrb[0].mxu0
        %v1688 = vpop.f32.mrb[0].mxu0
        %1689 = vdwg.mxu0
        %v1690 = vmul.f32 %v1685, 0.35355338
        %v1691 = vsel %vm997, %v1690, -inf
        %1692 = vmax.xlane.f32.xlu0 %v1691
        %v1693 = vpop.xlane.xlu0 %1692
        %v1694 = vsub.f32 %v1690, %v1693
        %v1695 = vmul.f32 %v1694, 1.442695
        %v1696 = vpow.pop %v1695
        %v1697 = vsel %vm997, %v1696, 0.0
        %1698 = vadd.xlane.f32.xlu0 %v1697
        %v1699 = vpop.xlane.xlu0 %1698
        %v1700 = vpack.c.bf16 %v1696, %v1696
        %1701 = vrot.lane.b32.xlu0 %v1220, 96
        %v1702 = vpop.permute.xlu0 %1701
        %v1704 = vsel %vm997, %v1700, 0
        %v1707 = vsel %vm1058, %v1702, 0
        %1709 = vmatprep.subr.bf16.mxu0 0
        %1710 = vmatpush1.bf16.msra.mxu0 %v1707
        %1711 = vmatprep.subr.bf16.mxu0 0
        %1712 = vmatpush1.bf16.msra.mxu0 0
        %1713 = vmatprep.subr.bf16.mxu0 0
        %1714 = vmatpush1.bf16.msra.mxu0 0
        %1715 = vmatprep.subr.bf16.mxu0 0
        %1716 = vmatpush1.bf16.msra.mxu0 0
        %1717 = vmatprep.subr.bf16.mxu0 0
        %1718 = vmatpush1.bf16.msra.mxu0 0
        %1719 = vmatprep.subr.bf16.mxu0 0
        %1720 = vmatpush1.bf16.msra.mxu0 0
        %1721 = vmatprep.subr.bf16.mxu0 0
        %1722 = vmatpush1.bf16.msra.mxu0 0
        %1723 = vmatprep.subr.bf16.mxu0 0
        %1724 = vmatpush1.bf16.msra.mxu0 0
        %1725 = vmatprep.subr.bf16.mxu0 0
        %1726 = vmatpush1.bf16.msra.mxu0 0
        %1727 = vmatprep.subr.bf16.mxu0 0
        %1728 = vmatpush1.bf16.msra.mxu0 0
        %1729 = vmatprep.subr.bf16.mxu0 0
        %1730 = vmatpush1.bf16.msra.mxu0 0
        %1731 = vmatprep.subr.bf16.mxu0 0
        %1732 = vmatpush1.bf16.msra.mxu0 0
        %1733 = vmatprep.subr.bf16.mxu0 0
        %1734 = vmatpush1.bf16.msra.mxu0 0
        %1735 = vmatprep.subr.bf16.mxu0 0
        %1736 = vmatpush1.bf16.msra.mxu0 0
        %1737 = vmatprep.subr.bf16.mxu0 0
        %1738 = vmatpush1.bf16.msra.mxu0 0
        %1739 = vmatprep.subr.bf16.mxu0 0
        %1740 = vmatpush1.bf16.msra.mxu0 0
        %1741 = vmatprep.mubr.bf16.mxu0 0
        %1742 = vmatmul.mubr.bf16.gmra.mrb[0].mxu0 %v1704
        %v1743 = vpop.f32.mrb[0].mxu0
        %v1744 = vadd.f32 0.0, %v1743
        %v1745 = vpop.f32.mrb[0].mxu0
        %v1746 = vpop.f32.mrb[0].mxu0
        %v1747 = vpop.f32.mrb[0].mxu0
        %1748 = vdwg.mxu0
        %v1749 = vrcp.pop %v1699
        %v1750 = vmul.f32 %v1744, %v1749
        %v1751 = vpack.c.bf16 %v1750, %v1750
        %v1752 = vld [vmem:[#allocation15 + $0x10] sm:$0xf]
        %v1754 = vsel %vm997, %v1751, 0
        %v1757 = vsel %vm1058, %v1752, 0
        %1759 = vmatprep.subr.bf16.mxu0 0
        %1760 = vmatpush1.bf16.msra.mxu0 %v1757
        %1761 = vmatprep.subr.bf16.mxu0 0
        %1762 = vmatpush1.bf16.msra.mxu0 0
        %1763 = vmatprep.subr.bf16.mxu0 0
        %1764 = vmatpush1.bf16.msra.mxu0 0
        %1765 = vmatprep.subr.bf16.mxu0 0
        %1766 = vmatpush1.bf16.msra.mxu0 0
        %1767 = vmatprep.subr.bf16.mxu0 0
        %1768 = vmatpush1.bf16.msra.mxu0 0
        %1769 = vmatprep.subr.bf16.mxu0 0
        %1770 = vmatpush1.bf16.msra.mxu0 0
        %1771 = vmatprep.subr.bf16.mxu0 0
        %1772 = vmatpush1.bf16.msra.mxu0 0
        %1773 = vmatprep.subr.bf16.mxu0 0
        %1774 = vmatpush1.bf16.msra.mxu0 0
        %1775 = vmatprep.subr.bf16.mxu0 0
        %1776 = vmatpush1.bf16.msra.mxu0 0
        %1777 = vmatprep.subr.bf16.mxu0 0
        %1778 = vmatpush1.bf16.msra.mxu0 0
        %1779 = vmatprep.subr.bf16.mxu0 0
        %1780 = vmatpush1.bf16.msra.mxu0 0
        %1781 = vmatprep.subr.bf16.mxu0 0
        %1782 = vmatpush1.bf16.msra.mxu0 0
        %1783 = vmatprep.subr.bf16.mxu0 0
        %1784 = vmatpush1.bf16.msra.mxu0 0
        %1785 = vmatprep.subr.bf16.mxu0 0
        %1786 = vmatpush1.bf16.msra.mxu0 0
        %1787 = vmatprep.subr.bf16.mxu0 0
        %1788 = vmatpush1.bf16.msra.mxu0 0
        %1789 = vmatprep.subr.bf16.mxu0 0
        %1790 = vmatpush1.bf16.msra.mxu0 0
        %1791 = vmatprep.mubr.bf16.mxu0 0
        %1792 = vmatmul.mubr.bf16.gmra.mrb[0].mxu0 %v1754
        %v1793 = vpop.f32.mrb[0].mxu0
        %v1794 = vadd.f32 0.0, %v1793
        %v1795 = vpop.f32.mrb[0].mxu0
        %v1796 = vpop.f32.mrb[0].mxu0
        %v1797 = vpop.f32.mrb[0].mxu0
        %1798 = vdwg.mxu0
        %v1799 = vadd.f32 %v1639, %v1794
        %1800 = vrot.lane.b32.xlu0 %v987, 88
        %v1801 = vpop.permute.xlu0 %1800
        %1802 = vrot.lane.b32.xlu0 %v1158, 88
        %v1803 = vpop.permute.xlu0 %1802
        %v1805 = vsel %vm997, %v1801, 0
        %v1808 = vsel %vm997, %v1803, 0
        %1810 = vmatprep.subr.bf16.mxu0 0
        %1811 = vmatpush1.bf16.xpose.msra.mxu0 %v1808
        %1812 = vmatprep.subr.bf16.mxu0 0
        %1813 = vmatpush1.bf16.xpose.msra.mxu0 0
        %1814 = vmatprep.subr.bf16.mxu0 0
        %1815 = vmatpush1.bf16.xpose.msra.mxu0 0
        %1816 = vmatprep.subr.bf16.mxu0 0
        %1817 = vmatpush1.bf16.xpose.msra.mxu0 0
        %1818 = vmatprep.subr.bf16.mxu0 0
        %1819 = vmatpush1.bf16.xpose.msra.mxu0 0
        %1820 = vmatprep.subr.bf16.mxu0 0
        %1821 = vmatpush1.bf16.xpose.msra.mxu0 0
        %1822 = vmatprep.subr.bf16.mxu0 0
        %1823 = vmatpush1.bf16.xpose.msra.mxu0 0
        %1824 = vmatprep.subr.bf16.mxu0 0
        %1825 = vmatpush1.bf16.xpose.msra.mxu0 0
        %1826 = vmatprep.subr.bf16.mxu0 0
        %1827 = vmatpush1.bf16.xpose.msra.mxu0 0
        %1828 = vmatprep.subr.bf16.mxu0 0
        %1829 = vmatpush1.bf16.xpose.msra.mxu0 0
        %1830 = vmatprep.subr.bf16.mxu0 0
        %1831 = vmatpush1.bf16.xpose.msra.mxu0 0
        %1832 = vmatprep.subr.bf16.mxu0 0
        %1833 = vmatpush1.bf16.xpose.msra.mxu0 0
        %1834 = vmatprep.subr.bf16.mxu0 0
        %1835 = vmatpush1.bf16.xpose.msra.mxu0 0
        %1836 = vmatprep.subr.bf16.mxu0 0
        %1837 = vmatpush1.bf16.xpose.msra.mxu0 0
        %1838 = vmatprep.subr.bf16.mxu0 0
        %1839 = vmatpush1.bf16.xpose.msra.mxu0 0
        %1840 = vmatprep.subr.bf16.mxu0 0
        %1841 = vmatpush1.bf16.xpose.msra.mxu0 0
        %1842 = vmatprep.mubr.bf16.mxu0 0
        %1843 = vmatmul.mubr.bf16.gmra.mrb[0].mxu0 %v1805
        %v1844 = vpop.f32.mrb[0].mxu0
        %v1845 = vadd.f32 0.0, %v1844
        %v1846 = vpop.f32.mrb[0].mxu0
        %v1847 = vpop.f32.mrb[0].mxu0
        %v1848 = vpop.f32.mrb[0].mxu0
        %1849 = vdwg.mxu0
        %v1850 = vmul.f32 %v1845, 0.35355338
        %v1851 = vsel %vm997, %v1850, -inf
        %1852 = vmax.xlane.f32.xlu0 %v1851
        %v1853 = vpop.xlane.xlu0 %1852
        %v1854 = vsub.f32 %v1850, %v1853
        %v1855 = vmul.f32 %v1854, 1.442695
        %v1856 = vpow.pop %v1855
        %v1857 = vsel %vm997, %v1856, 0.0
        %1858 = vadd.xlane.f32.xlu0 %v1857
        %v1859 = vpop.xlane.xlu0 %1858
        %v1860 = vpack.c.bf16 %v1856, %v1856
        %1861 = vrot.lane.b32.xlu0 %v1220, 88
        %v1862 = vpop.permute.xlu0 %1861
        %v1864 = vsel %vm997, %v1860, 0
        %v1867 = vsel %vm1058, %v1862, 0
        %1869 = vmatprep.subr.bf16.mxu0 0
        %1870 = vmatpush1.bf16.msra.mxu0 %v1867
        %1871 = vmatprep.subr.bf16.mxu0 0
        %1872 = vmatpush1.bf16.msra.mxu0 0
        %1873 = vmatprep.subr.bf16.mxu0 0
        %1874 = vmatpush1.bf16.msra.mxu0 0
        %1875 = vmatprep.subr.bf16.mxu0 0
        %1876 = vmatpush1.bf16.msra.mxu0 0
        %1877 = vmatprep.subr.bf16.mxu0 0
        %1878 = vmatpush1.bf16.msra.mxu0 0
        %1879 = vmatprep.subr.bf16.mxu0 0
        %1880 = vmatpush1.bf16.msra.mxu0 0
        %1881 = vmatprep.subr.bf16.mxu0 0
        %1882 = vmatpush1.bf16.msra.mxu0 0
        %1883 = vmatprep.subr.bf16.mxu0 0
        %1884 = vmatpush1.bf16.msra.mxu0 0
        %1885 = vmatprep.subr.bf16.mxu0 0
        %1886 = vmatpush1.bf16.msra.mxu0 0
        %1887 = vmatprep.subr.bf16.mxu0 0
        %1888 = vmatpush1.bf16.msra.mxu0 0
        %1889 = vmatprep.subr.bf16.mxu0 0
        %1890 = vmatpush1.bf16.msra.mxu0 0
        %1891 = vmatprep.subr.bf16.mxu0 0
        %1892 = vmatpush1.bf16.msra.mxu0 0
        %1893 = vmatprep.subr.bf16.mxu0 0
        %1894 = vmatpush1.bf16.msra.mxu0 0
        %1895 = vmatprep.subr.bf16.mxu0 0
        %1896 = vmatpush1.bf16.msra.mxu0 0
        %1897 = vmatprep.subr.bf16.mxu0 0
        %1898 = vmatpush1.bf16.msra.mxu0 0
        %1899 = vmatprep.subr.bf16.mxu0 0
        %1900 = vmatpush1.bf16.msra.mxu0 0
        %1901 = vmatprep.mubr.bf16.mxu0 0
        %1902 = vmatmul.mubr.bf16.gmra.mrb[0].mxu0 %v1864
        %v1903 = vpop.f32.mrb[0].mxu0
        %v1904 = vadd.f32 0.0, %v1903
        %v1905 = vpop.f32.mrb[0].mxu0
        %v1906 = vpop.f32.mrb[0].mxu0
        %v1907 = vpop.f32.mrb[0].mxu0
        %1908 = vdwg.mxu0
        %v1909 = vrcp.pop %v1859
        %v1910 = vmul.f32 %v1904, %v1909
        %v1911 = vpack.c.bf16 %v1910, %v1910
        %v1912 = vld [vmem:[#allocation15 + $0x14] sm:$0xf]
        %v1914 = vsel %vm997, %v1911, 0
        %v1917 = vsel %vm1058, %v1912, 0
        %1919 = vmatprep.subr.bf16.mxu0 0
        %1920 = vmatpush1.bf16.msra.mxu0 %v1917
        %1921 = vmatprep.subr.bf16.mxu0 0
        %1922 = vmatpush1.bf16.msra.mxu0 0
        %1923 = vmatprep.subr.bf16.mxu0 0
        %1924 = vmatpush1.bf16.msra.mxu0 0
        %1925 = vmatprep.subr.bf16.mxu0 0
        %1926 = vmatpush1.bf16.msra.mxu0 0
        %1927 = vmatprep.subr.bf16.mxu0 0
        %1928 = vmatpush1.bf16.msra.mxu0 0
        %1929 = vmatprep.subr.bf16.mxu0 0
        %1930 = vmatpush1.bf16.msra.mxu0 0
        %1931 = vmatprep.subr.bf16.mxu0 0
        %1932 = vmatpush1.bf16.msra.mxu0 0
        %1933 = vmatprep.subr.bf16.mxu0 0
        %1934 = vmatpush1.bf16.msra.mxu0 0
        %1935 = vmatprep.subr.bf16.mxu0 0
        %1936 = vmatpush1.bf16.msra.mxu0 0
        %1937 = vmatprep.subr.bf16.mxu0 0
        %1938 = vmatpush1.bf16.msra.mxu0 0
        %1939 = vmatprep.subr.bf16.mxu0 0
        %1940 = vmatpush1.bf16.msra.mxu0 0
        %1941 = vmatprep.subr.bf16.mxu0 0
        %1942 = vmatpush1.bf16.msra.mxu0 0
        %1943 = vmatprep.subr.bf16.mxu0 0
        %1944 = vmatpush1.bf16.msra.mxu0 0
        %1945 = vmatprep.subr.bf16.mxu0 0
        %1946 = vmatpush1.bf16.msra.mxu0 0
        %1947 = vmatprep.subr.bf16.mxu0 0
        %1948 = vmatpush1.bf16.msra.mxu0 0
        %1949 = vmatprep.subr.bf16.mxu0 0
        %1950 = vmatpush1.bf16.msra.mxu0 0
        %1951 = vmatprep.mubr.bf16.mxu0 0
        %1952 = vmatmul.mubr.bf16.gmra.mrb[0].mxu0 %v1914
        %v1953 = vpop.f32.mrb[0].mxu0
        %v1954 = vadd.f32 0.0, %v1953
        %v1955 = vpop.f32.mrb[0].mxu0
        %v1956 = vpop.f32.mrb[0].mxu0
        %v1957 = vpop.f32.mrb[0].mxu0
        %1958 = vdwg.mxu0
        %v1959 = vadd.f32 %v1799, %v1954
        %1960 = vrot.lane.b32.xlu0 %v987, 80
        %v1961 = vpop.permute.xlu0 %1960
        %1962 = vrot.lane.b32.xlu0 %v1158, 80
        %v1963 = vpop.permute.xlu0 %1962
        %v1965 = vsel %vm997, %v1961, 0
        %v1968 = vsel %vm997, %v1963, 0
        %1970 = vmatprep.subr.bf16.mxu0 0
        %1971 = vmatpush1.bf16.xpose.msra.mxu0 %v1968
        %1972 = vmatprep.subr.bf16.mxu0 0
        %1973 = vmatpush1.bf16.xpose.msra.mxu0 0
        %1974 = vmatprep.subr.bf16.mxu0 0
        %1975 = vmatpush1.bf16.xpose.msra.mxu0 0
        %1976 = vmatprep.subr.bf16.mxu0 0
        %1977 = vmatpush1.bf16.xpose.msra.mxu0 0
        %1978 = vmatprep.subr.bf16.mxu0 0
        %1979 = vmatpush1.bf16.xpose.msra.mxu0 0
        %1980 = vmatprep.subr.bf16.mxu0 0
        %1981 = vmatpush1.bf16.xpose.msra.mxu0 0
        %1982 = vmatprep.subr.bf16.mxu0 0
        %1983 = vmatpush1.bf16.xpose.msra.mxu0 0
        %1984 = vmatprep.subr.bf16.mxu0 0
        %1985 = vmatpush1.bf16.xpose.msra.mxu0 0
        %1986 = vmatprep.subr.bf16.mxu0 0
        %1987 = vmatpush1.bf16.xpose.msra.mxu0 0
        %1988 = vmatprep.subr.bf16.mxu0 0
        %1989 = vmatpush1.bf16.xpose.msra.mxu0 0
        %1990 = vmatprep.subr.bf16.mxu0 0
        %1991 = vmatpush1.bf16.xpose.msra.mxu0 0
        %1992 = vmatprep.subr.bf16.mxu0 0
        %1993 = vmatpush1.bf16.xpose.msra.mxu0 0
        %1994 = vmatprep.subr.bf16.mxu0 0
        %1995 = vmatpush1.bf16.xpose.msra.mxu0 0
        %1996 = vmatprep.subr.bf16.mxu0 0
        %1997 = vmatpush1.bf16.xpose.msra.mxu0 0
        %1998 = vmatprep.subr.bf16.mxu0 0
        %1999 = vmatpush1.bf16.xpose.msra.mxu0 0
        %2000 = vmatprep.subr.bf16.mxu0 0
        %2001 = vmatpush1.bf16.xpose.msra.mxu0 0
        %2002 = vmatprep.mubr.bf16.mxu0 0
        %2003 = vmatmul.mubr.bf16.gmra.mrb[0].mxu0 %v1965
        %v2004 = vpop.f32.mrb[0].mxu0
        %v2005 = vadd.f32 0.0, %v2004
        %v2006 = vpop.f32.mrb[0].mxu0
        %v2007 = vpop.f32.mrb[0].mxu0
        %v2008 = vpop.f32.mrb[0].mxu0
        %2009 = vdwg.mxu0
        %v2010 = vmul.f32 %v2005, 0.35355338
        %v2011 = vsel %vm997, %v2010, -inf
        %2012 = vmax.xlane.f32.xlu0 %v2011
        %v2013 = vpop.xlane.xlu0 %2012
        %v2014 = vsub.f32 %v2010, %v2013
        %v2015 = vmul.f32 %v2014, 1.442695
        %v2016 = vpow.pop %v2015
        %v2017 = vsel %vm997, %v2016, 0.0
        %2018 = vadd.xlane.f32.xlu0 %v2017
        %v2019 = vpop.xlane.xlu0 %2018
        %v2020 = vpack.c.bf16 %v2016, %v2016
        %2021 = vrot.lane.b32.xlu0 %v1220, 80
        %v2022 = vpop.permute.xlu0 %2021
        %v2024 = vsel %vm997, %v2020, 0
        %v2027 = vsel %vm1058, %v2022, 0
        %2029 = vmatprep.subr.bf16.mxu0 0
        %2030 = vmatpush1.bf16.msra.mxu0 %v2027
        %2031 = vmatprep.subr.bf16.mxu0 0
        %2032 = vmatpush1.bf16.msra.mxu0 0
        %2033 = vmatprep.subr.bf16.mxu0 0
        %2034 = vmatpush1.bf16.msra.mxu0 0
        %2035 = vmatprep.subr.bf16.mxu0 0
        %2036 = vmatpush1.bf16.msra.mxu0 0
        %2037 = vmatprep.subr.bf16.mxu0 0
        %2038 = vmatpush1.bf16.msra.mxu0 0
        %2039 = vmatprep.subr.bf16.mxu0 0
        %2040 = vmatpush1.bf16.msra.mxu0 0
        %2041 = vmatprep.subr.bf16.mxu0 0
        %2042 = vmatpush1.bf16.msra.mxu0 0
        %2043 = vmatprep.subr.bf16.mxu0 0
        %2044 = vmatpush1.bf16.msra.mxu0 0
        %2045 = vmatprep.subr.bf16.mxu0 0
        %2046 = vmatpush1.bf16.msra.mxu0 0
        %2047 = vmatprep.subr.bf16.mxu0 0
        %2048 = vmatpush1.bf16.msra.mxu0 0
        %2049 = vmatprep.subr.bf16.mxu0 0
        %2050 = vmatpush1.bf16.msra.mxu0 0
        %2051 = vmatprep.subr.bf16.mxu0 0
        %2052 = vmatpush1.bf16.msra.mxu0 0
        %2053 = vmatprep.subr.bf16.mxu0 0
        %2054 = vmatpush1.bf16.msra.mxu0 0
        %2055 = vmatprep.subr.bf16.mxu0 0
        %2056 = vmatpush1.bf16.msra.mxu0 0
        %2057 = vmatprep.subr.bf16.mxu0 0
        %2058 = vmatpush1.bf16.msra.mxu0 0
        %2059 = vmatprep.subr.bf16.mxu0 0
        %2060 = vmatpush1.bf16.msra.mxu0 0
        %2061 = vmatprep.mubr.bf16.mxu0 0
        %2062 = vmatmul.mubr.bf16.gmra.mrb[0].mxu0 %v2024
        %v2063 = vpop.f32.mrb[0].mxu0
        %v2064 = vadd.f32 0.0, %v2063
        %v2065 = vpop.f32.mrb[0].mxu0
        %v2066 = vpop.f32.mrb[0].mxu0
        %v2067 = vpop.f32.mrb[0].mxu0
        %2068 = vdwg.mxu0
        %v2069 = vrcp.pop %v2019
        %v2070 = vmul.f32 %v2064, %v2069
        %v2071 = vpack.c.bf16 %v2070, %v2070
        %v2072 = vld [vmem:[#allocation15 + $0x18] sm:$0xf]
        %v2074 = vsel %vm997, %v2071, 0
        %v2077 = vsel %vm1058, %v2072, 0
        %2079 = vmatprep.subr.bf16.mxu0 0
        %2080 = vmatpush1.bf16.msra.mxu0 %v2077
        %2081 = vmatprep.subr.bf16.mxu0 0
        %2082 = vmatpush1.bf16.msra.mxu0 0
        %2083 = vmatprep.subr.bf16.mxu0 0
        %2084 = vmatpush1.bf16.msra.mxu0 0
        %2085 = vmatprep.subr.bf16.mxu0 0
        %2086 = vmatpush1.bf16.msra.mxu0 0
        %2087 = vmatprep.subr.bf16.mxu0 0
        %2088 = vmatpush1.bf16.msra.mxu0 0
        %2089 = vmatprep.subr.bf16.mxu0 0
        %2090 = vmatpush1.bf16.msra.mxu0 0
        %2091 = vmatprep.subr.bf16.mxu0 0
        %2092 = vmatpush1.bf16.msra.mxu0 0
        %2093 = vmatprep.subr.bf16.mxu0 0
        %2094 = vmatpush1.bf16.msra.mxu0 0
        %2095 = vmatprep.subr.bf16.mxu0 0
        %2096 = vmatpush1.bf16.msra.mxu0 0
        %2097 = vmatprep.subr.bf16.mxu0 0
        %2098 = vmatpush1.bf16.msra.mxu0 0
        %2099 = vmatprep.subr.bf16.mxu0 0
        %2100 = vmatpush1.bf16.msra.mxu0 0
        %2101 = vmatprep.subr.bf16.mxu0 0
        %2102 = vmatpush1.bf16.msra.mxu0 0
        %2103 = vmatprep.subr.bf16.mxu0 0
        %2104 = vmatpush1.bf16.msra.mxu0 0
        %2105 = vmatprep.subr.bf16.mxu0 0
        %2106 = vmatpush1.bf16.msra.mxu0 0
        %2107 = vmatprep.subr.bf16.mxu0 0
        %2108 = vmatpush1.bf16.msra.mxu0 0
        %2109 = vmatprep.subr.bf16.mxu0 0
        %2110 = vmatpush1.bf16.msra.mxu0 0
        %2111 = vmatprep.mubr.bf16.mxu0 0
        %2112 = vmatmul.mubr.bf16.gmra.mrb[0].mxu0 %v2074
        %v2113 = vpop.f32.mrb[0].mxu0
        %v2114 = vadd.f32 0.0, %v2113
        %v2115 = vpop.f32.mrb[0].mxu0
        %v2116 = vpop.f32.mrb[0].mxu0
        %v2117 = vpop.f32.mrb[0].mxu0
        %2118 = vdwg.mxu0
        %v2119 = vadd.f32 %v1959, %v2114
        %2120 = vrot.lane.b32.xlu0 %v987, 72
        %v2121 = vpop.permute.xlu0 %2120
        %2122 = vrot.lane.b32.xlu0 %v1158, 72
        %v2123 = vpop.permute.xlu0 %2122
        %v2125 = vsel %vm997, %v2121, 0
        %v2128 = vsel %vm997, %v2123, 0
        %2130 = vmatprep.subr.bf16.mxu0 0
        %2131 = vmatpush1.bf16.xpose.msra.mxu0 %v2128
        %2132 = vmatprep.subr.bf16.mxu0 0
        %2133 = vmatpush1.bf16.xpose.msra.mxu0 0
        %2134 = vmatprep.subr.bf16.mxu0 0
        %2135 = vmatpush1.bf16.xpose.msra.mxu0 0
        %2136 = vmatprep.subr.bf16.mxu0 0
        %2137 = vmatpush1.bf16.xpose.msra.mxu0 0
        %2138 = vmatprep.subr.bf16.mxu0 0
        %2139 = vmatpush1.bf16.xpose.msra.mxu0 0
        %2140 = vmatprep.subr.bf16.mxu0 0
        %2141 = vmatpush1.bf16.xpose.msra.mxu0 0
        %2142 = vmatprep.subr.bf16.mxu0 0
        %2143 = vmatpush1.bf16.xpose.msra.mxu0 0
        %2144 = vmatprep.subr.bf16.mxu0 0
        %2145 = vmatpush1.bf16.xpose.msra.mxu0 0
        %2146 = vmatprep.subr.bf16.mxu0 0
        %2147 = vmatpush1.bf16.xpose.msra.mxu0 0
        %2148 = vmatprep.subr.bf16.mxu0 0
        %2149 = vmatpush1.bf16.xpose.msra.mxu0 0
        %2150 = vmatprep.subr.bf16.mxu0 0
        %2151 = vmatpush1.bf16.xpose.msra.mxu0 0
        %2152 = vmatprep.subr.bf16.mxu0 0
        %2153 = vmatpush1.bf16.xpose.msra.mxu0 0
        %2154 = vmatprep.subr.bf16.mxu0 0
        %2155 = vmatpush1.bf16.xpose.msra.mxu0 0
        %2156 = vmatprep.subr.bf16.mxu0 0
        %2157 = vmatpush1.bf16.xpose.msra.mxu0 0
        %2158 = vmatprep.subr.bf16.mxu0 0
        %2159 = vmatpush1.bf16.xpose.msra.mxu0 0
        %2160 = vmatprep.subr.bf16.mxu0 0
        %2161 = vmatpush1.bf16.xpose.msra.mxu0 0
        %2162 = vmatprep.mubr.bf16.mxu0 0
        %2163 = vmatmul.mubr.bf16.gmra.mrb[0].mxu0 %v2125
        %v2164 = vpop.f32.mrb[0].mxu0
        %v2165 = vadd.f32 0.0, %v2164
        %v2166 = vpop.f32.mrb[0].mxu0
        %v2167 = vpop.f32.mrb[0].mxu0
        %v2168 = vpop.f32.mrb[0].mxu0
        %2169 = vdwg.mxu0
        %v2170 = vmul.f32 %v2165, 0.35355338
        %v2171 = vsel %vm997, %v2170, -inf
        %2172 = vmax.xlane.f32.xlu0 %v2171
        %v2173 = vpop.xlane.xlu0 %2172
        %v2174 = vsub.f32 %v2170, %v2173
        %v2175 = vmul.f32 %v2174, 1.442695
        %v2176 = vpow.pop %v2175
        %v2177 = vsel %vm997, %v2176, 0.0
        %2178 = vadd.xlane.f32.xlu0 %v2177
        %v2179 = vpop.xlane.xlu0 %2178
        %v2180 = vpack.c.bf16 %v2176, %v2176
        %2181 = vrot.lane.b32.xlu0 %v1220, 72
        %v2182 = vpop.permute.xlu0 %2181
        %v2184 = vsel %vm997, %v2180, 0
        %v2187 = vsel %vm1058, %v2182, 0
        %2189 = vmatprep.subr.bf16.mxu0 0
        %2190 = vmatpush1.bf16.msra.mxu0 %v2187
        %2191 = vmatprep.subr.bf16.mxu0 0
        %2192 = vmatpush1.bf16.msra.mxu0 0
        %2193 = vmatprep.subr.bf16.mxu0 0
        %2194 = vmatpush1.bf16.msra.mxu0 0
        %2195 = vmatprep.subr.bf16.mxu0 0
        %2196 = vmatpush1.bf16.msra.mxu0 0
        %2197 = vmatprep.subr.bf16.mxu0 0
        %2198 = vmatpush1.bf16.msra.mxu0 0
        %2199 = vmatprep.subr.bf16.mxu0 0
        %2200 = vmatpush1.bf16.msra.mxu0 0
        %2201 = vmatprep.subr.bf16.mxu0 0
        %2202 = vmatpush1.bf16.msra.mxu0 0
        %2203 = vmatprep.subr.bf16.mxu0 0
        %2204 = vmatpush1.bf16.msra.mxu0 0
        %2205 = vmatprep.subr.bf16.mxu0 0
        %2206 = vmatpush1.bf16.msra.mxu0 0
        %2207 = vmatprep.subr.bf16.mxu0 0
        %2208 = vmatpush1.bf16.msra.mxu0 0
        %2209 = vmatprep.subr.bf16.mxu0 0
        %2210 = vmatpush1.bf16.msra.mxu0 0
        %2211 = vmatprep.subr.bf16.mxu0 0
        %2212 = vmatpush1.bf16.msra.mxu0 0
        %2213 = vmatprep.subr.bf16.mxu0 0
        %2214 = vmatpush1.bf16.msra.mxu0 0
        %2215 = vmatprep.subr.bf16.mxu0 0
        %2216 = vmatpush1.bf16.msra.mxu0 0
        %2217 = vmatprep.subr.bf16.mxu0 0
        %2218 = vmatpush1.bf16.msra.mxu0 0
        %2219 = vmatprep.subr.bf16.mxu0 0
        %2220 = vmatpush1.bf16.msra.mxu0 0
        %2221 = vmatprep.mubr.bf16.mxu0 0
        %2222 = vmatmul.mubr.bf16.gmra.mrb[0].mxu0 %v2184
        %v2223 = vpop.f32.mrb[0].mxu0
        %v2224 = vadd.f32 0.0, %v2223
        %v2225 = vpop.f32.mrb[0].mxu0
        %v2226 = vpop.f32.mrb[0].mxu0
        %v2227 = vpop.f32.mrb[0].mxu0
        %2228 = vdwg.mxu0
        %v2229 = vrcp.pop %v2179
        %v2230 = vmul.f32 %v2224, %v2229
        %v2231 = vpack.c.bf16 %v2230, %v2230
        %v2232 = vld [vmem:[#allocation15 + $0x1c] sm:$0xf]
        %v2234 = vsel %vm997, %v2231, 0
        %v2237 = vsel %vm1058, %v2232, 0
        %2239 = vmatprep.subr.bf16.mxu0 0
        %2240 = vmatpush1.bf16.msra.mxu0 %v2237
        %2241 = vmatprep.subr.bf16.mxu0 0
        %2242 = vmatpush1.bf16.msra.mxu0 0
        %2243 = vmatprep.subr.bf16.mxu0 0
        %2244 = vmatpush1.bf16.msra.mxu0 0
        %2245 = vmatprep.subr.bf16.mxu0 0
        %2246 = vmatpush1.bf16.msra.mxu0 0
        %2247 = vmatprep.subr.bf16.mxu0 0
        %2248 = vmatpush1.bf16.msra.mxu0 0
        %2249 = vmatprep.subr.bf16.mxu0 0
        %2250 = vmatpush1.bf16.msra.mxu0 0
        %2251 = vmatprep.subr.bf16.mxu0 0
        %2252 = vmatpush1.bf16.msra.mxu0 0
        %2253 = vmatprep.subr.bf16.mxu0 0
        %2254 = vmatpush1.bf16.msra.mxu0 0
        %2255 = vmatprep.subr.bf16.mxu0 0
        %2256 = vmatpush1.bf16.msra.mxu0 0
        %2257 = vmatprep.subr.bf16.mxu0 0
        %2258 = vmatpush1.bf16.msra.mxu0 0
        %2259 = vmatprep.subr.bf16.mxu0 0
        %2260 = vmatpush1.bf16.msra.mxu0 0
        %2261 = vmatprep.subr.bf16.mxu0 0
        %2262 = vmatpush1.bf16.msra.mxu0 0
        %2263 = vmatprep.subr.bf16.mxu0 0
        %2264 = vmatpush1.bf16.msra.mxu0 0
        %2265 = vmatprep.subr.bf16.mxu0 0
        %2266 = vmatpush1.bf16.msra.mxu0 0
        %2267 = vmatprep.subr.bf16.mxu0 0
        %2268 = vmatpush1.bf16.msra.mxu0 0
        %2269 = vmatprep.subr.bf16.mxu0 0
        %2270 = vmatpush1.bf16.msra.mxu0 0
        %2271 = vmatprep.mubr.bf16.mxu0 0
        %2272 = vmatmul.mubr.bf16.gmra.mrb[0].mxu0 %v2234
        %v2273 = vpop.f32.mrb[0].mxu0
        %v2274 = vadd.f32 0.0, %v2273
        %v2275 = vpop.f32.mrb[0].mxu0
        %v2276 = vpop.f32.mrb[0].mxu0
        %v2277 = vpop.f32.mrb[0].mxu0
        %2278 = vdwg.mxu0
        %v2279 = vadd.f32 %v2119, %v2274
        %v2280 = vadd.f32 %v2279, %v902
        %v2281 = vsel %vm943, %v2280, 0.0
        %2282 = vadd.xlane.f32.xlu0 %v2281
        %v2283 = vpop.xlane.xlu0 %2282
        %v2284 = vrcp.pop 64.0
        %v2285 = vmul.f32 %v2283, %v2284
        %v2286 = vsub.f32 %v2280, %v2285
        %v2287 = vmul.f32 %v2286, %v2286
        %v2288 = vsel %vm943, %v2287, 0.0
        %2289 = vadd.xlane.f32.xlu0 %v2288
        %v2290 = vpop.xlane.xlu0 %2289
        %v2291 = vmul.f32 %v2290, %v2284
        %v2292 = vadd.f32 %v2291, 1e-05
        %v2293 = vrsqrt.pop %v2292
        %v2294 = vmul.f32 %v2286, %v2293
        %v2295 = vld [vmem:[%s11] sm:$0x1]
        %v2297 = vlaneseq
        %v2298 = vshrl.u32 %v2297, 7
        %v2299 = vsub.s32 0, %v2298
        %v2300 = vrot.slane %v2295, %v2299
        %v2302 = vmul.f32 %v2294, %v2300
        %v2303 = vld [vmem:[%s12] sm:$0x1]
        %v2305 = vlaneseq
        %v2306 = vshrl.u32 %v2305, 7
        %v2307 = vsub.s32 0, %v2306
        %v2308 = vrot.slane %v2303, %v2307
        %v2310 = vadd.f32 %v2302, %v2308
        %v2311 = vpack.c.bf16 %v2310, %v2310
        %v2312 = vld [vmem:[%s13] sm:$0xf]
        %v2313 = vld [vmem:[%s13 + $0x4] sm:$0xf]
        %v2314 = vld [vmem:[%s13 + $0x8] sm:$0xf]
        %v2315 = vld [vmem:[%s13 + $0xc] sm:$0xf]
        %v2316 = vld [vmem:[%s13 + $0x10] sm:$0xf]
        %v2317 = vld [vmem:[%s13 + $0x14] sm:$0xf]
        %v2318 = vld [vmem:[%s13 + $0x18] sm:$0xf]
        %v2319 = vld [vmem:[%s13 + $0x1c] sm:$0xf]
        %v2328 = vunpack.c.l.b16 %v2312
        %v2329 = vunpack.c.l.b16 %v2313
        %v2330 = vunpack.c.l.b16 %v2314
        %v2331 = vunpack.c.l.b16 %v2315
        %v2332 = vunpack.c.l.b16 %v2316
        %v2333 = vunpack.c.l.b16 %v2317
        %v2334 = vunpack.c.l.b16 %v2318
        %v2335 = vunpack.c.l.b16 %v2319
        %v2336 = vpack.c.b16 %v2329, %v2328
        %v2337 = vpack.c.b16 %v2331, %v2330
        %v2338 = vpack.c.b16 %v2333, %v2332
        %v2339 = vpack.c.b16 %v2335, %v2334
        %v2345 = vsel %vm943, %v2311, 0
        %2347 = vmatprep.subr.bf16.mxu0 0
        %2348 = vmatpush1.bf16.msra.mxu0 %v2336
        %2349 = vmatprep.subr.bf16.mxu0 0
        %2350 = vmatpush1.bf16.msra.mxu0 %v2337
        %2351 = vmatprep.subr.bf16.mxu0 0
        %2352 = vmatpush1.bf16.msra.mxu0 %v2338
        %2353 = vmatprep.subr.bf16.mxu0 0
        %2354 = vmatpush1.bf16.msra.mxu0 %v2339
        %2355 = vmatprep.subr.bf16.mxu0 0
        %2356 = vmatpush1.bf16.msra.mxu0 0
        %2357 = vmatprep.subr.bf16.mxu0 0
        %2358 = vmatpush1.bf16.msra.mxu0 0
        %2359 = vmatprep.subr.bf16.mxu0 0
        %2360 = vmatpush1.bf16.msra.mxu0 0
        %2361 = vmatprep.subr.bf16.mxu0 0
        %2362 = vmatpush1.bf16.msra.mxu0 0
        %2363 = vmatprep.subr.bf16.mxu0 0
        %2364 = vmatpush1.bf16.msra.mxu0 0
        %2365 = vmatprep.subr.bf16.mxu0 0
        %2366 = vmatpush1.bf16.msra.mxu0 0
        %2367 = vmatprep.subr.bf16.mxu0 0
        %2368 = vmatpush1.bf16.msra.mxu0 0
        %2369 = vmatprep.subr.bf16.mxu0 0
        %2370 = vmatpush1.bf16.msra.mxu0 0
        %2371 = vmatprep.subr.bf16.mxu0 0
        %2372 = vmatpush1.bf16.msra.mxu0 0
        %2373 = vmatprep.subr.bf16.mxu0 0
        %2374 = vmatpush1.bf16.msra.mxu0 0
        %2375 = vmatprep.subr.bf16.mxu0 0
        %2376 = vmatpush1.bf16.msra.mxu0 0
        %2377 = vmatprep.subr.bf16.mxu0 0
        %2378 = vmatpush1.bf16.msra.mxu0 0
        %2379 = vmatprep.mubr.bf16.mxu0 0
        %2380 = vmatmul.mubr.bf16.gmra.mrb[0].mxu0 %v2345
        %v2381 = vpop.f32.mrb[0].mxu0
        %v2382 = vadd.f32 0.0, %v2381
        %v2383 = vpop.f32.mrb[0].mxu0
        %v2384 = vpop.f32.mrb[0].mxu0
        %v2385 = vpop.f32.mrb[0].mxu0
        %2386 = vdwg.mxu0
        %v2387 = vmax.f32 %v2382, 0.0
        %v2388 = vpack.c.bf16 %v2387, %v2387
        %v2389 = vld [vmem:[#allocation16] sm:$0xf]
        %v2390 = vld [vmem:[#allocation16 + $0x4] sm:$0xf]
        %v2391 = vld [vmem:[#allocation16 + $0x8] sm:$0xf]
        %v2392 = vld [vmem:[#allocation16 + $0xc] sm:$0xf]
        %v2393 = vld [vmem:[#allocation16 + $0x10] sm:$0xf]
        %v2394 = vld [vmem:[#allocation16 + $0x14] sm:$0xf]
        %v2395 = vld [vmem:[#allocation16 + $0x18] sm:$0xf]
        %v2396 = vld [vmem:[#allocation16 + $0x1c] sm:$0xf]
        %v2405 = vunpack.c.l.b16 %v2389
        %v2406 = vunpack.c.l.b16 %v2390
        %v2407 = vunpack.c.l.b16 %v2391
        %v2408 = vunpack.c.l.b16 %v2392
        %v2409 = vunpack.c.l.b16 %v2393
        %v2410 = vunpack.c.l.b16 %v2394
        %v2411 = vunpack.c.l.b16 %v2395
        %v2412 = vunpack.c.l.b16 %v2396
        %v2413 = vpack.c.b16 %v2406, %v2405
        %v2414 = vpack.c.b16 %v2408, %v2407
        %v2415 = vpack.c.b16 %v2410, %v2409
        %v2416 = vpack.c.b16 %v2412, %v2411
        %v2422 = vsel %vm943, %v2388, 0
        %2424 = vmatprep.subr.bf16.mxu0 0
        %2425 = vmatpush1.bf16.msra.mxu0 %v2413
        %2426 = vmatprep.subr.bf16.mxu0 0
        %2427 = vmatpush1.bf16.msra.mxu0 %v2414
        %2428 = vmatprep.subr.bf16.mxu0 0
        %2429 = vmatpush1.bf16.msra.mxu0 %v2415
        %2430 = vmatprep.subr.bf16.mxu0 0
        %2431 = vmatpush1.bf16.msra.mxu0 %v2416
        %2432 = vmatprep.subr.bf16.mxu0 0
        %2433 = vmatpush1.bf16.msra.mxu0 0
        %2434 = vmatprep.subr.bf16.mxu0 0
        %2435 = vmatpush1.bf16.msra.mxu0 0
        %2436 = vmatprep.subr.bf16.mxu0 0
        %2437 = vmatpush1.bf16.msra.mxu0 0
        %2438 = vmatprep.subr.bf16.mxu0 0
        %2439 = vmatpush1.bf16.msra.mxu0 0
        %2440 = vmatprep.subr.bf16.mxu0 0
        %2441 = vmatpush1.bf16.msra.mxu0 0
        %2442 = vmatprep.subr.bf16.mxu0 0
        %2443 = vmatpush1.bf16.msra.mxu0 0
        %2444 = vmatprep.subr.bf16.mxu0 0
        %2445 = vmatpush1.bf16.msra.mxu0 0
        %2446 = vmatprep.subr.bf16.mxu0 0
        %2447 = vmatpush1.bf16.msra.mxu0 0
        %2448 = vmatprep.subr.bf16.mxu0 0
        %2449 = vmatpush1.bf16.msra.mxu0 0
        %2450 = vmatprep.subr.bf16.mxu0 0
        %2451 = vmatpush1.bf16.msra.mxu0 0
        %2452 = vmatprep.subr.bf16.mxu0 0
        %2453 = vmatpush1.bf16.msra.mxu0 0
        %2454 = vmatprep.subr.bf16.mxu0 0
        %2455 = vmatpush1.bf16.msra.mxu0 0
        %2456 = vmatprep.mubr.bf16.mxu0 0
        %2457 = vmatmul.mubr.bf16.gmra.mrb[0].mxu0 %v2422
        %v2458 = vpop.f32.mrb[0].mxu0
        %v2459 = vadd.f32 %v2310, %v2458
        %v2460 = vpop.f32.mrb[0].mxu0
        %v2461 = vpop.f32.mrb[0].mxu0
        %v2462 = vpop.f32.mrb[0].mxu0
        %2463 = vdwg.mxu0
        %v2464 = vsel %vm943, %v2459, 0.0
        %2465 = vadd.xlane.f32.xlu0 %v2464
        %v2466 = vpop.xlane.xlu0 %2465
        %v2467 = vmul.f32 %v2466, %v2284
        %v2468 = vsub.f32 %v2459, %v2467
        %v2469 = vmul.f32 %v2468, %v2468
        %v2470 = vsel %vm943, %v2469, 0.0
        %2471 = vadd.xlane.f32.xlu0 %v2470
        %v2472 = vpop.xlane.xlu0 %2471
        %v2473 = vmul.f32 %v2472, %v2284
        %v2474 = vadd.f32 %v2473, 1e-05
        %v2475 = vrsqrt.pop %v2474
        %v2476 = vmul.f32 %v2468, %v2475
        %v2477 = vld [vmem:[%s15] sm:$0x1]
        %v2479 = vlaneseq
        %v2480 = vshrl.u32 %v2479, 7
        %v2481 = vsub.s32 0, %v2480
        %v2482 = vrot.slane %v2477, %v2481
        %v2484 = vmul.f32 %v2476, %v2482
        %v2485 = vld [vmem:[%s16] sm:$0x1]
        %v2487 = vlaneseq
        %v2488 = vshrl.u32 %v2487, 7
        %v2489 = vsub.s32 0, %v2488
        %v2490 = vrot.slane %v2485, %v2489
        %v2492 = vadd.f32 %v2484, %v2490
        %2493 = vst.msk [vmem:[%s724] sm:$0xff] %vm943, %v2492
        %s2494 = sand.u32 %s436, 1
        %s2495 = scalar_lea.sflag [#allocation6], %s2494
        %s2496 = sand.u32 %s436, 1
        %s2497 = smul.addr %s2496, 8
        %s2498 = scalar_lea.vmem [#allocation18], %s2497
        // Predicated region
        $region125: #{tpu_custom_call.1} parent=87 // pred_check
          %p2499 = pneg %p446
        $region126: #{tpu_custom_call.1} parent=87 // pred_check_branch
          %2501 = sbr.rel (%p2499) target = $region128
        $region127: #{tpu_custom_call.1} parent=87 // pred_region
          %s2503 = ssub.s32 128, 128
          %2504 = vsyncadd %s2495, %s2503
          %s2505 = sadd.s32 %s45, %s44
          %s2506 = smul.addr %s2505, 128
          %s2507 = scalar_lea.hbm %s17, %s2506
          %s2509 = sshll.u32 %s2498, 4
          %s2510 = int_to_ptr.vmem [resolvable:$true] %s2509
          %2512 = dma.vmem_to_hbm [thread:$0]  %s2510, 128, %s2507, %s2495
        $region128: #{tpu_custom_call.1} parent=87 // pred_fallthru
          _
      $region88: #{tpu_custom_call.1} parent=5 // pred_fallthru
        _
      %p2513 = scmp.le.s32.totalorder 2, %s35
      // Predicated region
      $region129: #{tpu_custom_call.1} parent=5 // pred_check
        %p2514 = pneg %p2513
      $region130: #{tpu_custom_call.1} parent=5 // pred_check_branch
        %2516 = sbr.rel (%p2514) target = $region132
      $region131: #{tpu_custom_call.1} parent=5 // pred_region
        %s2517 = ssub.s32 %s35, 2
        // Predicated region
        $region133: #{tpu_custom_call.1} parent=131 // pred_check
          %p2518 = pneg %p452
        $region134: #{tpu_custom_call.1} parent=131 // pred_check_branch
          %2520 = sbr.rel (%p2518) target = $region136
        $region135: #{tpu_custom_call.1} parent=131 // pred_region
          %s2521 = sand.u32 %s437, 1
          %s2522 = scalar_lea.sflag [#allocation6], %s2521
          %s2523 = sand.u32 %s437, 1
          %s2524 = smul.addr %s2523, 8
          %s2525 = scalar_lea.vmem [#allocation18], %s2524
          %2526 = dma.done %s2522, 128
        $region136: #{tpu_custom_call.1} parent=131 // pred_fallthru
          _
      $region132: #{tpu_custom_call.1} parent=5 // pred_fallthru
        _
    $region6: #{tpu_custom_call.1} parent=1 // loop_footer
      %s39 = sadd.s32 1, %s35
    $region7: #{tpu_custom_call.1} parent=1 // loop_footer_branch
      %34 = sbr.rel target = $region3
    $region8: #{tpu_custom_call.1} parent=1 // loop_exit
      _
    %2527 = vsyncpa [#allocation5], 1
    %s2528 = scalar_lea.sflag [#allocation5], 1
    %2529 = vsyncpa %s2528, 1
    %2530 = vsyncpa [#allocation8], 1
    %s2531 = scalar_lea.sflag [#allocation8], 1
    %2532 = vsyncpa %s2531, 1
    %2533 = vsyncpa [#allocation11], 1
    %2534 = vsyncpa [#allocation14], 1
    %2535 = vsyncpa [#allocation17], 1
    %2536 = vsyncpa [#allocation6], 1
    %s2537 = scalar_lea.sflag [#allocation6], 1
    %2538 = vsyncpa %s2537, 1

</llo_original>
